<compile_context>
chip_gen: v5e
topology: v5e:2x2
jax: 0.10.0
libtpu: 0.0.40
codegen_flags: <defaults>
</compile_context>

<pallas_src>
from functools import lru_cache, partial

import numpy as np
import jax
import jax.numpy as jnp
from jax import lax
from jax.experimental import pallas as pl
from jax.experimental.pallas import tpu as pltpu

EPS = 1e-5          # BatchNorm eps (torch default)
NEG_SLOPE = 0.01    # LeakyReLU default slope
POOL_OUT = 199      # AdaptiveAvgPool1d target length


def _mycnn_kernel(x_ref,
                  c1w_ref, c1b_ref, bn1g_ref, bn1b_ref,
                  c2w_ref, c2b_ref, bn2g_ref, bn2b_ref,
                  w1f_hbm, fc1b_ref, bn3g_ref, bn3b_ref,
                  fc2w_ref, fc2b_ref, bn4g_ref, bn4b_ref,
                  fc3w_ref, fc3b_ref,
                  out_ref,
                  w1f_vmem, w1f_sem, *, L1, L2):
    B, Lp = x_ref.shape

    # Kick off the big (Lp, 199) folded-fc1 weight DMA immediately: it is only consumed
    # by the z @ w1f matmul at the end, so it overlaps the whole conv/BN section.
    w1f_copy = pltpu.make_async_copy(w1f_hbm, w1f_vmem, w1f_sem)
    w1f_copy.start()

    lane = lax.broadcasted_iota(jnp.int32, (B, Lp), 1)
    mask1 = lane < L1            # valid conv1 output positions
    mask2 = lane < L2            # valid conv2 output positions
    inv_n1 = 1.0 / (B * L1)
    inv_n2 = 1.0 / (B * L2)
    inv_b = 1.0 / B

    # x shifted left by 1 / 2 lanes via XLU rotations (shift Lp-k == -k mod Lp).  The
    # wrapped lanes land at indices >= Lp-2 >= L1 and are masked out of every statistic.
    x0 = x_ref[...]
    x1 = pltpu.roll(x0, Lp - 1, axis=1)   # x0[:, i+1]
    x2 = pltpu.roll(x0, Lp - 2, axis=1)   # x0[:, i+2]

    # ---- Conv1d(1->4, k=3): each channel evaluated exactly once (shift 0 only) --------
    a = [x0 * c1w_ref[3 * c + 0] + x1 * c1w_ref[3 * c + 1] + x2 * c1w_ref[3 * c + 2]
         + c1b_ref[c] for c in range(4)]

    # ---- BN1 batch statistics for all four channels up front ---------------------------
    # Grouped so the four cross-lane reduce -> rsqrt chains pipeline instead of
    # serializing with each channel's tap accumulation.  Single-pass sum / sum-of-squares
    # (var = E[x^2] - mu^2, clamped at 0) - adequate for the 2e-2 comparison tolerance.
    scale = [None] * 4
    shift = [None] * 4
    for c in range(4):
        am = jnp.where(mask1, a[c], 0.0)
        mu = jnp.sum(am) * inv_n1
        var = jnp.maximum(jnp.sum(am * am) * inv_n1 - mu * mu, 0.0)
        sc = lax.rsqrt(var + EPS) * bn1g_ref[c]
        scale[c] = sc
        shift[c] = bn1b_ref[c] - mu * sc

    # ---- Conv1d(4->1, k=3): taps come from XLU rolls of each channel's BN1+ReLU -------
    # output; the channel slab is dropped right after its three taps are accumulated.
    # (If bundle dumps show vreg spills from keeping a[0..3] live, switch to grouping
    #  the statistics two channels at a time.)
    y = jnp.zeros((B, Lp), jnp.float32)
    for c in range(4):
        h0 = jnp.maximum(a[c] * scale[c] + shift[c], 0.0)             # valid for lanes < L1
        y = y + h0 * c2w_ref[3 * c + 0]
        y = y + pltpu.roll(h0, Lp - 1, axis=1) * c2w_ref[3 * c + 1]   # h0[:, i+1]
        y = y + pltpu.roll(h0, Lp - 2, axis=1) * c2w_ref[3 * c + 2]   # h0[:, i+2]

    # ---- Conv2 bias + BatchNorm1d(1) (batch stats over the valid L2 lanes) + ReLU -----
    y = jnp.where(mask2, y + c2b_ref[0], 0.0)
    mu = jnp.sum(y) * inv_n2
    var = jnp.maximum(jnp.sum(y * y) * inv_n2 - mu * mu, 0.0)
    sc = lax.rsqrt(var + EPS) * bn2g_ref[0]
    sh = bn2b_ref[0] - mu * sc
    yb = jnp.maximum(y * sc + sh, 0.0)

    # ---- MaxPool1d(2,2): partner lane via one XLU roll.  Only even lanes < L2-1 are
    # consumed downstream; everything else hits structurally-zero rows of w1f. ----------
    z = jnp.maximum(yb, pltpu.roll(yb, Lp - 1, axis=1))

    # ---- AdaptiveAvgPool1d(199) x2 + Linear(199,199): one matmul against the pre-folded
    # (maxpool-select o avgpool o fc1) matrix, DMA'd in the background since kernel start.
    w1f_copy.wait()
    h = jnp.dot(z, w1f_vmem[...], preferred_element_type=jnp.float32) + fc1b_ref[...]

    # ---- BatchNorm1d(199) + LeakyReLU ---------------------------------------------------
    mu = jnp.sum(h, axis=0, keepdims=True) * inv_b
    var = jnp.maximum(jnp.sum(h * h, axis=0, keepdims=True) * inv_b - mu * mu, 0.0)
    h = (h - mu) * lax.rsqrt(var + EPS) * bn3g_ref[...] + bn3b_ref[...]
    h = jnp.where(h > 0, h, NEG_SLOPE * h)

    # ---- Linear(199,25) + BatchNorm1d(25) + LeakyReLU -----------------------------------
    h = jnp.dot(h, fc2w_ref[...], preferred_element_type=jnp.float32) + fc2b_ref[...]
    mu = jnp.sum(h, axis=0, keepdims=True) * inv_b
    var = jnp.maximum(jnp.sum(h * h, axis=0, keepdims=True) * inv_b - mu * mu, 0.0)
    h = (h - mu) * lax.rsqrt(var + EPS) * bn4g_ref[...] + bn4b_ref[...]
    h = jnp.where(h > 0, h, NEG_SLOPE * h)

    # ---- Linear(25, n_classes) ----------------------------------------------------------
    out = jnp.dot(h, fc3w_ref[...], preferred_element_type=jnp.float32) + fc3b_ref[...]
    out_ref[...] = out.astype(out_ref.dtype)


def _round_up(n, m):
    return ((n + m - 1) // m) * m


@lru_cache(maxsize=None)
def _pool_matrix_np(L2, out_len=POOL_OUT):
    """Q of shape (L2-1, out_len): even-index selection (MaxPool1d(2,2) outputs inside
    z[i] = max(y[i], y[i+1])) composed with AdaptiveAvgPool1d(out_len) bin weights
    (the second adaptive pool 199->199 is the identity). Cached host-side."""
    P = L2 // 2
    A = np.zeros((P, out_len), np.float32)
    for i in range(out_len):
        s = (i * P) // out_len
        e = -(-((i + 1) * P) // out_len)   # ceil
        A[s:e, i] = 1.0 / (e - s)
    S = np.zeros((L2 - 1, P), np.float32)
    S[2 * np.arange(P), np.arange(P)] = 1.0
    return S @ A


def prepare_mycnn(params, L):
    """One-time (per weights / input length) preprocessing, hoisted out of the per-call
    path: folds MaxPool + both adaptive pools + fc1 into one lane-aligned (Lp, 199)
    matrix (HIGHEST precision - it is off the hot path) and flattens the conv weights."""
    L2 = L - 4
    Lp = _round_up(L, 128)
    # All in-kernel roll wrap-around lanes land at indices >= Lp-3 >= L2-1, where mask2
    # and the zero-padded rows of w1f discard them.
    assert Lp - 3 >= L2 - 1

    poolq = jnp.asarray(_pool_matrix_np(L2))                                  # (L2-1, 199)
    w1f = jnp.matmul(poolq, params["fc1_w"], precision=lax.Precision.HIGHEST)
    w1f = jnp.pad(w1f, ((0, Lp - (L2 - 1)), (0, 0)))                          # (Lp, 199)
    # TODO(synk): odd rows (and rows >= L2-1) of w1f are structurally zero; compacting
    # them (even-lane pick of z in-kernel) would halve the weight DMA - mainly a v5e win.

    prepped = dict(params)
    prepped["w1f"] = w1f
    prepped["conv1_w_flat"] = params["conv1_w"].reshape(-1)
    prepped["conv2_w_flat"] = params["conv2_w"].reshape(-1)
    return prepped


def mycnn_forward(x, prepped):
    B, L = x.shape
    L1, L2 = L - 2, L - 4
    w1f = prepped["w1f"]
    Lp = w1f.shape[0]
    n_classes = prepped["fc3_w"].shape[1]

    xp = jnp.pad(x, ((0, 0), (0, Lp - L)))        # lane-aligned, zero tail

    smem = pl.BlockSpec(memory_space=pltpu.MemorySpace.SMEM)
    vmem = pl.BlockSpec(memory_space=pltpu.MemorySpace.VMEM)
    hbm = pl.BlockSpec(memory_space=pl.ANY)       # stays in HBM; DMA'd inside the kernel

    operands = (
        xp,
        prepped["conv1_w_flat"], prepped["conv1_b"], prepped["bn1_g"], prepped["bn1_b"],
        prepped["conv2_w_flat"], prepped["conv2_b"], prepped["bn2_g"], prepped["bn2_b"],
        w1f, prepped["fc1_b"], prepped["bn3_g"], prepped["bn3_b"],
        prepped["fc2_w"], prepped["fc2_b"], prepped["bn4_g"], prepped["bn4_b"],
        prepped["fc3_w"], prepped["fc3_b"],
    )
    in_specs = [vmem,
                smem, smem, smem, smem,
                smem, smem, smem, smem,
                hbm, vmem, vmem, vmem,
                vmem, vmem, vmem, vmem,
                vmem, vmem]

    # TODO(synk): at larger batch, tile B over a ("parallel",) grid / pl.core_map so the
    # second TensorCore on v7x is used (BatchNorm batch stats then need a cross-core
    # reduction), and pad the class dim to 128 lanes for an unmasked final vst.
    return pl.pallas_call(
        partial(_mycnn_kernel, L1=L1, L2=L2),
        out_shape=jax.ShapeDtypeStruct((B, n_classes), jnp.float32),
        in_specs=in_specs,
        out_specs=vmem,
        scratch_shapes=[pltpu.VMEM((Lp, POOL_OUT), jnp.float32),
                        pltpu.SemaphoreType.DMA],
    )(*operands)


def ref_forward(x, p):
    """Pure-JAX reference mirroring the torch forward (training-mode BatchNorm)."""
    B, L = x.shape
    L1, L2 = L - 2, L - 4
    h = jnp.stack([
        sum(p["conv1_w"][c, k] * x[:, k:k + L1] for k in range(3)) + p["conv1_b"][c]
        for c in range(4)], axis=1)                                    # (B, 4, L1)
    mu = h.mean(axis=(0, 2), keepdims=True)
    var = ((h - mu) ** 2).mean(axis=(0, 2), keepdims=True)
    h = (h - mu) * lax.rsqrt(var + EPS) * p["bn1_g"][None, :, None] + p["bn1_b"][None, :, None]
    h = jnp.maximum(h, 0.0)

    y = sum(p["conv2_w"][c, k] * h[:, c, k:k + L2]
            for c in range(4) for k in range(3)) + p["conv2_b"][0]     # (B, L2)
    mu = y.mean()
    var = ((y - mu) ** 2).mean()
    y = (y - mu) * lax.rsqrt(var + EPS) * p["bn2_g"][0] + p["bn2_b"][0]
    y = jnp.maximum(y, 0.0)

    P = L2 // 2
    yp = y[:, :2 * P].reshape(B, P, 2).max(axis=2)                     # MaxPool1d(2,2)
    cols = []
    for i in range(POOL_OUT):                                          # AdaptiveAvgPool1d(199)
        s = (i * P) // POOL_OUT
        e = -(-((i + 1) * P) // POOL_OUT)
        cols.append(yp[:, s:e].mean(axis=1))
    z = jnp.stack(cols, axis=1)                                        # 2nd adaptive pool = identity

    h1 = jnp.dot(z, p["fc1_w"], precision=lax.Precision.HIGHEST) + p["fc1_b"][0]
    mu = h1.mean(axis=0); var = ((h1 - mu) ** 2).mean(axis=0)
    h1 = (h1 - mu) * lax.rsqrt(var + EPS) * p["bn3_g"][0] + p["bn3_b"][0]
    h1 = jnp.where(h1 > 0, h1, NEG_SLOPE * h1)

    h2 = jnp.dot(h1, p["fc2_w"], precision=lax.Precision.HIGHEST) + p["fc2_b"][0]
    mu = h2.mean(axis=0); var = ((h2 - mu) ** 2).mean(axis=0)
    h2 = (h2 - mu) * lax.rsqrt(var + EPS) * p["bn4_g"][0] + p["bn4_b"][0]
    h2 = jnp.where(h2 > 0, h2, NEG_SLOPE * h2)

    return jnp.dot(h2, p["fc3_w"], precision=lax.Precision.HIGHEST) + p["fc3_b"][0]


if __name__ == "__main__":
    key = jax.random.PRNGKey(0)
    B, L, n_classes = 8, 800, 5          # B=8 fills the 8 sublanes of every vreg
    keys = jax.random.split(key, 19)

    def nrm(k, shape, scale):
        return scale * jax.random.normal(k, shape, jnp.float32)

    # Deterministic synthetic parameters (fc weights stored as (in, out), i.e. torch W^T).
    params = {
        "conv1_w": nrm(keys[0], (4, 3), 0.5),
        "conv1_b": nrm(keys[1], (4,), 0.1),
        "bn1_g": 1.0 + nrm(keys[2], (4,), 0.1),
        "bn1_b": nrm(keys[3], (4,), 0.1),
        "conv2_w": nrm(keys[4], (4, 3), 0.5),
        "conv2_b": nrm(keys[5], (1,), 0.1),
        "bn2_g": 1.0 + nrm(keys[6], (1,), 0.1),
        "bn2_b": nrm(keys[7], (1,), 0.1),
        "fc1_w": nrm(keys[8], (199, 199), 0.08),
        "fc1_b": nrm(keys[9], (1, 199), 0.1),
        "bn3_g": 1.0 + nrm(keys[10], (1, 199), 0.1),
        "bn3_b": nrm(keys[11], (1, 199), 0.1),
        "fc2_w": nrm(keys[12], (199, 25), 0.08),
        "fc2_b": nrm(keys[13], (1, 25), 0.1),
        "bn4_g": 1.0 + nrm(keys[14], (1, 25), 0.1),
        "bn4_b": nrm(keys[15], (1, 25), 0.1),
        "fc3_w": nrm(keys[16], (25, n_classes), 0.2),
        "fc3_b": nrm(keys[17], (1, n_classes), 0.1),
    }
    x = jax.random.normal(keys[18], (B, L), jnp.float32)

    prepped = prepare_mycnn(params, L)          # one-time fold, off the per-call path
    fwd = jax.jit(mycnn_forward)

    out = jax.block_until_ready(fwd(x, prepped))
    ref = jax.block_until_ready(ref_forward(x, params))
    assert out.shape == (B, n_classes)
    # Kernel matmuls run at default MXU precision (bf16 passes) vs. the f32-HIGHEST
    # reference, so allow a slightly looser tolerance than pure-f32 comparison.
    np.testing.assert_allclose(np.asarray(out), np.asarray(ref), rtol=2e-2, atol=2e-2)
    print("KERNEL_OK")
</pallas_src>

<mosaic_0001>
module attributes {stable_mosaic.version = 11 : i64} {
  func.func @_mycnn_kernel(%arg0: memref<8x896xf32, #tpu.memory_space<vmem>>, %arg1: memref<12xf32, #tpu.memory_space<smem>>, %arg2: memref<4xf32, #tpu.memory_space<smem>>, %arg3: memref<4xf32, #tpu.memory_space<smem>>, %arg4: memref<4xf32, #tpu.memory_space<smem>>, %arg5: memref<12xf32, #tpu.memory_space<smem>>, %arg6: memref<1xf32, #tpu.memory_space<smem>>, %arg7: memref<1xf32, #tpu.memory_space<smem>>, %arg8: memref<1xf32, #tpu.memory_space<smem>>, %arg9: memref<896x199xf32, #tpu.memory_space<any>>, %arg10: memref<1x199xf32, #tpu.memory_space<vmem>>, %arg11: memref<1x199xf32, #tpu.memory_space<vmem>>, %arg12: memref<1x199xf32, #tpu.memory_space<vmem>>, %arg13: memref<199x25xf32, #tpu.memory_space<vmem>>, %arg14: memref<1x25xf32, #tpu.memory_space<vmem>>, %arg15: memref<1x25xf32, #tpu.memory_space<vmem>>, %arg16: memref<1x25xf32, #tpu.memory_space<vmem>>, %arg17: memref<25x5xf32, #tpu.memory_space<vmem>>, %arg18: memref<1x5xf32, #tpu.memory_space<vmem>>, %arg19: memref<8x5xf32, #tpu.memory_space<vmem>>, %arg20: memref<896x199xf32, #tpu.memory_space<vmem>>, %arg21: memref<!tpu.dma_semaphore, #tpu.memory_space<semaphore_mem>>) attributes {dimension_semantics = [], scalar_prefetch = 0 : i64, scratch_operands = 2 : i64, tpu.core_type = #tpu.core_type<tc>} {
    tpu.enqueue_dma source(%arg9 : memref<896x199xf32, #tpu.memory_space<any>>) target(%arg20 : memref<896x199xf32, #tpu.memory_space<vmem>>) target_semaphore(%arg21 : memref<!tpu.dma_semaphore, #tpu.memory_space<semaphore_mem>>)
    %0 = tpu.iota {dimensions = array<i32: 1>} : vector<8x896xi32>
    %c798_i32 = arith.constant 798 : i32
    %1 = vector.broadcast %c798_i32 : i32 to vector<8x896xi32>
    %2 = arith.cmpi slt, %0, %1 : vector<8x896xi32>
    %c796_i32 = arith.constant 796 : i32
    %3 = vector.broadcast %c796_i32 : i32 to vector<8x896xi32>
    %4 = arith.cmpi slt, %0, %3 : vector<8x896xi32>
    %c0 = arith.constant 0 : index
    %c0_0 = arith.constant 0 : index
    %5 = vector.load %arg0[%c0, %c0_0] : memref<8x896xf32, #tpu.memory_space<vmem>>, vector<8x896xf32>
    %c895_i32 = arith.constant 895 : i32
    %6 = tpu.dynamic_rotate %5 by %c895_i32 dim 1 : vector<8x896xf32>, i32 -> vector<8x896xf32>
    %c894_i32 = arith.constant 894 : i32
    %7 = tpu.dynamic_rotate %5 by %c894_i32 dim 1 : vector<8x896xf32>, i32 -> vector<8x896xf32>
    %c0_1 = arith.constant 0 : index
    %8 = memref.load %arg1[%c0_1] : memref<12xf32, #tpu.memory_space<smem>>
    %9 = vector.broadcast %8 : f32 to vector<8x896xf32>
    %10 = arith.mulf %5, %9 : vector<8x896xf32>
    %c1 = arith.constant 1 : index
    %11 = memref.load %arg1[%c1] : memref<12xf32, #tpu.memory_space<smem>>
    %12 = vector.broadcast %11 : f32 to vector<8x896xf32>
    %13 = arith.mulf %6, %12 : vector<8x896xf32>
    %14 = arith.addf %10, %13 : vector<8x896xf32>
    %c2 = arith.constant 2 : index
    %15 = memref.load %arg1[%c2] : memref<12xf32, #tpu.memory_space<smem>>
    %16 = vector.broadcast %15 : f32 to vector<8x896xf32>
    %17 = arith.mulf %7, %16 : vector<8x896xf32>
    %18 = arith.addf %14, %17 : vector<8x896xf32>
    %c0_2 = arith.constant 0 : index
    %19 = memref.load %arg2[%c0_2] : memref<4xf32, #tpu.memory_space<smem>>
    %20 = vector.broadcast %19 : f32 to vector<8x896xf32>
    %21 = arith.addf %18, %20 : vector<8x896xf32>
    %c3 = arith.constant 3 : index
    %22 = memref.load %arg1[%c3] : memref<12xf32, #tpu.memory_space<smem>>
    %23 = vector.broadcast %22 : f32 to vector<8x896xf32>
    %24 = arith.mulf %5, %23 : vector<8x896xf32>
    %c4 = arith.constant 4 : index
    %25 = memref.load %arg1[%c4] : memref<12xf32, #tpu.memory_space<smem>>
    %26 = vector.broadcast %25 : f32 to vector<8x896xf32>
    %27 = arith.mulf %6, %26 : vector<8x896xf32>
    %28 = arith.addf %24, %27 : vector<8x896xf32>
    %c5 = arith.constant 5 : index
    %29 = memref.load %arg1[%c5] : memref<12xf32, #tpu.memory_space<smem>>
    %30 = vector.broadcast %29 : f32 to vector<8x896xf32>
    %31 = arith.mulf %7, %30 : vector<8x896xf32>
    %32 = arith.addf %28, %31 : vector<8x896xf32>
    %c1_3 = arith.constant 1 : index
    %33 = memref.load %arg2[%c1_3] : memref<4xf32, #tpu.memory_space<smem>>
    %34 = vector.broadcast %33 : f32 to vector<8x896xf32>
    %35 = arith.addf %32, %34 : vector<8x896xf32>
    %c6 = arith.constant 6 : index
    %36 = memref.load %arg1[%c6] : memref<12xf32, #tpu.memory_space<smem>>
    %37 = vector.broadcast %36 : f32 to vector<8x896xf32>
    %38 = arith.mulf %5, %37 : vector<8x896xf32>
    %c7 = arith.constant 7 : index
    %39 = memref.load %arg1[%c7] : memref<12xf32, #tpu.memory_space<smem>>
    %40 = vector.broadcast %39 : f32 to vector<8x896xf32>
    %41 = arith.mulf %6, %40 : vector<8x896xf32>
    %42 = arith.addf %38, %41 : vector<8x896xf32>
    %c8 = arith.constant 8 : index
    %43 = memref.load %arg1[%c8] : memref<12xf32, #tpu.memory_space<smem>>
    %44 = vector.broadcast %43 : f32 to vector<8x896xf32>
    %45 = arith.mulf %7, %44 : vector<8x896xf32>
    %46 = arith.addf %42, %45 : vector<8x896xf32>
    %c2_4 = arith.constant 2 : index
    %47 = memref.load %arg2[%c2_4] : memref<4xf32, #tpu.memory_space<smem>>
    %48 = vector.broadcast %47 : f32 to vector<8x896xf32>
    %49 = arith.addf %46, %48 : vector<8x896xf32>
    %c9 = arith.constant 9 : index
    %50 = memref.load %arg1[%c9] : memref<12xf32, #tpu.memory_space<smem>>
    %51 = vector.broadcast %50 : f32 to vector<8x896xf32>
    %52 = arith.mulf %5, %51 : vector<8x896xf32>
    %c10 = arith.constant 10 : index
    %53 = memref.load %arg1[%c10] : memref<12xf32, #tpu.memory_space<smem>>
    %54 = vector.broadcast %53 : f32 to vector<8x896xf32>
    %55 = arith.mulf %6, %54 : vector<8x896xf32>
    %56 = arith.addf %52, %55 : vector<8x896xf32>
    %c11 = arith.constant 11 : index
    %57 = memref.load %arg1[%c11] : memref<12xf32, #tpu.memory_space<smem>>
    %58 = vector.broadcast %57 : f32 to vector<8x896xf32>
    %59 = arith.mulf %7, %58 : vector<8x896xf32>
    %60 = arith.addf %56, %59 : vector<8x896xf32>
    %c3_5 = arith.constant 3 : index
    %61 = memref.load %arg2[%c3_5] : memref<4xf32, #tpu.memory_space<smem>>
    %62 = vector.broadcast %61 : f32 to vector<8x896xf32>
    %63 = arith.addf %60, %62 : vector<8x896xf32>
    %cst = arith.constant 0.000000e+00 : f32
    %64 = vector.broadcast %cst : f32 to vector<8x896xf32>
    %65 = arith.select %2, %21, %64 : vector<8x896xi1>, vector<8x896xf32>
    %66 = vector.shape_cast %65 : vector<8x896xf32> to vector<1x8x896xf32>
    %cst_6 = arith.constant dense<0.000000e+00> : vector<1xf32>
    %67 = vector.multi_reduction <add>, %66, %cst_6 [1, 2] : vector<1x8x896xf32> to vector<1xf32>
    %68 = vector.shape_cast %67 : vector<1xf32> to vector<1x1x1xf32>
    %69 = vector.extract %68[0, 0, 0] : f32 from vector<1x1x1xf32>
    %cst_7 = arith.constant 1.56641603E-4 : f32
    %70 = arith.mulf %69, %cst_7 : f32
    %71 = arith.mulf %65, %65 : vector<8x896xf32>
    %72 = vector.shape_cast %71 : vector<8x896xf32> to vector<1x8x896xf32>
    %cst_8 = arith.constant dense<0.000000e+00> : vector<1xf32>
    %73 = vector.multi_reduction <add>, %72, %cst_8 [1, 2] : vector<1x8x896xf32> to vector<1xf32>
    %74 = vector.shape_cast %73 : vector<1xf32> to vector<1x1x1xf32>
    %75 = vector.extract %74[0, 0, 0] : f32 from vector<1x1x1xf32>
    %cst_9 = arith.constant 1.56641603E-4 : f32
    %76 = arith.mulf %75, %cst_9 : f32
    %77 = arith.mulf %70, %70 : f32
    %78 = arith.subf %76, %77 : f32
    %cst_10 = arith.constant 0.000000e+00 : f32
    %79 = arith.maximumf %78, %cst_10 : f32
    %cst_11 = arith.constant 9.99999974E-6 : f32
    %80 = arith.addf %79, %cst_11 : f32
    %81 = math.rsqrt %80 : f32
    %c0_12 = arith.constant 0 : index
    %82 = memref.load %arg3[%c0_12] : memref<4xf32, #tpu.memory_space<smem>>
    %83 = arith.mulf %81, %82 : f32
    %c0_13 = arith.constant 0 : index
    %84 = memref.load %arg4[%c0_13] : memref<4xf32, #tpu.memory_space<smem>>
    %85 = arith.mulf %70, %83 : f32
    %86 = arith.subf %84, %85 : f32
    %cst_14 = arith.constant 0.000000e+00 : f32
    %87 = vector.broadcast %cst_14 : f32 to vector<8x896xf32>
    %88 = arith.select %2, %35, %87 : vector<8x896xi1>, vector<8x896xf32>
    %89 = vector.shape_cast %88 : vector<8x896xf32> to vector<1x8x896xf32>
    %cst_15 = arith.constant dense<0.000000e+00> : vector<1xf32>
    %90 = vector.multi_reduction <add>, %89, %cst_15 [1, 2] : vector<1x8x896xf32> to vector<1xf32>
    %91 = vector.shape_cast %90 : vector<1xf32> to vector<1x1x1xf32>
    %92 = vector.extract %91[0, 0, 0] : f32 from vector<1x1x1xf32>
    %cst_16 = arith.constant 1.56641603E-4 : f32
    %93 = arith.mulf %92, %cst_16 : f32
    %94 = arith.mulf %88, %88 : vector<8x896xf32>
    %95 = vector.shape_cast %94 : vector<8x896xf32> to vector<1x8x896xf32>
    %cst_17 = arith.constant dense<0.000000e+00> : vector<1xf32>
    %96 = vector.multi_reduction <add>, %95, %cst_17 [1, 2] : vector<1x8x896xf32> to vector<1xf32>
    %97 = vector.shape_cast %96 : vector<1xf32> to vector<1x1x1xf32>
    %98 = vector.extract %97[0, 0, 0] : f32 from vector<1x1x1xf32>
    %cst_18 = arith.constant 1.56641603E-4 : f32
    %99 = arith.mulf %98, %cst_18 : f32
    %100 = arith.mulf %93, %93 : f32
    %101 = arith.subf %99, %100 : f32
    %cst_19 = arith.constant 0.000000e+00 : f32
    %102 = arith.maximumf %101, %cst_19 : f32
    %cst_20 = arith.constant 9.99999974E-6 : f32
    %103 = arith.addf %102, %cst_20 : f32
    %104 = math.rsqrt %103 : f32
    %c1_21 = arith.constant 1 : index
    %105 = memref.load %arg3[%c1_21] : memref<4xf32, #tpu.memory_space<smem>>
    %106 = arith.mulf %104, %105 : f32
    %c1_22 = arith.constant 1 : index
    %107 = memref.load %arg4[%c1_22] : memref<4xf32, #tpu.memory_space<smem>>
    %108 = arith.mulf %93, %106 : f32
    %109 = arith.subf %107, %108 : f32
    %cst_23 = arith.constant 0.000000e+00 : f32
    %110 = vector.broadcast %cst_23 : f32 to vector<8x896xf32>
    %111 = arith.select %2, %49, %110 : vector<8x896xi1>, vector<8x896xf32>
    %112 = vector.shape_cast %111 : vector<8x896xf32> to vector<1x8x896xf32>
    %cst_24 = arith.constant dense<0.000000e+00> : vector<1xf32>
    %113 = vector.multi_reduction <add>, %112, %cst_24 [1, 2] : vector<1x8x896xf32> to vector<1xf32>
    %114 = vector.shape_cast %113 : vector<1xf32> to vector<1x1x1xf32>
    %115 = vector.extract %114[0, 0, 0] : f32 from vector<1x1x1xf32>
    %cst_25 = arith.constant 1.56641603E-4 : f32
    %116 = arith.mulf %115, %cst_25 : f32
    %117 = arith.mulf %111, %111 : vector<8x896xf32>
    %118 = vector.shape_cast %117 : vector<8x896xf32> to vector<1x8x896xf32>
    %cst_26 = arith.constant dense<0.000000e+00> : vector<1xf32>
    %119 = vector.multi_reduction <add>, %118, %cst_26 [1, 2] : vector<1x8x896xf32> to vector<1xf32>
    %120 = vector.shape_cast %119 : vector<1xf32> to vector<1x1x1xf32>
    %121 = vector.extract %120[0, 0, 0] : f32 from vector<1x1x1xf32>
    %cst_27 = arith.constant 1.56641603E-4 : f32
    %122 = arith.mulf %121, %cst_27 : f32
    %123 = arith.mulf %116, %116 : f32
    %124 = arith.subf %122, %123 : f32
    %cst_28 = arith.constant 0.000000e+00 : f32
    %125 = arith.maximumf %124, %cst_28 : f32
    %cst_29 = arith.constant 9.99999974E-6 : f32
    %126 = arith.addf %125, %cst_29 : f32
    %127 = math.rsqrt %126 : f32
    %c2_30 = arith.constant 2 : index
    %128 = memref.load %arg3[%c2_30] : memref<4xf32, #tpu.memory_space<smem>>
    %129 = arith.mulf %127, %128 : f32
    %c2_31 = arith.constant 2 : index
    %130 = memref.load %arg4[%c2_31] : memref<4xf32, #tpu.memory_space<smem>>
    %131 = arith.mulf %116, %129 : f32
    %132 = arith.subf %130, %131 : f32
    %cst_32 = arith.constant 0.000000e+00 : f32
    %133 = vector.broadcast %cst_32 : f32 to vector<8x896xf32>
    %134 = arith.select %2, %63, %133 : vector<8x896xi1>, vector<8x896xf32>
    %135 = vector.shape_cast %134 : vector<8x896xf32> to vector<1x8x896xf32>
    %cst_33 = arith.constant dense<0.000000e+00> : vector<1xf32>
    %136 = vector.multi_reduction <add>, %135, %cst_33 [1, 2] : vector<1x8x896xf32> to vector<1xf32>
    %137 = vector.shape_cast %136 : vector<1xf32> to vector<1x1x1xf32>
    %138 = vector.extract %137[0, 0, 0] : f32 from vector<1x1x1xf32>
    %cst_34 = arith.constant 1.56641603E-4 : f32
    %139 = arith.mulf %138, %cst_34 : f32
    %140 = arith.mulf %134, %134 : vector<8x896xf32>
    %141 = vector.shape_cast %140 : vector<8x896xf32> to vector<1x8x896xf32>
    %cst_35 = arith.constant dense<0.000000e+00> : vector<1xf32>
    %142 = vector.multi_reduction <add>, %141, %cst_35 [1, 2] : vector<1x8x896xf32> to vector<1xf32>
    %143 = vector.shape_cast %142 : vector<1xf32> to vector<1x1x1xf32>
    %144 = vector.extract %143[0, 0, 0] : f32 from vector<1x1x1xf32>
    %cst_36 = arith.constant 1.56641603E-4 : f32
    %145 = arith.mulf %144, %cst_36 : f32
    %146 = arith.mulf %139, %139 : f32
    %147 = arith.subf %145, %146 : f32
    %cst_37 = arith.constant 0.000000e+00 : f32
    %148 = arith.maximumf %147, %cst_37 : f32
    %cst_38 = arith.constant 9.99999974E-6 : f32
    %149 = arith.addf %148, %cst_38 : f32
    %150 = math.rsqrt %149 : f32
    %c3_39 = arith.constant 3 : index
    %151 = memref.load %arg3[%c3_39] : memref<4xf32, #tpu.memory_space<smem>>
    %152 = arith.mulf %150, %151 : f32
    %c3_40 = arith.constant 3 : index
    %153 = memref.load %arg4[%c3_40] : memref<4xf32, #tpu.memory_space<smem>>
    %154 = arith.mulf %139, %152 : f32
    %155 = arith.subf %153, %154 : f32
    %cst_41 = arith.constant 0.000000e+00 : f32
    %156 = vector.broadcast %cst_41 : f32 to vector<8x896xf32>
    %157 = vector.broadcast %83 : f32 to vector<8x896xf32>
    %158 = arith.mulf %21, %157 : vector<8x896xf32>
    %159 = vector.broadcast %86 : f32 to vector<8x896xf32>
    %160 = arith.addf %158, %159 : vector<8x896xf32>
    %cst_42 = arith.constant 0.000000e+00 : f32
    %161 = vector.broadcast %cst_42 : f32 to vector<8x896xf32>
    %162 = arith.maximumf %160, %161 : vector<8x896xf32>
    %c0_43 = arith.constant 0 : index
    %163 = memref.load %arg5[%c0_43] : memref<12xf32, #tpu.memory_space<smem>>
    %164 = vector.broadcast %163 : f32 to vector<8x896xf32>
    %165 = arith.mulf %162, %164 : vector<8x896xf32>
    %166 = arith.addf %156, %165 : vector<8x896xf32>
    %c895_i32_44 = arith.constant 895 : i32
    %167 = tpu.dynamic_rotate %162 by %c895_i32_44 dim 1 : vector<8x896xf32>, i32 -> vector<8x896xf32>
    %c1_45 = arith.constant 1 : index
    %168 = memref.load %arg5[%c1_45] : memref<12xf32, #tpu.memory_space<smem>>
    %169 = vector.broadcast %168 : f32 to vector<8x896xf32>
    %170 = arith.mulf %167, %169 : vector<8x896xf32>
    %171 = arith.addf %166, %170 : vector<8x896xf32>
    %c894_i32_46 = arith.constant 894 : i32
    %172 = tpu.dynamic_rotate %162 by %c894_i32_46 dim 1 : vector<8x896xf32>, i32 -> vector<8x896xf32>
    %c2_47 = arith.constant 2 : index
    %173 = memref.load %arg5[%c2_47] : memref<12xf32, #tpu.memory_space<smem>>
    %174 = vector.broadcast %173 : f32 to vector<8x896xf32>
    %175 = arith.mulf %172, %174 : vector<8x896xf32>
    %176 = arith.addf %171, %175 : vector<8x896xf32>
    %177 = vector.broadcast %106 : f32 to vector<8x896xf32>
    %178 = arith.mulf %35, %177 : vector<8x896xf32>
    %179 = vector.broadcast %109 : f32 to vector<8x896xf32>
    %180 = arith.addf %178, %179 : vector<8x896xf32>
    %cst_48 = arith.constant 0.000000e+00 : f32
    %181 = vector.broadcast %cst_48 : f32 to vector<8x896xf32>
    %182 = arith.maximumf %180, %181 : vector<8x896xf32>
    %c3_49 = arith.constant 3 : index
    %183 = memref.load %arg5[%c3_49] : memref<12xf32, #tpu.memory_space<smem>>
    %184 = vector.broadcast %183 : f32 to vector<8x896xf32>
    %185 = arith.mulf %182, %184 : vector<8x896xf32>
    %186 = arith.addf %176, %185 : vector<8x896xf32>
    %c895_i32_50 = arith.constant 895 : i32
    %187 = tpu.dynamic_rotate %182 by %c895_i32_50 dim 1 : vector<8x896xf32>, i32 -> vector<8x896xf32>
    %c4_51 = arith.constant 4 : index
    %188 = memref.load %arg5[%c4_51] : memref<12xf32, #tpu.memory_space<smem>>
    %189 = vector.broadcast %188 : f32 to vector<8x896xf32>
    %190 = arith.mulf %187, %189 : vector<8x896xf32>
    %191 = arith.addf %186, %190 : vector<8x896xf32>
    %c894_i32_52 = arith.constant 894 : i32
    %192 = tpu.dynamic_rotate %182 by %c894_i32_52 dim 1 : vector<8x896xf32>, i32 -> vector<8x896xf32>
    %c5_53 = arith.constant 5 : index
    %193 = memref.load %arg5[%c5_53] : memref<12xf32, #tpu.memory_space<smem>>
    %194 = vector.broadcast %193 : f32 to vector<8x896xf32>
    %195 = arith.mulf %192, %194 : vector<8x896xf32>
    %196 = arith.addf %191, %195 : vector<8x896xf32>
    %197 = vector.broadcast %129 : f32 to vector<8x896xf32>
    %198 = arith.mulf %49, %197 : vector<8x896xf32>
    %199 = vector.broadcast %132 : f32 to vector<8x896xf32>
    %200 = arith.addf %198, %199 : vector<8x896xf32>
    %cst_54 = arith.constant 0.000000e+00 : f32
    %201 = vector.broadcast %cst_54 : f32 to vector<8x896xf32>
    %202 = arith.maximumf %200, %201 : vector<8x896xf32>
    %c6_55 = arith.constant 6 : index
    %203 = memref.load %arg5[%c6_55] : memref<12xf32, #tpu.memory_space<smem>>
    %204 = vector.broadcast %203 : f32 to vector<8x896xf32>
    %205 = arith.mulf %202, %204 : vector<8x896xf32>
    %206 = arith.addf %196, %205 : vector<8x896xf32>
    %c895_i32_56 = arith.constant 895 : i32
    %207 = tpu.dynamic_rotate %202 by %c895_i32_56 dim 1 : vector<8x896xf32>, i32 -> vector<8x896xf32>
    %c7_57 = arith.constant 7 : index
    %208 = memref.load %arg5[%c7_57] : memref<12xf32, #tpu.memory_space<smem>>
    %209 = vector.broadcast %208 : f32 to vector<8x896xf32>
    %210 = arith.mulf %207, %209 : vector<8x896xf32>
    %211 = arith.addf %206, %210 : vector<8x896xf32>
    %c894_i32_58 = arith.constant 894 : i32
    %212 = tpu.dynamic_rotate %202 by %c894_i32_58 dim 1 : vector<8x896xf32>, i32 -> vector<8x896xf32>
    %c8_59 = arith.constant 8 : index
    %213 = memref.load %arg5[%c8_59] : memref<12xf32, #tpu.memory_space<smem>>
    %214 = vector.broadcast %213 : f32 to vector<8x896xf32>
    %215 = arith.mulf %212, %214 : vector<8x896xf32>
    %216 = arith.addf %211, %215 : vector<8x896xf32>
    %217 = vector.broadcast %152 : f32 to vector<8x896xf32>
    %218 = arith.mulf %63, %217 : vector<8x896xf32>
    %219 = vector.broadcast %155 : f32 to vector<8x896xf32>
    %220 = arith.addf %218, %219 : vector<8x896xf32>
    %cst_60 = arith.constant 0.000000e+00 : f32
    %221 = vector.broadcast %cst_60 : f32 to vector<8x896xf32>
    %222 = arith.maximumf %220, %221 : vector<8x896xf32>
    %c9_61 = arith.constant 9 : index
    %223 = memref.load %arg5[%c9_61] : memref<12xf32, #tpu.memory_space<smem>>
    %224 = vector.broadcast %223 : f32 to vector<8x896xf32>
    %225 = arith.mulf %222, %224 : vector<8x896xf32>
    %226 = arith.addf %216, %225 : vector<8x896xf32>
    %c895_i32_62 = arith.constant 895 : i32
    %227 = tpu.dynamic_rotate %222 by %c895_i32_62 dim 1 : vector<8x896xf32>, i32 -> vector<8x896xf32>
    %c10_63 = arith.constant 10 : index
    %228 = memref.load %arg5[%c10_63] : memref<12xf32, #tpu.memory_space<smem>>
    %229 = vector.broadcast %228 : f32 to vector<8x896xf32>
    %230 = arith.mulf %227, %229 : vector<8x896xf32>
    %231 = arith.addf %226, %230 : vector<8x896xf32>
    %c894_i32_64 = arith.constant 894 : i32
    %232 = tpu.dynamic_rotate %222 by %c894_i32_64 dim 1 : vector<8x896xf32>, i32 -> vector<8x896xf32>
    %c11_65 = arith.constant 11 : index
    %233 = memref.load %arg5[%c11_65] : memref<12xf32, #tpu.memory_space<smem>>
    %234 = vector.broadcast %233 : f32 to vector<8x896xf32>
    %235 = arith.mulf %232, %234 : vector<8x896xf32>
    %236 = arith.addf %231, %235 : vector<8x896xf32>
    %c0_66 = arith.constant 0 : index
    %237 = memref.load %arg6[%c0_66] : memref<1xf32, #tpu.memory_space<smem>>
    %238 = vector.broadcast %237 : f32 to vector<8x896xf32>
    %239 = arith.addf %236, %238 : vector<8x896xf32>
    %cst_67 = arith.constant 0.000000e+00 : f32
    %240 = vector.broadcast %cst_67 : f32 to vector<8x896xf32>
    %241 = arith.select %4, %239, %240 : vector<8x896xi1>, vector<8x896xf32>
    %242 = vector.shape_cast %241 : vector<8x896xf32> to vector<1x8x896xf32>
    %cst_68 = arith.constant dense<0.000000e+00> : vector<1xf32>
    %243 = vector.multi_reduction <add>, %242, %cst_68 [1, 2] : vector<1x8x896xf32> to vector<1xf32>
    %244 = vector.shape_cast %243 : vector<1xf32> to vector<1x1x1xf32>
    %245 = vector.extract %244[0, 0, 0] : f32 from vector<1x1x1xf32>
    %cst_69 = arith.constant 1.57035174E-4 : f32
    %246 = arith.mulf %245, %cst_69 : f32
    %247 = arith.mulf %241, %241 : vector<8x896xf32>
    %248 = vector.shape_cast %247 : vector<8x896xf32> to vector<1x8x896xf32>
    %cst_70 = arith.constant dense<0.000000e+00> : vector<1xf32>
    %249 = vector.multi_reduction <add>, %248, %cst_70 [1, 2] : vector<1x8x896xf32> to vector<1xf32>
    %250 = vector.shape_cast %249 : vector<1xf32> to vector<1x1x1xf32>
    %251 = vector.extract %250[0, 0, 0] : f32 from vector<1x1x1xf32>
    %cst_71 = arith.constant 1.57035174E-4 : f32
    %252 = arith.mulf %251, %cst_71 : f32
    %253 = arith.mulf %246, %246 : f32
    %254 = arith.subf %252, %253 : f32
    %cst_72 = arith.constant 0.000000e+00 : f32
    %255 = arith.maximumf %254, %cst_72 : f32
    %cst_73 = arith.constant 9.99999974E-6 : f32
    %256 = arith.addf %255, %cst_73 : f32
    %257 = math.rsqrt %256 : f32
    %c0_74 = arith.constant 0 : index
    %258 = memref.load %arg7[%c0_74] : memref<1xf32, #tpu.memory_space<smem>>
    %259 = arith.mulf %257, %258 : f32
    %c0_75 = arith.constant 0 : index
    %260 = memref.load %arg8[%c0_75] : memref<1xf32, #tpu.memory_space<smem>>
    %261 = arith.mulf %246, %259 : f32
    %262 = arith.subf %260, %261 : f32
    %263 = vector.broadcast %259 : f32 to vector<8x896xf32>
    %264 = arith.mulf %241, %263 : vector<8x896xf32>
    %265 = vector.broadcast %262 : f32 to vector<8x896xf32>
    %266 = arith.addf %264, %265 : vector<8x896xf32>
    %cst_76 = arith.constant 0.000000e+00 : f32
    %267 = vector.broadcast %cst_76 : f32 to vector<8x896xf32>
    %268 = arith.maximumf %266, %267 : vector<8x896xf32>
    %c895_i32_77 = arith.constant 895 : i32
    %269 = tpu.dynamic_rotate %268 by %c895_i32_77 dim 1 : vector<8x896xf32>, i32 -> vector<8x896xf32>
    %270 = arith.maximumf %268, %269 : vector<8x896xf32>
    tpu.wait_dma2 semaphore(%arg21 : memref<!tpu.dma_semaphore, #tpu.memory_space<semaphore_mem>>) src(%arg9 : memref<896x199xf32, #tpu.memory_space<any>>) dst(%arg20 : memref<896x199xf32, #tpu.memory_space<vmem>>)
    %c0_78 = arith.constant 0 : index
    %c0_79 = arith.constant 0 : index
    %271 = vector.load %arg20[%c0_78, %c0_79] : memref<896x199xf32, #tpu.memory_space<vmem>>, vector<896x199xf32>
    %cst_80 = arith.constant dense<0.000000e+00> : vector<8x199xf32>
    %272 = tpu.matmul %270, %271, %cst_80 {dimension_numbers = #tpu.dot_dimension_numbers<[1], [0], [0], [1], [0, 0, 1, 1], [], []>} : vector<8x896xf32>, vector<896x199xf32>, vector<8x199xf32> -> vector<8x199xf32>
    %c0_81 = arith.constant 0 : index
    %c0_82 = arith.constant 0 : index
    %273 = vector.load %arg10[%c0_81, %c0_82] : memref<1x199xf32, #tpu.memory_space<vmem>>, vector<1x199xf32>
    %274 = vector.broadcast %273 : vector<1x199xf32> to vector<8x199xf32>
    %275 = arith.addf %272, %274 : vector<8x199xf32>
    %cst_83 = arith.constant dense<0.000000e+00> : vector<199xf32>
    %276 = vector.multi_reduction <add>, %275, %cst_83 [0] : vector<8x199xf32> to vector<199xf32>
    %277 = vector.shape_cast %276 : vector<199xf32> to vector<1x199xf32>
    %cst_84 = arith.constant 1.250000e-01 : f32
    %278 = vector.broadcast %cst_84 : f32 to vector<1x199xf32>
    %279 = arith.mulf %277, %278 : vector<1x199xf32>
    %280 = arith.mulf %275, %275 : vector<8x199xf32>
    %cst_85 = arith.constant dense<0.000000e+00> : vector<199xf32>
    %281 = vector.multi_reduction <add>, %280, %cst_85 [0] : vector<8x199xf32> to vector<199xf32>
    %282 = vector.shape_cast %281 : vector<199xf32> to vector<1x199xf32>
    %cst_86 = arith.constant 1.250000e-01 : f32
    %283 = vector.broadcast %cst_86 : f32 to vector<1x199xf32>
    %284 = arith.mulf %282, %283 : vector<1x199xf32>
    %285 = arith.mulf %279, %279 : vector<1x199xf32>
    %286 = arith.subf %284, %285 : vector<1x199xf32>
    %cst_87 = arith.constant 0.000000e+00 : f32
    %287 = vector.broadcast %cst_87 : f32 to vector<1x199xf32>
    %288 = arith.maximumf %286, %287 : vector<1x199xf32>
    %289 = vector.broadcast %279 : vector<1x199xf32> to vector<8x199xf32>
    %290 = arith.subf %275, %289 : vector<8x199xf32>
    %cst_88 = arith.constant 9.99999974E-6 : f32
    %291 = vector.broadcast %cst_88 : f32 to vector<1x199xf32>
    %292 = arith.addf %288, %291 : vector<1x199xf32>
    %293 = math.rsqrt %292 : vector<1x199xf32>
    %294 = vector.broadcast %293 : vector<1x199xf32> to vector<8x199xf32>
    %295 = arith.mulf %290, %294 : vector<8x199xf32>
    %c0_89 = arith.constant 0 : index
    %c0_90 = arith.constant 0 : index
    %296 = vector.load %arg11[%c0_89, %c0_90] : memref<1x199xf32, #tpu.memory_space<vmem>>, vector<1x199xf32>
    %297 = vector.broadcast %296 : vector<1x199xf32> to vector<8x199xf32>
    %298 = arith.mulf %295, %297 : vector<8x199xf32>
    %c0_91 = arith.constant 0 : index
    %c0_92 = arith.constant 0 : index
    %299 = vector.load %arg12[%c0_91, %c0_92] : memref<1x199xf32, #tpu.memory_space<vmem>>, vector<1x199xf32>
    %300 = vector.broadcast %299 : vector<1x199xf32> to vector<8x199xf32>
    %301 = arith.addf %298, %300 : vector<8x199xf32>
    %cst_93 = arith.constant 0.000000e+00 : f32
    %302 = vector.broadcast %cst_93 : f32 to vector<8x199xf32>
    %303 = arith.cmpf ogt, %301, %302 : vector<8x199xf32>
    %cst_94 = arith.constant 0.00999999977 : f32
    %304 = vector.broadcast %cst_94 : f32 to vector<8x199xf32>
    %305 = arith.mulf %304, %301 : vector<8x199xf32>
    %306 = arith.select %303, %301, %305 : vector<8x199xi1>, vector<8x199xf32>
    %c0_95 = arith.constant 0 : index
    %c0_96 = arith.constant 0 : index
    %307 = vector.load %arg13[%c0_95, %c0_96] : memref<199x25xf32, #tpu.memory_space<vmem>>, vector<199x25xf32>
    %cst_97 = arith.constant dense<0.000000e+00> : vector<8x25xf32>
    %308 = tpu.matmul %306, %307, %cst_97 {dimension_numbers = #tpu.dot_dimension_numbers<[1], [0], [0], [1], [0, 0, 1, 1], [], []>} : vector<8x199xf32>, vector<199x25xf32>, vector<8x25xf32> -> vector<8x25xf32>
    %c0_98 = arith.constant 0 : index
    %c0_99 = arith.constant 0 : index
    %309 = vector.load %arg14[%c0_98, %c0_99] : memref<1x25xf32, #tpu.memory_space<vmem>>, vector<1x25xf32>
    %310 = vector.broadcast %309 : vector<1x25xf32> to vector<8x25xf32>
    %311 = arith.addf %308, %310 : vector<8x25xf32>
    %cst_100 = arith.constant dense<0.000000e+00> : vector<25xf32>
    %312 = vector.multi_reduction <add>, %311, %cst_100 [0] : vector<8x25xf32> to vector<25xf32>
    %313 = vector.shape_cast %312 : vector<25xf32> to vector<1x25xf32>
    %cst_101 = arith.constant 1.250000e-01 : f32
    %314 = vector.broadcast %cst_101 : f32 to vector<1x25xf32>
    %315 = arith.mulf %313, %314 : vector<1x25xf32>
    %316 = arith.mulf %311, %311 : vector<8x25xf32>
    %cst_102 = arith.constant dense<0.000000e+00> : vector<25xf32>
    %317 = vector.multi_reduction <add>, %316, %cst_102 [0] : vector<8x25xf32> to vector<25xf32>
    %318 = vector.shape_cast %317 : vector<25xf32> to vector<1x25xf32>
    %cst_103 = arith.constant 1.250000e-01 : f32
    %319 = vector.broadcast %cst_103 : f32 to vector<1x25xf32>
    %320 = arith.mulf %318, %319 : vector<1x25xf32>
    %321 = arith.mulf %315, %315 : vector<1x25xf32>
    %322 = arith.subf %320, %321 : vector<1x25xf32>
    %cst_104 = arith.constant 0.000000e+00 : f32
    %323 = vector.broadcast %cst_104 : f32 to vector<1x25xf32>
    %324 = arith.maximumf %322, %323 : vector<1x25xf32>
    %325 = vector.broadcast %315 : vector<1x25xf32> to vector<8x25xf32>
    %326 = arith.subf %311, %325 : vector<8x25xf32>
    %cst_105 = arith.constant 9.99999974E-6 : f32
    %327 = vector.broadcast %cst_105 : f32 to vector<1x25xf32>
    %328 = arith.addf %324, %327 : vector<1x25xf32>
    %329 = math.rsqrt %328 : vector<1x25xf32>
    %330 = vector.broadcast %329 : vector<1x25xf32> to vector<8x25xf32>
    %331 = arith.mulf %326, %330 : vector<8x25xf32>
    %c0_106 = arith.constant 0 : index
    %c0_107 = arith.constant 0 : index
    %332 = vector.load %arg15[%c0_106, %c0_107] : memref<1x25xf32, #tpu.memory_space<vmem>>, vector<1x25xf32>
    %333 = vector.broadcast %332 : vector<1x25xf32> to vector<8x25xf32>
    %334 = arith.mulf %331, %333 : vector<8x25xf32>
    %c0_108 = arith.constant 0 : index
    %c0_109 = arith.constant 0 : index
    %335 = vector.load %arg16[%c0_108, %c0_109] : memref<1x25xf32, #tpu.memory_space<vmem>>, vector<1x25xf32>
    %336 = vector.broadcast %335 : vector<1x25xf32> to vector<8x25xf32>
    %337 = arith.addf %334, %336 : vector<8x25xf32>
    %cst_110 = arith.constant 0.000000e+00 : f32
    %338 = vector.broadcast %cst_110 : f32 to vector<8x25xf32>
    %339 = arith.cmpf ogt, %337, %338 : vector<8x25xf32>
    %cst_111 = arith.constant 0.00999999977 : f32
    %340 = vector.broadcast %cst_111 : f32 to vector<8x25xf32>
    %341 = arith.mulf %340, %337 : vector<8x25xf32>
    %342 = arith.select %339, %337, %341 : vector<8x25xi1>, vector<8x25xf32>
    %c0_112 = arith.constant 0 : index
    %c0_113 = arith.constant 0 : index
    %343 = vector.load %arg17[%c0_112, %c0_113] : memref<25x5xf32, #tpu.memory_space<vmem>>, vector<25x5xf32>
    %cst_114 = arith.constant dense<0.000000e+00> : vector<8x5xf32>
    %344 = tpu.matmul %342, %343, %cst_114 {dimension_numbers = #tpu.dot_dimension_numbers<[1], [0], [0], [1], [0, 0, 1, 1], [], []>} : vector<8x25xf32>, vector<25x5xf32>, vector<8x5xf32> -> vector<8x5xf32>
    %c0_115 = arith.constant 0 : index
    %c0_116 = arith.constant 0 : index
    %345 = vector.load %arg18[%c0_115, %c0_116] : memref<1x5xf32, #tpu.memory_space<vmem>>, vector<1x5xf32>
    %346 = vector.broadcast %345 : vector<1x5xf32> to vector<8x5xf32>
    %347 = arith.addf %344, %346 : vector<8x5xf32>
    %c0_117 = arith.constant 0 : index
    %c0_118 = arith.constant 0 : index
    %348 = vector.load %arg19[%c0_117, %c0_118] : memref<8x5xf32, #tpu.memory_space<vmem>>, vector<8x5xf32>
    tpu.vector_store %arg19[%c0_117, %c0_118], %347 {strides = array<i32>} : memref<8x5xf32, #tpu.memory_space<vmem>>, vector<8x5xf32>,
    return
  }
}

</mosaic_0001>

<llo_original>
// kernel: mycnn_forward.1
$region0: #{mycnn_forward.1}
  #allocation0 [shape = 'u32[]', space=smem, size = 0x4, offset = 0x4, fixed_abs, tag = 'smem constant byte address 0x4 - core index']
  #allocation1 [shape = 'u32[72,128]{1,0:T(1,128)}', space=vmem, size = 0x9000, scoped, tag = 'internal scratch']
  #allocation2 [shape = 'f32[896,199]{1,0:T(8,128)}', space=vmem, size = 0xe0000, scoped, tag = 'scratch operand']
  #allocation3 [shape = 's32[1]{0}', space=sflag, size = 0x4, scoped, tag = 'scratch operand']
  #allocation4 [shape = 'f32[1]{0:T(128)S(6)}', space=smem, size = 0x200, scoped, tag = 'scoped memory for mycnn_forward.1']
  #allocation5 [shape = 'f32[1]{0:T(128)S(6)}', space=smem, size = 0x200, scoped, tag = 'scoped memory for mycnn_forward.1']
  #allocation6 [shape = 'f32[1]{0:T(128)S(6)}', space=smem, size = 0x200, scoped, tag = 'scoped memory for mycnn_forward.1']
  #allocation17 [shape = 's32[]', space=sflag, size = 0x4, offset = 0, fixed_abs, tag = 'sflag constant byte address 0x0 - dummy sync flag']
  %s0 = inlined_call_operand.vmem [shape: f32[8,896], index: 0, kind: input, shape index: {}]
  %s1 = inlined_call_operand.vmem [shape: f32[12], index: 1, kind: input, shape index: {}]
  %s2 = inlined_call_operand.vmem [shape: f32[4], index: 2, kind: input, shape index: {}]
  %s3 = inlined_call_operand.vmem [shape: f32[4], index: 3, kind: input, shape index: {}]
  %s4 = inlined_call_operand.vmem [shape: f32[4], index: 4, kind: input, shape index: {}]
  %s5 = inlined_call_operand.vmem [shape: f32[12], index: 5, kind: input, shape index: {}]
  %s6 = inlined_call_operand.<no memory space> [shape: f32[1], index: 6, kind: input, shape index: {}]
  %s7 = inlined_call_operand.<no memory space> [shape: f32[1], index: 7, kind: input, shape index: {}]
  %s8 = inlined_call_operand.<no memory space> [shape: f32[1], index: 8, kind: input, shape index: {}]
  %s9 = inlined_call_operand.vmem [shape: f32[896,199], index: 9, kind: input, shape index: {}]
  %s10 = inlined_call_operand.vmem [shape: f32[1,199], index: 10, kind: input, shape index: {}]
  %s11 = inlined_call_operand.vmem [shape: f32[1,199], index: 11, kind: input, shape index: {}]
  %s12 = inlined_call_operand.vmem [shape: f32[1,199], index: 12, kind: input, shape index: {}]
  %s13 = inlined_call_operand.vmem [shape: f32[199,25], index: 13, kind: input, shape index: {}]
  %s14 = inlined_call_operand.vmem [shape: f32[1,25], index: 14, kind: input, shape index: {}]
  %s15 = inlined_call_operand.vmem [shape: f32[1,25], index: 15, kind: input, shape index: {}]
  %s16 = inlined_call_operand.vmem [shape: f32[1,25], index: 16, kind: input, shape index: {}]
  %s17 = inlined_call_operand.vmem [shape: f32[25,5], index: 17, kind: input, shape index: {}]
  %s18 = inlined_call_operand.vmem [shape: f32[1,5], index: 18, kind: input, shape index: {}]
  %s19 = inlined_call_operand.hbm [shape: f32[8,5], index: 19, kind: output, shape index: {}]
  %s20 = sld [smem:[#allocation0]]
  $region121: #{mycnn_forward.1} parent=0
    _
  %s22 = ssub.s32 1, %s20
  %s23 = scalar_select 0, %s22, %s20
  %24 = sst [smem:[#allocation4]] %s6
  %25 = sst [smem:[#allocation5]] %s7
  %26 = sst [smem:[#allocation6]] %s8
  $region1: #{mycnn_forward.1} parent=0
    #allocation7 [shape = 'u8[512]{0}', space=smem, size = 0x200, scoped, tag = 'input window, operand 1, single buffered']
    #allocation8 [shape = 's32[1]{0}', space=sflag, size = 0x4, scoped, tag = 'scoped memory for mycnn_forward.1']
    #allocation9 [shape = 's32[1]{0}', space=sflag, size = 0x4, scoped, tag = 'scoped memory for mycnn_forward.1']
    #allocation10 [shape = 'u8[512]{0}', space=smem, size = 0x200, scoped, tag = 'input window, operand 2, single buffered']
    #allocation11 [shape = 's32[1]{0}', space=sflag, size = 0x4, scoped, tag = 'scoped memory for mycnn_forward.1']
    #allocation12 [shape = 'u8[512]{0}', space=smem, size = 0x200, scoped, tag = 'input window, operand 3, single buffered']
    #allocation13 [shape = 'u8[512]{0}', space=smem, size = 0x200, scoped, tag = 'input window, operand 4, single buffered']
    #allocation14 [shape = 's32[1]{0}', space=sflag, size = 0x4, scoped, tag = 'scoped memory for mycnn_forward.1']
    #allocation15 [shape = 'u8[512]{0}', space=smem, size = 0x200, scoped, tag = 'input window, operand 5, single buffered']
    #allocation16 [shape = 'u8[4096]{0}', space=vmem, size = 0x1000, scoped, tag = 'output window, operand 0, single buffered']
    %27 = vsyncpa [#allocation9], 0
    %28 = vsyncpa [#allocation11], 0
    %29 = vsyncpa [#allocation14], 0
    %30 = vsyncpa [#allocation8], 0
    // Predicated region
    $region2: #{mycnn_forward.1} parent=1 // pred_check
      _
    $region3: #{mycnn_forward.1} parent=1 // pred_check_branch
      %32 = sbr.rel (0) target = $region5
    $region4: #{mycnn_forward.1} parent=1 // pred_region
      _
    $region5: #{mycnn_forward.1} parent=1 // pred_fallthru
      _
    // Predicated region
    $region6: #{mycnn_forward.1} parent=1 // pred_check
      _
    $region7: #{mycnn_forward.1} parent=1 // pred_check_branch
      %34 = sbr.rel (0) target = $region9
    $region8: #{mycnn_forward.1} parent=1 // pred_region
      %36 = vsyncadd [#allocation9], 0
      %s38 = sshll.u32 %s1, 4
      %s39 = int_to_ptr.vmem [resolvable:$true] %s38
      %41 = dma.vmem_to_smem %s39, 16, [#allocation7], [#allocation9]
    $region9: #{mycnn_forward.1} parent=1 // pred_fallthru
      _
    // Predicated region
    $region10: #{mycnn_forward.1} parent=1 // pred_check
      _
    $region11: #{mycnn_forward.1} parent=1 // pred_check_branch
      %43 = sbr.rel (0) target = $region13
    $region12: #{mycnn_forward.1} parent=1 // pred_region
      %45 = vsyncadd [#allocation11], 0
      %s47 = sshll.u32 %s2, 4
      %s48 = int_to_ptr.vmem [resolvable:$true] %s47
      %50 = dma.vmem_to_smem %s48, 16, [#allocation10], [#allocation11]
    $region13: #{mycnn_forward.1} parent=1 // pred_fallthru
      _
    // Predicated region
    $region14: #{mycnn_forward.1} parent=1 // pred_check
      _
    $region15: #{mycnn_forward.1} parent=1 // pred_check_branch
      %52 = sbr.rel (0) target = $region17
    $region16: #{mycnn_forward.1} parent=1 // pred_region
      %54 = vsyncadd [#allocation11], 0
      %s56 = sshll.u32 %s3, 4
      %s57 = int_to_ptr.vmem [resolvable:$true] %s56
      %59 = dma.vmem_to_smem %s57, 16, [#allocation12], [#allocation11]
    $region17: #{mycnn_forward.1} parent=1 // pred_fallthru
      _
    // Predicated region
    $region18: #{mycnn_forward.1} parent=1 // pred_check
      _
    $region19: #{mycnn_forward.1} parent=1 // pred_check_branch
      %61 = sbr.rel (0) target = $region21
    $region20: #{mycnn_forward.1} parent=1 // pred_region
      %63 = vsyncadd [#allocation14], 0
      %s65 = sshll.u32 %s4, 4
      %s66 = int_to_ptr.vmem [resolvable:$true] %s65
      %68 = dma.vmem_to_smem %s66, 16, [#allocation13], [#allocation14]
    $region21: #{mycnn_forward.1} parent=1 // pred_fallthru
      _
    // Predicated region
    $region22: #{mycnn_forward.1} parent=1 // pred_check
      _
    $region23: #{mycnn_forward.1} parent=1 // pred_check_branch
      %70 = sbr.rel (0) target = $region25
    $region24: #{mycnn_forward.1} parent=1 // pred_region
      %72 = vsyncadd [#allocation14], 0
      %s74 = sshll.u32 %s5, 4
      %s75 = int_to_ptr.vmem [resolvable:$true] %s74
      %77 = dma.vmem_to_smem %s75, 16, [#allocation15], [#allocation14]
    $region25: #{mycnn_forward.1} parent=1 // pred_fallthru
      _
    // Predicated region
    $region26: #{mycnn_forward.1} parent=1 // pred_check
      _
    $region27: #{mycnn_forward.1} parent=1 // pred_check_branch
      %79 = sbr.rel (0) target = $region29
    $region28: #{mycnn_forward.1} parent=1 // pred_region
      _
    $region29: #{mycnn_forward.1} parent=1 // pred_fallthru
      _
    // Predicated region
    $region30: #{mycnn_forward.1} parent=1 // pred_check
      _
    $region31: #{mycnn_forward.1} parent=1 // pred_check_branch
      %81 = sbr.rel (0) target = $region33
    $region32: #{mycnn_forward.1} parent=1 // pred_region
      _
    $region33: #{mycnn_forward.1} parent=1 // pred_fallthru
      _
    // Predicated region
    $region34: #{mycnn_forward.1} parent=1 // pred_check
      _
    $region35: #{mycnn_forward.1} parent=1 // pred_check_branch
      %83 = sbr.rel (0) target = $region37
    $region36: #{mycnn_forward.1} parent=1 // pred_region
      _
    $region37: #{mycnn_forward.1} parent=1 // pred_fallthru
      _
    // Predicated region
    $region38: #{mycnn_forward.1} parent=1 // pred_check
      _
    $region39: #{mycnn_forward.1} parent=1 // pred_check_branch
      %85 = sbr.rel (0) target = $region41
    $region40: #{mycnn_forward.1} parent=1 // pred_region
      _
    $region41: #{mycnn_forward.1} parent=1 // pred_fallthru
      _
    // Predicated region
    $region42: #{mycnn_forward.1} parent=1 // pred_check
      _
    $region43: #{mycnn_forward.1} parent=1 // pred_check_branch
      %87 = sbr.rel (0) target = $region45
    $region44: #{mycnn_forward.1} parent=1 // pred_region
      _
    $region45: #{mycnn_forward.1} parent=1 // pred_fallthru
      _
    // Predicated region
    $region46: #{mycnn_forward.1} parent=1 // pred_check
      _
    $region47: #{mycnn_forward.1} parent=1 // pred_check_branch
      %89 = sbr.rel (0) target = $region49
    $region48: #{mycnn_forward.1} parent=1 // pred_region
      _
    $region49: #{mycnn_forward.1} parent=1 // pred_fallthru
      _
    // Predicated region
    $region50: #{mycnn_forward.1} parent=1 // pred_check
      _
    $region51: #{mycnn_forward.1} parent=1 // pred_check_branch
      %91 = sbr.rel (0) target = $region53
    $region52: #{mycnn_forward.1} parent=1 // pred_region
      _
    $region53: #{mycnn_forward.1} parent=1 // pred_fallthru
      _
    // Predicated region
    $region54: #{mycnn_forward.1} parent=1 // pred_check
      _
    $region55: #{mycnn_forward.1} parent=1 // pred_check_branch
      %93 = sbr.rel (0) target = $region57
    $region56: #{mycnn_forward.1} parent=1 // pred_region
      _
    $region57: #{mycnn_forward.1} parent=1 // pred_fallthru
      _
    // Predicated region
    $region58: #{mycnn_forward.1} parent=1 // pred_check
      _
    $region59: #{mycnn_forward.1} parent=1 // pred_check_branch
      %95 = sbr.rel (0) target = $region61
    $region60: #{mycnn_forward.1} parent=1 // pred_region
      _
    $region61: #{mycnn_forward.1} parent=1 // pred_fallthru
      _
    // Predicated region
    $region62: #{mycnn_forward.1} parent=1 // pred_check
      _
    $region63: #{mycnn_forward.1} parent=1 // pred_check_branch
      %97 = sbr.rel (0) target = $region65
    $region64: #{mycnn_forward.1} parent=1 // pred_region
      _
    $region65: #{mycnn_forward.1} parent=1 // pred_fallthru
      _
    // Predicated region
    $region66: #{mycnn_forward.1} parent=1 // pred_check
      _
    $region67: #{mycnn_forward.1} parent=1 // pred_check_branch
      %99 = sbr.rel (0) target = $region69
    $region68: #{mycnn_forward.1} parent=1 // pred_region
      _
    $region69: #{mycnn_forward.1} parent=1 // pred_fallthru
      _
    // Predicated region
    $region70: #{mycnn_forward.1} parent=1 // pred_check
      _
    $region71: #{mycnn_forward.1} parent=1 // pred_check_branch
      %101 = sbr.rel (0) target = $region73
    $region72: #{mycnn_forward.1} parent=1 // pred_region
      _
    $region73: #{mycnn_forward.1} parent=1 // pred_fallthru
      _
    // Predicated region
    $region74: #{mycnn_forward.1} parent=1 // pred_check
      _
    $region75: #{mycnn_forward.1} parent=1 // pred_check_branch
      %103 = sbr.rel (0) target = $region77
    $region76: #{mycnn_forward.1} parent=1 // pred_region
      %105 = dma.done [#allocation9], 16
    $region77: #{mycnn_forward.1} parent=1 // pred_fallthru
      _
    // Predicated region
    $region78: #{mycnn_forward.1} parent=1 // pred_check
      _
    $region79: #{mycnn_forward.1} parent=1 // pred_check_branch
      %107 = sbr.rel (0) target = $region81
    $region80: #{mycnn_forward.1} parent=1 // pred_region
      %109 = dma.done [#allocation11], 16
    $region81: #{mycnn_forward.1} parent=1 // pred_fallthru
      _
    // Predicated region
    $region82: #{mycnn_forward.1} parent=1 // pred_check
      _
    $region83: #{mycnn_forward.1} parent=1 // pred_check_branch
      %111 = sbr.rel (0) target = $region85
    $region84: #{mycnn_forward.1} parent=1 // pred_region
      %113 = dma.done [#allocation11], 16
    $region85: #{mycnn_forward.1} parent=1 // pred_fallthru
      _
    // Predicated region
    $region86: #{mycnn_forward.1} parent=1 // pred_check
      _
    $region87: #{mycnn_forward.1} parent=1 // pred_check_branch
      %115 = sbr.rel (0) target = $region89
    $region88: #{mycnn_forward.1} parent=1 // pred_region
      %117 = dma.done [#allocation14], 16
    $region89: #{mycnn_forward.1} parent=1 // pred_fallthru
      _
    // Predicated region
    $region90: #{mycnn_forward.1} parent=1 // pred_check
      _
    $region91: #{mycnn_forward.1} parent=1 // pred_check_branch
      %119 = sbr.rel (0) target = $region93
    $region92: #{mycnn_forward.1} parent=1 // pred_region
      %121 = dma.done [#allocation14], 16
    $region93: #{mycnn_forward.1} parent=1 // pred_fallthru
      _
    %122 = sfence
    // Predicated region
    $region94: #{mycnn_forward.1} parent=1 // pred_check
      _
    $region95: #{mycnn_forward.1} parent=1 // pred_check_branch
      %124 = sbr.rel (0) target = $region97
    $region96: #{mycnn_forward.1} parent=1 // pred_region
      loop: start=0, step=1, limit=1
      $region98: #{mycnn_forward.1} parent=96 // loop_pre_header
        _
      $region99: #{mycnn_forward.1} parent=96 // loop_header
        %s126 = sphi 0, %s130
        %p127 = scmp.ge.s32.totalorder %s126, 1
        %s131 = sphi %s9, %s9
        %s132 = sphi [#allocation2], [#allocation2]
      $region100: #{mycnn_forward.1} parent=96 // loop_header_branch
        %129 = sbr.rel (%p127) target = $region104
      $region101: #{mycnn_forward.1} parent=96 // loop_body
        %v133 = vld [vmem:[%s131] sm:$0xff]
        %134 = vst [vmem:[%s132] sm:$0xff] %v133
        %v135 = vld [vmem:[%s131 + $0x8] sm:$0xff]
        %136 = vst [vmem:[%s132 + $0x8] sm:$0xff] %v135
        %v137 = vld [vmem:[%s131 + $0x10] sm:$0xff]
        %138 = vst [vmem:[%s132 + $0x10] sm:$0xff] %v137
        %v139 = vld [vmem:[%s131 + $0x18] sm:$0xff]
        %140 = vst [vmem:[%s132 + $0x18] sm:$0xff] %v139
        %v141 = vld [vmem:[%s131 + $0x20] sm:$0xff]
        %142 = vst [vmem:[%s132 + $0x20] sm:$0xff] %v141
        %v143 = vld [vmem:[%s131 + $0x28] sm:$0xff]
        %144 = vst [vmem:[%s132 + $0x28] sm:$0xff] %v143
        %v145 = vld [vmem:[%s131 + $0x30] sm:$0xff]
        %146 = vst [vmem:[%s132 + $0x30] sm:$0xff] %v145
        %v147 = vld [vmem:[%s131 + $0x38] sm:$0xff]
        %148 = vst [vmem:[%s132 + $0x38] sm:$0xff] %v147
        %v149 = vld [vmem:[%s131 + $0x40] sm:$0xff]
        %150 = vst [vmem:[%s132 + $0x40] sm:$0xff] %v149
        %v151 = vld [vmem:[%s131 + $0x48] sm:$0xff]
        %152 = vst [vmem:[%s132 + $0x48] sm:$0xff] %v151
        %v153 = vld [vmem:[%s131 + $0x50] sm:$0xff]
        %154 = vst [vmem:[%s132 + $0x50] sm:$0xff] %v153
        %v155 = vld [vmem:[%s131 + $0x58] sm:$0xff]
        %156 = vst [vmem:[%s132 + $0x58] sm:$0xff] %v155
        %v157 = vld [vmem:[%s131 + $0x60] sm:$0xff]
        %158 = vst [vmem:[%s132 + $0x60] sm:$0xff] %v157
        %v159 = vld [vmem:[%s131 + $0x68] sm:$0xff]
        %160 = vst [vmem:[%s132 + $0x68] sm:$0xff] %v159
        %v161 = vld [vmem:[%s131 + $0x70] sm:$0xff]
        %162 = vst [vmem:[%s132 + $0x70] sm:$0xff] %v161
        %v163 = vld [vmem:[%s131 + $0x78] sm:$0xff]
        %164 = vst [vmem:[%s132 + $0x78] sm:$0xff] %v163
        %v165 = vld [vmem:[%s131 + $0x80] sm:$0xff]
        %166 = vst [vmem:[%s132 + $0x80] sm:$0xff] %v165
        %v167 = vld [vmem:[%s131 + $0x88] sm:$0xff]
        %168 = vst [vmem:[%s132 + $0x88] sm:$0xff] %v167
        %v169 = vld [vmem:[%s131 + $0x90] sm:$0xff]
        %170 = vst [vmem:[%s132 + $0x90] sm:$0xff] %v169
        %v171 = vld [vmem:[%s131 + $0x98] sm:$0xff]
        %172 = vst [vmem:[%s132 + $0x98] sm:$0xff] %v171
        %v173 = vld [vmem:[%s131 + $0xa0] sm:$0xff]
        %174 = vst [vmem:[%s132 + $0xa0] sm:$0xff] %v173
        %v175 = vld [vmem:[%s131 + $0xa8] sm:$0xff]
        %176 = vst [vmem:[%s132 + $0xa8] sm:$0xff] %v175
        %v177 = vld [vmem:[%s131 + $0xb0] sm:$0xff]
        %178 = vst [vmem:[%s132 + $0xb0] sm:$0xff] %v177
        %v179 = vld [vmem:[%s131 + $0xb8] sm:$0xff]
        %180 = vst [vmem:[%s132 + $0xb8] sm:$0xff] %v179
        %v181 = vld [vmem:[%s131 + $0xc0] sm:$0xff]
        %182 = vst [vmem:[%s132 + $0xc0] sm:$0xff] %v181
        %v183 = vld [vmem:[%s131 + $0xc8] sm:$0xff]
        %184 = vst [vmem:[%s132 + $0xc8] sm:$0xff] %v183
        %v185 = vld [vmem:[%s131 + $0xd0] sm:$0xff]
        %186 = vst [vmem:[%s132 + $0xd0] sm:$0xff] %v185
        %v187 = vld [vmem:[%s131 + $0xd8] sm:$0xff]
        %188 = vst [vmem:[%s132 + $0xd8] sm:$0xff] %v187
        %v189 = vld [vmem:[%s131 + $0xe0] sm:$0xff]
        %190 = vst [vmem:[%s132 + $0xe0] sm:$0xff] %v189
        %v191 = vld [vmem:[%s131 + $0xe8] sm:$0xff]
        %192 = vst [vmem:[%s132 + $0xe8] sm:$0xff] %v191
        %v193 = vld [vmem:[%s131 + $0xf0] sm:$0xff]
        %194 = vst [vmem:[%s132 + $0xf0] sm:$0xff] %v193
        %v195 = vld [vmem:[%s131 + $0xf8] sm:$0xff]
        %196 = vst [vmem:[%s132 + $0xf8] sm:$0xff] %v195
        %v197 = vld [vmem:[%s131 + $0x100] sm:$0xff]
        %198 = vst [vmem:[%s132 + $0x100] sm:$0xff] %v197
        %v199 = vld [vmem:[%s131 + $0x108] sm:$0xff]
        %200 = vst [vmem:[%s132 + $0x108] sm:$0xff] %v199
        %v201 = vld [vmem:[%s131 + $0x110] sm:$0xff]
        %202 = vst [vmem:[%s132 + $0x110] sm:$0xff] %v201
        %v203 = vld [vmem:[%s131 + $0x118] sm:$0xff]
        %204 = vst [vmem:[%s132 + $0x118] sm:$0xff] %v203
        %v205 = vld [vmem:[%s131 + $0x120] sm:$0xff]
        %206 = vst [vmem:[%s132 + $0x120] sm:$0xff] %v205
        %v207 = vld [vmem:[%s131 + $0x128] sm:$0xff]
        %208 = vst [vmem:[%s132 + $0x128] sm:$0xff] %v207
        %v209 = vld [vmem:[%s131 + $0x130] sm:$0xff]
        %210 = vst [vmem:[%s132 + $0x130] sm:$0xff] %v209
        %v211 = vld [vmem:[%s131 + $0x138] sm:$0xff]
        %212 = vst [vmem:[%s132 + $0x138] sm:$0xff] %v211
        %v213 = vld [vmem:[%s131 + $0x140] sm:$0xff]
        %214 = vst [vmem:[%s132 + $0x140] sm:$0xff] %v213
        %v215 = vld [vmem:[%s131 + $0x148] sm:$0xff]
        %216 = vst [vmem:[%s132 + $0x148] sm:$0xff] %v215
        %v217 = vld [vmem:[%s131 + $0x150] sm:$0xff]
        %218 = vst [vmem:[%s132 + $0x150] sm:$0xff] %v217
        %v219 = vld [vmem:[%s131 + $0x158] sm:$0xff]
        %220 = vst [vmem:[%s132 + $0x158] sm:$0xff] %v219
        %v221 = vld [vmem:[%s131 + $0x160] sm:$0xff]
        %222 = vst [vmem:[%s132 + $0x160] sm:$0xff] %v221
        %v223 = vld [vmem:[%s131 + $0x168] sm:$0xff]
        %224 = vst [vmem:[%s132 + $0x168] sm:$0xff] %v223
        %v225 = vld [vmem:[%s131 + $0x170] sm:$0xff]
        %226 = vst [vmem:[%s132 + $0x170] sm:$0xff] %v225
        %v227 = vld [vmem:[%s131 + $0x178] sm:$0xff]
        %228 = vst [vmem:[%s132 + $0x178] sm:$0xff] %v227
        %v229 = vld [vmem:[%s131 + $0x180] sm:$0xff]
        %230 = vst [vmem:[%s132 + $0x180] sm:$0xff] %v229
        %v231 = vld [vmem:[%s131 + $0x188] sm:$0xff]
        %232 = vst [vmem:[%s132 + $0x188] sm:$0xff] %v231
        %v233 = vld [vmem:[%s131 + $0x190] sm:$0xff]
        %234 = vst [vmem:[%s132 + $0x190] sm:$0xff] %v233
        %v235 = vld [vmem:[%s131 + $0x198] sm:$0xff]
        %236 = vst [vmem:[%s132 + $0x198] sm:$0xff] %v235
        %v237 = vld [vmem:[%s131 + $0x1a0] sm:$0xff]
        %238 = vst [vmem:[%s132 + $0x1a0] sm:$0xff] %v237
        %v239 = vld [vmem:[%s131 + $0x1a8] sm:$0xff]
        %240 = vst [vmem:[%s132 + $0x1a8] sm:$0xff] %v239
        %v241 = vld [vmem:[%s131 + $0x1b0] sm:$0xff]
        %242 = vst [vmem:[%s132 + $0x1b0] sm:$0xff] %v241
        %v243 = vld [vmem:[%s131 + $0x1b8] sm:$0xff]
        %244 = vst [vmem:[%s132 + $0x1b8] sm:$0xff] %v243
        %v245 = vld [vmem:[%s131 + $0x1c0] sm:$0xff]
        %246 = vst [vmem:[%s132 + $0x1c0] sm:$0xff] %v245
        %v247 = vld [vmem:[%s131 + $0x1c8] sm:$0xff]
        %248 = vst [vmem:[%s132 + $0x1c8] sm:$0xff] %v247
        %v249 = vld [vmem:[%s131 + $0x1d0] sm:$0xff]
        %250 = vst [vmem:[%s132 + $0x1d0] sm:$0xff] %v249
        %v251 = vld [vmem:[%s131 + $0x1d8] sm:$0xff]
        %252 = vst [vmem:[%s132 + $0x1d8] sm:$0xff] %v251
        %v253 = vld [vmem:[%s131 + $0x1e0] sm:$0xff]
        %254 = vst [vmem:[%s132 + $0x1e0] sm:$0xff] %v253
        %v255 = vld [vmem:[%s131 + $0x1e8] sm:$0xff]
        %256 = vst [vmem:[%s132 + $0x1e8] sm:$0xff] %v255
        %v257 = vld [vmem:[%s131 + $0x1f0] sm:$0xff]
        %258 = vst [vmem:[%s132 + $0x1f0] sm:$0xff] %v257
        %v259 = vld [vmem:[%s131 + $0x1f8] sm:$0xff]
        %260 = vst [vmem:[%s132 + $0x1f8] sm:$0xff] %v259
        %v261 = vld [vmem:[%s131 + $0x200] sm:$0xff]
        %262 = vst [vmem:[%s132 + $0x200] sm:$0xff] %v261
        %v263 = vld [vmem:[%s131 + $0x208] sm:$0xff]
        %264 = vst [vmem:[%s132 + $0x208] sm:$0xff] %v263
        %v265 = vld [vmem:[%s131 + $0x210] sm:$0xff]
        %266 = vst [vmem:[%s132 + $0x210] sm:$0xff] %v265
        %v267 = vld [vmem:[%s131 + $0x218] sm:$0xff]
        %268 = vst [vmem:[%s132 + $0x218] sm:$0xff] %v267
        %v269 = vld [vmem:[%s131 + $0x220] sm:$0xff]
        %270 = vst [vmem:[%s132 + $0x220] sm:$0xff] %v269
        %v271 = vld [vmem:[%s131 + $0x228] sm:$0xff]
        %272 = vst [vmem:[%s132 + $0x228] sm:$0xff] %v271
        %v273 = vld [vmem:[%s131 + $0x230] sm:$0xff]
        %274 = vst [vmem:[%s132 + $0x230] sm:$0xff] %v273
        %v275 = vld [vmem:[%s131 + $0x238] sm:$0xff]
        %276 = vst [vmem:[%s132 + $0x238] sm:$0xff] %v275
        %v277 = vld [vmem:[%s131 + $0x240] sm:$0xff]
        %278 = vst [vmem:[%s132 + $0x240] sm:$0xff] %v277
        %v279 = vld [vmem:[%s131 + $0x248] sm:$0xff]
        %280 = vst [vmem:[%s132 + $0x248] sm:$0xff] %v279
        %v281 = vld [vmem:[%s131 + $0x250] sm:$0xff]
        %282 = vst [vmem:[%s132 + $0x250] sm:$0xff] %v281
        %v283 = vld [vmem:[%s131 + $0x258] sm:$0xff]
        %284 = vst [vmem:[%s132 + $0x258] sm:$0xff] %v283
        %v285 = vld [vmem:[%s131 + $0x260] sm:$0xff]
        %286 = vst [vmem:[%s132 + $0x260] sm:$0xff] %v285
        %v287 = vld [vmem:[%s131 + $0x268] sm:$0xff]
        %288 = vst [vmem:[%s132 + $0x268] sm:$0xff] %v287
        %v289 = vld [vmem:[%s131 + $0x270] sm:$0xff]
        %290 = vst [vmem:[%s132 + $0x270] sm:$0xff] %v289
        %v291 = vld [vmem:[%s131 + $0x278] sm:$0xff]
        %292 = vst [vmem:[%s132 + $0x278] sm:$0xff] %v291
        %v293 = vld [vmem:[%s131 + $0x280] sm:$0xff]
        %294 = vst [vmem:[%s132 + $0x280] sm:$0xff] %v293
        %v295 = vld [vmem:[%s131 + $0x288] sm:$0xff]
        %296 = vst [vmem:[%s132 + $0x288] sm:$0xff] %v295
        %v297 = vld [vmem:[%s131 + $0x290] sm:$0xff]
        %298 = vst [vmem:[%s132 + $0x290] sm:$0xff] %v297
        %v299 = vld [vmem:[%s131 + $0x298] sm:$0xff]
        %300 = vst [vmem:[%s132 + $0x298] sm:$0xff] %v299
        %v301 = vld [vmem:[%s131 + $0x2a0] sm:$0xff]
        %302 = vst [vmem:[%s132 + $0x2a0] sm:$0xff] %v301
        %v303 = vld [vmem:[%s131 + $0x2a8] sm:$0xff]
        %304 = vst [vmem:[%s132 + $0x2a8] sm:$0xff] %v303
        %v305 = vld [vmem:[%s131 + $0x2b0] sm:$0xff]
        %306 = vst [vmem:[%s132 + $0x2b0] sm:$0xff] %v305
        %v307 = vld [vmem:[%s131 + $0x2b8] sm:$0xff]
        %308 = vst [vmem:[%s132 + $0x2b8] sm:$0xff] %v307
        %v309 = vld [vmem:[%s131 + $0x2c0] sm:$0xff]
        %310 = vst [vmem:[%s132 + $0x2c0] sm:$0xff] %v309
        %v311 = vld [vmem:[%s131 + $0x2c8] sm:$0xff]
        %312 = vst [vmem:[%s132 + $0x2c8] sm:$0xff] %v311
        %v313 = vld [vmem:[%s131 + $0x2d0] sm:$0xff]
        %314 = vst [vmem:[%s132 + $0x2d0] sm:$0xff] %v313
        %v315 = vld [vmem:[%s131 + $0x2d8] sm:$0xff]
        %316 = vst [vmem:[%s132 + $0x2d8] sm:$0xff] %v315
        %v317 = vld [vmem:[%s131 + $0x2e0] sm:$0xff]
        %318 = vst [vmem:[%s132 + $0x2e0] sm:$0xff] %v317
        %v319 = vld [vmem:[%s131 + $0x2e8] sm:$0xff]
        %320 = vst [vmem:[%s132 + $0x2e8] sm:$0xff] %v319
        %v321 = vld [vmem:[%s131 + $0x2f0] sm:$0xff]
        %322 = vst [vmem:[%s132 + $0x2f0] sm:$0xff] %v321
        %v323 = vld [vmem:[%s131 + $0x2f8] sm:$0xff]
        %324 = vst [vmem:[%s132 + $0x2f8] sm:$0xff] %v323
        %v325 = vld [vmem:[%s131 + $0x300] sm:$0xff]
        %326 = vst [vmem:[%s132 + $0x300] sm:$0xff] %v325
        %v327 = vld [vmem:[%s131 + $0x308] sm:$0xff]
        %328 = vst [vmem:[%s132 + $0x308] sm:$0xff] %v327
        %v329 = vld [vmem:[%s131 + $0x310] sm:$0xff]
        %330 = vst [vmem:[%s132 + $0x310] sm:$0xff] %v329
        %v331 = vld [vmem:[%s131 + $0x318] sm:$0xff]
        %332 = vst [vmem:[%s132 + $0x318] sm:$0xff] %v331
        %v333 = vld [vmem:[%s131 + $0x320] sm:$0xff]
        %334 = vst [vmem:[%s132 + $0x320] sm:$0xff] %v333
        %v335 = vld [vmem:[%s131 + $0x328] sm:$0xff]
        %336 = vst [vmem:[%s132 + $0x328] sm:$0xff] %v335
        %v337 = vld [vmem:[%s131 + $0x330] sm:$0xff]
        %338 = vst [vmem:[%s132 + $0x330] sm:$0xff] %v337
        %v339 = vld [vmem:[%s131 + $0x338] sm:$0xff]
        %340 = vst [vmem:[%s132 + $0x338] sm:$0xff] %v339
        %v341 = vld [vmem:[%s131 + $0x340] sm:$0xff]
        %342 = vst [vmem:[%s132 + $0x340] sm:$0xff] %v341
        %v343 = vld [vmem:[%s131 + $0x348] sm:$0xff]
        %344 = vst [vmem:[%s132 + $0x348] sm:$0xff] %v343
        %v345 = vld [vmem:[%s131 + $0x350] sm:$0xff]
        %346 = vst [vmem:[%s132 + $0x350] sm:$0xff] %v345
        %v347 = vld [vmem:[%s131 + $0x358] sm:$0xff]
        %348 = vst [vmem:[%s132 + $0x358] sm:$0xff] %v347
        %v349 = vld [vmem:[%s131 + $0x360] sm:$0xff]
        %350 = vst [vmem:[%s132 + $0x360] sm:$0xff] %v349
        %v351 = vld [vmem:[%s131 + $0x368] sm:$0xff]
        %352 = vst [vmem:[%s132 + $0x368] sm:$0xff] %v351
        %v353 = vld [vmem:[%s131 + $0x370] sm:$0xff]
        %354 = vst [vmem:[%s132 + $0x370] sm:$0xff] %v353
        %v355 = vld [vmem:[%s131 + $0x378] sm:$0xff]
        %356 = vst [vmem:[%s132 + $0x378] sm:$0xff] %v355
        %v357 = vld [vmem:[%s131 + $0x380] sm:$0xff]
        %358 = vst [vmem:[%s132 + $0x380] sm:$0xff] %v357
        %v359 = vld [vmem:[%s131 + $0x388] sm:$0xff]
        %360 = vst [vmem:[%s132 + $0x388] sm:$0xff] %v359
        %v361 = vld [vmem:[%s131 + $0x390] sm:$0xff]
        %362 = vst [vmem:[%s132 + $0x390] sm:$0xff] %v361
        %v363 = vld [vmem:[%s131 + $0x398] sm:$0xff]
        %364 = vst [vmem:[%s132 + $0x398] sm:$0xff] %v363
        %v365 = vld [vmem:[%s131 + $0x3a0] sm:$0xff]
        %366 = vst [vmem:[%s132 + $0x3a0] sm:$0xff] %v365
        %v367 = vld [vmem:[%s131 + $0x3a8] sm:$0xff]
        %368 = vst [vmem:[%s132 + $0x3a8] sm:$0xff] %v367
        %v369 = vld [vmem:[%s131 + $0x3b0] sm:$0xff]
        %370 = vst [vmem:[%s132 + $0x3b0] sm:$0xff] %v369
        %v371 = vld [vmem:[%s131 + $0x3b8] sm:$0xff]
        %372 = vst [vmem:[%s132 + $0x3b8] sm:$0xff] %v371
        %v373 = vld [vmem:[%s131 + $0x3c0] sm:$0xff]
        %374 = vst [vmem:[%s132 + $0x3c0] sm:$0xff] %v373
        %v375 = vld [vmem:[%s131 + $0x3c8] sm:$0xff]
        %376 = vst [vmem:[%s132 + $0x3c8] sm:$0xff] %v375
        %v377 = vld [vmem:[%s131 + $0x3d0] sm:$0xff]
        %378 = vst [vmem:[%s132 + $0x3d0] sm:$0xff] %v377
        %v379 = vld [vmem:[%s131 + $0x3d8] sm:$0xff]
        %380 = vst [vmem:[%s132 + $0x3d8] sm:$0xff] %v379
        %v381 = vld [vmem:[%s131 + $0x3e0] sm:$0xff]
        %382 = vst [vmem:[%s132 + $0x3e0] sm:$0xff] %v381
        %v383 = vld [vmem:[%s131 + $0x3e8] sm:$0xff]
        %384 = vst [vmem:[%s132 + $0x3e8] sm:$0xff] %v383
        %v385 = vld [vmem:[%s131 + $0x3f0] sm:$0xff]
        %386 = vst [vmem:[%s132 + $0x3f0] sm:$0xff] %v385
        %v387 = vld [vmem:[%s131 + $0x3f8] sm:$0xff]
        %388 = vst [vmem:[%s132 + $0x3f8] sm:$0xff] %v387
        %v389 = vld [vmem:[%s131 + $0x400] sm:$0xff]
        %390 = vst [vmem:[%s132 + $0x400] sm:$0xff] %v389
        %v391 = vld [vmem:[%s131 + $0x408] sm:$0xff]
        %392 = vst [vmem:[%s132 + $0x408] sm:$0xff] %v391
        %v393 = vld [vmem:[%s131 + $0x410] sm:$0xff]
        %394 = vst [vmem:[%s132 + $0x410] sm:$0xff] %v393
        %v395 = vld [vmem:[%s131 + $0x418] sm:$0xff]
        %396 = vst [vmem:[%s132 + $0x418] sm:$0xff] %v395
        %v397 = vld [vmem:[%s131 + $0x420] sm:$0xff]
        %398 = vst [vmem:[%s132 + $0x420] sm:$0xff] %v397
        %v399 = vld [vmem:[%s131 + $0x428] sm:$0xff]
        %400 = vst [vmem:[%s132 + $0x428] sm:$0xff] %v399
        %v401 = vld [vmem:[%s131 + $0x430] sm:$0xff]
        %402 = vst [vmem:[%s132 + $0x430] sm:$0xff] %v401
        %v403 = vld [vmem:[%s131 + $0x438] sm:$0xff]
        %404 = vst [vmem:[%s132 + $0x438] sm:$0xff] %v403
        %v405 = vld [vmem:[%s131 + $0x440] sm:$0xff]
        %406 = vst [vmem:[%s132 + $0x440] sm:$0xff] %v405
        %v407 = vld [vmem:[%s131 + $0x448] sm:$0xff]
        %408 = vst [vmem:[%s132 + $0x448] sm:$0xff] %v407
        %v409 = vld [vmem:[%s131 + $0x450] sm:$0xff]
        %410 = vst [vmem:[%s132 + $0x450] sm:$0xff] %v409
        %v411 = vld [vmem:[%s131 + $0x458] sm:$0xff]
        %412 = vst [vmem:[%s132 + $0x458] sm:$0xff] %v411
        %v413 = vld [vmem:[%s131 + $0x460] sm:$0xff]
        %414 = vst [vmem:[%s132 + $0x460] sm:$0xff] %v413
        %v415 = vld [vmem:[%s131 + $0x468] sm:$0xff]
        %416 = vst [vmem:[%s132 + $0x468] sm:$0xff] %v415
        %v417 = vld [vmem:[%s131 + $0x470] sm:$0xff]
        %418 = vst [vmem:[%s132 + $0x470] sm:$0xff] %v417
        %v419 = vld [vmem:[%s131 + $0x478] sm:$0xff]
        %420 = vst [vmem:[%s132 + $0x478] sm:$0xff] %v419
        %v421 = vld [vmem:[%s131 + $0x480] sm:$0xff]
        %422 = vst [vmem:[%s132 + $0x480] sm:$0xff] %v421
        %v423 = vld [vmem:[%s131 + $0x488] sm:$0xff]
        %424 = vst [vmem:[%s132 + $0x488] sm:$0xff] %v423
        %v425 = vld [vmem:[%s131 + $0x490] sm:$0xff]
        %426 = vst [vmem:[%s132 + $0x490] sm:$0xff] %v425
        %v427 = vld [vmem:[%s131 + $0x498] sm:$0xff]
        %428 = vst [vmem:[%s132 + $0x498] sm:$0xff] %v427
        %v429 = vld [vmem:[%s131 + $0x4a0] sm:$0xff]
        %430 = vst [vmem:[%s132 + $0x4a0] sm:$0xff] %v429
        %v431 = vld [vmem:[%s131 + $0x4a8] sm:$0xff]
        %432 = vst [vmem:[%s132 + $0x4a8] sm:$0xff] %v431
        %v433 = vld [vmem:[%s131 + $0x4b0] sm:$0xff]
        %434 = vst [vmem:[%s132 + $0x4b0] sm:$0xff] %v433
        %v435 = vld [vmem:[%s131 + $0x4b8] sm:$0xff]
        %436 = vst [vmem:[%s132 + $0x4b8] sm:$0xff] %v435
        %v437 = vld [vmem:[%s131 + $0x4c0] sm:$0xff]
        %438 = vst [vmem:[%s132 + $0x4c0] sm:$0xff] %v437
        %v439 = vld [vmem:[%s131 + $0x4c8] sm:$0xff]
        %440 = vst [vmem:[%s132 + $0x4c8] sm:$0xff] %v439
        %v441 = vld [vmem:[%s131 + $0x4d0] sm:$0xff]
        %442 = vst [vmem:[%s132 + $0x4d0] sm:$0xff] %v441
        %v443 = vld [vmem:[%s131 + $0x4d8] sm:$0xff]
        %444 = vst [vmem:[%s132 + $0x4d8] sm:$0xff] %v443
        %v445 = vld [vmem:[%s131 + $0x4e0] sm:$0xff]
        %446 = vst [vmem:[%s132 + $0x4e0] sm:$0xff] %v445
        %v447 = vld [vmem:[%s131 + $0x4e8] sm:$0xff]
        %448 = vst [vmem:[%s132 + $0x4e8] sm:$0xff] %v447
        %v449 = vld [vmem:[%s131 + $0x4f0] sm:$0xff]
        %450 = vst [vmem:[%s132 + $0x4f0] sm:$0xff] %v449
        %v451 = vld [vmem:[%s131 + $0x4f8] sm:$0xff]
        %452 = vst [vmem:[%s132 + $0x4f8] sm:$0xff] %v451
        %v453 = vld [vmem:[%s131 + $0x500] sm:$0xff]
        %454 = vst [vmem:[%s132 + $0x500] sm:$0xff] %v453
        %v455 = vld [vmem:[%s131 + $0x508] sm:$0xff]
        %456 = vst [vmem:[%s132 + $0x508] sm:$0xff] %v455
        %v457 = vld [vmem:[%s131 + $0x510] sm:$0xff]
        %458 = vst [vmem:[%s132 + $0x510] sm:$0xff] %v457
        %v459 = vld [vmem:[%s131 + $0x518] sm:$0xff]
        %460 = vst [vmem:[%s132 + $0x518] sm:$0xff] %v459
        %v461 = vld [vmem:[%s131 + $0x520] sm:$0xff]
        %462 = vst [vmem:[%s132 + $0x520] sm:$0xff] %v461
        %v463 = vld [vmem:[%s131 + $0x528] sm:$0xff]
        %464 = vst [vmem:[%s132 + $0x528] sm:$0xff] %v463
        %v465 = vld [vmem:[%s131 + $0x530] sm:$0xff]
        %466 = vst [vmem:[%s132 + $0x530] sm:$0xff] %v465
        %v467 = vld [vmem:[%s131 + $0x538] sm:$0xff]
        %468 = vst [vmem:[%s132 + $0x538] sm:$0xff] %v467
        %v469 = vld [vmem:[%s131 + $0x540] sm:$0xff]
        %470 = vst [vmem:[%s132 + $0x540] sm:$0xff] %v469
        %v471 = vld [vmem:[%s131 + $0x548] sm:$0xff]
        %472 = vst [vmem:[%s132 + $0x548] sm:$0xff] %v471
        %v473 = vld [vmem:[%s131 + $0x550] sm:$0xff]
        %474 = vst [vmem:[%s132 + $0x550] sm:$0xff] %v473
        %v475 = vld [vmem:[%s131 + $0x558] sm:$0xff]
        %476 = vst [vmem:[%s132 + $0x558] sm:$0xff] %v475
        %v477 = vld [vmem:[%s131 + $0x560] sm:$0xff]
        %478 = vst [vmem:[%s132 + $0x560] sm:$0xff] %v477
        %v479 = vld [vmem:[%s131 + $0x568] sm:$0xff]
        %480 = vst [vmem:[%s132 + $0x568] sm:$0xff] %v479
        %v481 = vld [vmem:[%s131 + $0x570] sm:$0xff]
        %482 = vst [vmem:[%s132 + $0x570] sm:$0xff] %v481
        %v483 = vld [vmem:[%s131 + $0x578] sm:$0xff]
        %484 = vst [vmem:[%s132 + $0x578] sm:$0xff] %v483
        %v485 = vld [vmem:[%s131 + $0x580] sm:$0xff]
        %486 = vst [vmem:[%s132 + $0x580] sm:$0xff] %v485
        %v487 = vld [vmem:[%s131 + $0x588] sm:$0xff]
        %488 = vst [vmem:[%s132 + $0x588] sm:$0xff] %v487
        %v489 = vld [vmem:[%s131 + $0x590] sm:$0xff]
        %490 = vst [vmem:[%s132 + $0x590] sm:$0xff] %v489
        %v491 = vld [vmem:[%s131 + $0x598] sm:$0xff]
        %492 = vst [vmem:[%s132 + $0x598] sm:$0xff] %v491
        %v493 = vld [vmem:[%s131 + $0x5a0] sm:$0xff]
        %494 = vst [vmem:[%s132 + $0x5a0] sm:$0xff] %v493
        %v495 = vld [vmem:[%s131 + $0x5a8] sm:$0xff]
        %496 = vst [vmem:[%s132 + $0x5a8] sm:$0xff] %v495
        %v497 = vld [vmem:[%s131 + $0x5b0] sm:$0xff]
        %498 = vst [vmem:[%s132 + $0x5b0] sm:$0xff] %v497
        %v499 = vld [vmem:[%s131 + $0x5b8] sm:$0xff]
        %500 = vst [vmem:[%s132 + $0x5b8] sm:$0xff] %v499
        %v501 = vld [vmem:[%s131 + $0x5c0] sm:$0xff]
        %502 = vst [vmem:[%s132 + $0x5c0] sm:$0xff] %v501
        %v503 = vld [vmem:[%s131 + $0x5c8] sm:$0xff]
        %504 = vst [vmem:[%s132 + $0x5c8] sm:$0xff] %v503
        %v505 = vld [vmem:[%s131 + $0x5d0] sm:$0xff]
        %506 = vst [vmem:[%s132 + $0x5d0] sm:$0xff] %v505
        %v507 = vld [vmem:[%s131 + $0x5d8] sm:$0xff]
        %508 = vst [vmem:[%s132 + $0x5d8] sm:$0xff] %v507
        %v509 = vld [vmem:[%s131 + $0x5e0] sm:$0xff]
        %510 = vst [vmem:[%s132 + $0x5e0] sm:$0xff] %v509
        %v511 = vld [vmem:[%s131 + $0x5e8] sm:$0xff]
        %512 = vst [vmem:[%s132 + $0x5e8] sm:$0xff] %v511
        %v513 = vld [vmem:[%s131 + $0x5f0] sm:$0xff]
        %514 = vst [vmem:[%s132 + $0x5f0] sm:$0xff] %v513
        %v515 = vld [vmem:[%s131 + $0x5f8] sm:$0xff]
        %516 = vst [vmem:[%s132 + $0x5f8] sm:$0xff] %v515
        %v517 = vld [vmem:[%s131 + $0x600] sm:$0xff]
        %518 = vst [vmem:[%s132 + $0x600] sm:$0xff] %v517
        %v519 = vld [vmem:[%s131 + $0x608] sm:$0xff]
        %520 = vst [vmem:[%s132 + $0x608] sm:$0xff] %v519
        %v521 = vld [vmem:[%s131 + $0x610] sm:$0xff]
        %522 = vst [vmem:[%s132 + $0x610] sm:$0xff] %v521
        %v523 = vld [vmem:[%s131 + $0x618] sm:$0xff]
        %524 = vst [vmem:[%s132 + $0x618] sm:$0xff] %v523
        %v525 = vld [vmem:[%s131 + $0x620] sm:$0xff]
        %526 = vst [vmem:[%s132 + $0x620] sm:$0xff] %v525
        %v527 = vld [vmem:[%s131 + $0x628] sm:$0xff]
        %528 = vst [vmem:[%s132 + $0x628] sm:$0xff] %v527
        %v529 = vld [vmem:[%s131 + $0x630] sm:$0xff]
        %530 = vst [vmem:[%s132 + $0x630] sm:$0xff] %v529
        %v531 = vld [vmem:[%s131 + $0x638] sm:$0xff]
        %532 = vst [vmem:[%s132 + $0x638] sm:$0xff] %v531
        %v533 = vld [vmem:[%s131 + $0x640] sm:$0xff]
        %534 = vst [vmem:[%s132 + $0x640] sm:$0xff] %v533
        %v535 = vld [vmem:[%s131 + $0x648] sm:$0xff]
        %536 = vst [vmem:[%s132 + $0x648] sm:$0xff] %v535
        %v537 = vld [vmem:[%s131 + $0x650] sm:$0xff]
        %538 = vst [vmem:[%s132 + $0x650] sm:$0xff] %v537
        %v539 = vld [vmem:[%s131 + $0x658] sm:$0xff]
        %540 = vst [vmem:[%s132 + $0x658] sm:$0xff] %v539
        %v541 = vld [vmem:[%s131 + $0x660] sm:$0xff]
        %542 = vst [vmem:[%s132 + $0x660] sm:$0xff] %v541
        %v543 = vld [vmem:[%s131 + $0x668] sm:$0xff]
        %544 = vst [vmem:[%s132 + $0x668] sm:$0xff] %v543
        %v545 = vld [vmem:[%s131 + $0x670] sm:$0xff]
        %546 = vst [vmem:[%s132 + $0x670] sm:$0xff] %v545
        %v547 = vld [vmem:[%s131 + $0x678] sm:$0xff]
        %548 = vst [vmem:[%s132 + $0x678] sm:$0xff] %v547
        %v549 = vld [vmem:[%s131 + $0x680] sm:$0xff]
        %550 = vst [vmem:[%s132 + $0x680] sm:$0xff] %v549
        %v551 = vld [vmem:[%s131 + $0x688] sm:$0xff]
        %552 = vst [vmem:[%s132 + $0x688] sm:$0xff] %v551
        %v553 = vld [vmem:[%s131 + $0x690] sm:$0xff]
        %554 = vst [vmem:[%s132 + $0x690] sm:$0xff] %v553
        %v555 = vld [vmem:[%s131 + $0x698] sm:$0xff]
        %556 = vst [vmem:[%s132 + $0x698] sm:$0xff] %v555
        %v557 = vld [vmem:[%s131 + $0x6a0] sm:$0xff]
        %558 = vst [vmem:[%s132 + $0x6a0] sm:$0xff] %v557
        %v559 = vld [vmem:[%s131 + $0x6a8] sm:$0xff]
        %560 = vst [vmem:[%s132 + $0x6a8] sm:$0xff] %v559
        %v561 = vld [vmem:[%s131 + $0x6b0] sm:$0xff]
        %562 = vst [vmem:[%s132 + $0x6b0] sm:$0xff] %v561
        %v563 = vld [vmem:[%s131 + $0x6b8] sm:$0xff]
        %564 = vst [vmem:[%s132 + $0x6b8] sm:$0xff] %v563
        %v565 = vld [vmem:[%s131 + $0x6c0] sm:$0xff]
        %566 = vst [vmem:[%s132 + $0x6c0] sm:$0xff] %v565
        %v567 = vld [vmem:[%s131 + $0x6c8] sm:$0xff]
        %568 = vst [vmem:[%s132 + $0x6c8] sm:$0xff] %v567
        %v569 = vld [vmem:[%s131 + $0x6d0] sm:$0xff]
        %570 = vst [vmem:[%s132 + $0x6d0] sm:$0xff] %v569
        %v571 = vld [vmem:[%s131 + $0x6d8] sm:$0xff]
        %572 = vst [vmem:[%s132 + $0x6d8] sm:$0xff] %v571
        %v573 = vld [vmem:[%s131 + $0x6e0] sm:$0xff]
        %574 = vst [vmem:[%s132 + $0x6e0] sm:$0xff] %v573
        %v575 = vld [vmem:[%s131 + $0x6e8] sm:$0xff]
        %576 = vst [vmem:[%s132 + $0x6e8] sm:$0xff] %v575
        %v577 = vld [vmem:[%s131 + $0x6f0] sm:$0xff]
        %578 = vst [vmem:[%s132 + $0x6f0] sm:$0xff] %v577
        %v579 = vld [vmem:[%s131 + $0x6f8] sm:$0xff]
        %580 = vst [vmem:[%s132 + $0x6f8] sm:$0xff] %v579
      $region102: #{mycnn_forward.1} parent=96 // loop_footer
        %s130 = sadd.s32 1, %s126
      $region103: #{mycnn_forward.1} parent=96 // loop_footer_branch
        %125 = sbr.rel target = $region99
      $region104: #{mycnn_forward.1} parent=96 // loop_exit
        _
    $region97: #{mycnn_forward.1} parent=1 // pred_fallthru
      _
    // Predicated region
    $region105: #{mycnn_forward.1} parent=1 // pred_check
      _
    $region106: #{mycnn_forward.1} parent=1 // pred_check_branch
      %582 = sbr.rel target = $region108
    $region107: #{mycnn_forward.1} parent=1 // pred_region
      _
    $region108: #{mycnn_forward.1} parent=1 // pred_fallthru
      _
    // Predicated region
    $region109: #{mycnn_forward.1} parent=1 // pred_check
      _
    $region110: #{mycnn_forward.1} parent=1 // pred_check_branch
      %585 = sbr.rel (0) target = $region112
    $region111: #{mycnn_forward.1} parent=1 // pred_region
      %586 = vsyncadd [#allocation3], 28672
    $region112: #{mycnn_forward.1} parent=1 // pred_fallthru
      _
    %v587 = vlaneseq
    %v588 = vand.u32 %v587, 127
    %v589 = vadd.s32 %v588, 128
    %v590 = vadd.s32 %v588, 256
    %v591 = vadd.s32 %v588, 384
    %v592 = vadd.s32 %v588, 512
    %v593 = vadd.s32 %v588, 640
    %v594 = vadd.s32 %v588, 768
    %vm595 = vcmp.lt.s32.totalorder %v588, 798
    %vm596 = vcmp.lt.s32.totalorder %v589, 798
    %vm597 = vcmp.lt.s32.totalorder %v590, 798
    %vm598 = vcmp.lt.s32.totalorder %v591, 798
    %vm599 = vcmp.lt.s32.totalorder %v592, 798
    %vm600 = vcmp.lt.s32.totalorder %v593, 798
    %vm601 = vcmp.lt.s32.totalorder %v594, 798
    %vm602 = vcmp.lt.s32.totalorder %v588, 796
    %vm603 = vcmp.lt.s32.totalorder %v589, 796
    %vm604 = vcmp.lt.s32.totalorder %v590, 796
    %vm605 = vcmp.lt.s32.totalorder %v591, 796
    %vm606 = vcmp.lt.s32.totalorder %v592, 796
    %vm607 = vcmp.lt.s32.totalorder %v593, 796
    %vm608 = vcmp.lt.s32.totalorder %v594, 796
    %v609 = vld [vmem:[%s0] sm:$0xff]
    %v610 = vld [vmem:[%s0 + $0x8] sm:$0xff]
    %v611 = vld [vmem:[%s0 + $0x10] sm:$0xff]
    %v612 = vld [vmem:[%s0 + $0x18] sm:$0xff]
    %v613 = vld [vmem:[%s0 + $0x20] sm:$0xff]
    %v614 = vld [vmem:[%s0 + $0x28] sm:$0xff]
    %v615 = vld [vmem:[%s0 + $0x30] sm:$0xff]
    %616 = vrot.lane.b32.xlu0 %v609, 127
    %v617 = vpop.permute.xlu0 %616
    %618 = vrot.lane.b32.xlu0 %v610, 127
    %v619 = vpop.permute.xlu0 %618
    %620 = vrot.lane.b32.xlu0 %v611, 127
    %v621 = vpop.permute.xlu0 %620
    %622 = vrot.lane.b32.xlu0 %v612, 127
    %v623 = vpop.permute.xlu0 %622
    %624 = vrot.lane.b32.xlu0 %v613, 127
    %v625 = vpop.permute.xlu0 %624
    %626 = vrot.lane.b32.xlu0 %v614, 127
    %v627 = vpop.permute.xlu0 %626
    %628 = vrot.lane.b32.xlu0 %v615, 127
    %v629 = vpop.permute.xlu0 %628
    %vm630 = vcmp.lt.s32.totalorder %v588, 127
    %v631 = vsel %vm630, %v627, %v629
    %v632 = vsel %vm630, %v625, %v627
    %v633 = vsel %vm630, %v623, %v625
    %v634 = vsel %vm630, %v621, %v623
    %v635 = vsel %vm630, %v619, %v621
    %v636 = vsel %vm630, %v617, %v619
    %v637 = vsel %vm630, %v629, %v617
    %638 = vrot.lane.b32.xlu0 %v609, 126
    %v639 = vpop.permute.xlu0 %638
    %640 = vrot.lane.b32.xlu0 %v610, 126
    %v641 = vpop.permute.xlu0 %640
    %642 = vrot.lane.b32.xlu0 %v611, 126
    %v643 = vpop.permute.xlu0 %642
    %644 = vrot.lane.b32.xlu0 %v612, 126
    %v645 = vpop.permute.xlu0 %644
    %646 = vrot.lane.b32.xlu0 %v613, 126
    %v647 = vpop.permute.xlu0 %646
    %648 = vrot.lane.b32.xlu0 %v614, 126
    %v649 = vpop.permute.xlu0 %648
    %650 = vrot.lane.b32.xlu0 %v615, 126
    %v651 = vpop.permute.xlu0 %650
    %vm652 = vcmp.lt.s32.totalorder %v588, 126
    %v653 = vsel %vm652, %v649, %v651
    %v654 = vsel %vm652, %v647, %v649
    %v655 = vsel %vm652, %v645, %v647
    %v656 = vsel %vm652, %v643, %v645
    %v657 = vsel %vm652, %v641, %v643
    %v658 = vsel %vm652, %v639, %v641
    %v659 = vsel %vm652, %v651, %v639
    %s660 = sld [smem:[#allocation7]]
    %v661 = vstv %s660
    %v662 = vmul.f32 %v609, %v661
    %v663 = vmul.f32 %v610, %v661
    %v664 = vmul.f32 %v611, %v661
    %v665 = vmul.f32 %v612, %v661
    %v666 = vmul.f32 %v613, %v661
    %v667 = vmul.f32 %v614, %v661
    %v668 = vmul.f32 %v615, %v661
    %s669 = sld [smem:[#allocation7 + $0x1]]
    %v670 = vstv %s669
    %v671 = vmul.f32 %v636, %v670
    %v672 = vmul.f32 %v635, %v670
    %v673 = vmul.f32 %v634, %v670
    %v674 = vmul.f32 %v633, %v670
    %v675 = vmul.f32 %v632, %v670
    %v676 = vmul.f32 %v631, %v670
    %v677 = vmul.f32 %v637, %v670
    %v678 = vadd.f32 %v662, %v671
    %v679 = vadd.f32 %v663, %v672
    %v680 = vadd.f32 %v664, %v673
    %v681 = vadd.f32 %v665, %v674
    %v682 = vadd.f32 %v666, %v675
    %v683 = vadd.f32 %v667, %v676
    %v684 = vadd.f32 %v668, %v677
    %s685 = sld [smem:[#allocation7 + $0x2]]
    %v686 = vstv %s685
    %v687 = vmul.f32 %v658, %v686
    %v688 = vmul.f32 %v657, %v686
    %v689 = vmul.f32 %v656, %v686
    %v690 = vmul.f32 %v655, %v686
    %v691 = vmul.f32 %v654, %v686
    %v692 = vmul.f32 %v653, %v686
    %v693 = vmul.f32 %v659, %v686
    %v694 = vadd.f32 %v678, %v687
    %v695 = vadd.f32 %v679, %v688
    %v696 = vadd.f32 %v680, %v689
    %v697 = vadd.f32 %v681, %v690
    %v698 = vadd.f32 %v682, %v691
    %v699 = vadd.f32 %v683, %v692
    %v700 = vadd.f32 %v684, %v693
    %s701 = sld [smem:[#allocation10]]
    %v702 = vstv %s701
    %v703 = vadd.f32 %v694, %v702
    %v704 = vadd.f32 %v695, %v702
    %v705 = vadd.f32 %v696, %v702
    %v706 = vadd.f32 %v697, %v702
    %v707 = vadd.f32 %v698, %v702
    %v708 = vadd.f32 %v699, %v702
    %v709 = vadd.f32 %v700, %v702
    %s710 = sld [smem:[#allocation7 + $0x3]]
    %v711 = vstv %s710
    %v712 = vmul.f32 %v609, %v711
    %v713 = vmul.f32 %v610, %v711
    %v714 = vmul.f32 %v611, %v711
    %v715 = vmul.f32 %v612, %v711
    %v716 = vmul.f32 %v613, %v711
    %v717 = vmul.f32 %v614, %v711
    %v718 = vmul.f32 %v615, %v711
    %s719 = sld [smem:[#allocation7 + $0x4]]
    %v720 = vstv %s719
    %v721 = vmul.f32 %v636, %v720
    %v722 = vmul.f32 %v635, %v720
    %v723 = vmul.f32 %v634, %v720
    %v724 = vmul.f32 %v633, %v720
    %v725 = vmul.f32 %v632, %v720
    %v726 = vmul.f32 %v631, %v720
    %v727 = vmul.f32 %v637, %v720
    %v728 = vadd.f32 %v712, %v721
    %v729 = vadd.f32 %v713, %v722
    %v730 = vadd.f32 %v714, %v723
    %v731 = vadd.f32 %v715, %v724
    %v732 = vadd.f32 %v716, %v725
    %v733 = vadd.f32 %v717, %v726
    %v734 = vadd.f32 %v718, %v727
    %s735 = sld [smem:[#allocation7 + $0x5]]
    %v736 = vstv %s735
    %v737 = vmul.f32 %v658, %v736
    %v738 = vmul.f32 %v657, %v736
    %v739 = vmul.f32 %v656, %v736
    %v740 = vmul.f32 %v655, %v736
    %v741 = vmul.f32 %v654, %v736
    %v742 = vmul.f32 %v653, %v736
    %v743 = vmul.f32 %v659, %v736
    %v744 = vadd.f32 %v728, %v737
    %v745 = vadd.f32 %v729, %v738
    %v746 = vadd.f32 %v730, %v739
    %v747 = vadd.f32 %v731, %v740
    %v748 = vadd.f32 %v732, %v741
    %v749 = vadd.f32 %v733, %v742
    %v750 = vadd.f32 %v734, %v743
    %s751 = sld [smem:[#allocation10 + $0x1]]
    %v752 = vstv %s751
    %v753 = vadd.f32 %v744, %v752
    %v754 = vadd.f32 %v745, %v752
    %v755 = vadd.f32 %v746, %v752
    %v756 = vadd.f32 %v747, %v752
    %v757 = vadd.f32 %v748, %v752
    %v758 = vadd.f32 %v749, %v752
    %v759 = vadd.f32 %v750, %v752
    %s760 = sld [smem:[#allocation7 + $0x6]]
    %v761 = vstv %s760
    %v762 = vmul.f32 %v609, %v761
    %v763 = vmul.f32 %v610, %v761
    %v764 = vmul.f32 %v611, %v761
    %v765 = vmul.f32 %v612, %v761
    %v766 = vmul.f32 %v613, %v761
    %v767 = vmul.f32 %v614, %v761
    %v768 = vmul.f32 %v615, %v761
    %s769 = sld [smem:[#allocation7 + $0x7]]
    %v770 = vstv %s769
    %v771 = vmul.f32 %v636, %v770
    %v772 = vmul.f32 %v635, %v770
    %v773 = vmul.f32 %v634, %v770
    %v774 = vmul.f32 %v633, %v770
    %v775 = vmul.f32 %v632, %v770
    %v776 = vmul.f32 %v631, %v770
    %v777 = vmul.f32 %v637, %v770
    %v778 = vadd.f32 %v762, %v771
    %v779 = vadd.f32 %v763, %v772
    %v780 = vadd.f32 %v764, %v773
    %v781 = vadd.f32 %v765, %v774
    %v782 = vadd.f32 %v766, %v775
    %v783 = vadd.f32 %v767, %v776
    %v784 = vadd.f32 %v768, %v777
    %s785 = sld [smem:[#allocation7 + $0x8]]
    %v786 = vstv %s785
    %v787 = vmul.f32 %v658, %v786
    %v788 = vmul.f32 %v657, %v786
    %v789 = vmul.f32 %v656, %v786
    %v790 = vmul.f32 %v655, %v786
    %v791 = vmul.f32 %v654, %v786
    %v792 = vmul.f32 %v653, %v786
    %v793 = vmul.f32 %v659, %v786
    %v794 = vadd.f32 %v778, %v787
    %v795 = vadd.f32 %v779, %v788
    %v796 = vadd.f32 %v780, %v789
    %v797 = vadd.f32 %v781, %v790
    %v798 = vadd.f32 %v782, %v791
    %v799 = vadd.f32 %v783, %v792
    %v800 = vadd.f32 %v784, %v793
    %s801 = sld [smem:[#allocation10 + $0x2]]
    %v802 = vstv %s801
    %v803 = vadd.f32 %v794, %v802
    %v804 = vadd.f32 %v795, %v802
    %v805 = vadd.f32 %v796, %v802
    %v806 = vadd.f32 %v797, %v802
    %v807 = vadd.f32 %v798, %v802
    %v808 = vadd.f32 %v799, %v802
    %v809 = vadd.f32 %v800, %v802
    %s810 = sld [smem:[#allocation7 + $0x9]]
    %v811 = vstv %s810
    %v812 = vmul.f32 %v609, %v811
    %v813 = vmul.f32 %v610, %v811
    %v814 = vmul.f32 %v611, %v811
    %v815 = vmul.f32 %v612, %v811
    %v816 = vmul.f32 %v613, %v811
    %v817 = vmul.f32 %v614, %v811
    %v818 = vmul.f32 %v615, %v811
    %s819 = sld [smem:[#allocation7 + $0xa]]
    %v820 = vstv %s819
    %v821 = vmul.f32 %v636, %v820
    %v822 = vmul.f32 %v635, %v820
    %v823 = vmul.f32 %v634, %v820
    %v824 = vmul.f32 %v633, %v820
    %v825 = vmul.f32 %v632, %v820
    %v826 = vmul.f32 %v631, %v820
    %v827 = vmul.f32 %v637, %v820
    %v828 = vadd.f32 %v812, %v821
    %v829 = vadd.f32 %v813, %v822
    %v830 = vadd.f32 %v814, %v823
    %v831 = vadd.f32 %v815, %v824
    %v832 = vadd.f32 %v816, %v825
    %v833 = vadd.f32 %v817, %v826
    %v834 = vadd.f32 %v818, %v827
    %s835 = sld [smem:[#allocation7 + $0xb]]
    %v836 = vstv %s835
    %v837 = vmul.f32 %v658, %v836
    %v838 = vmul.f32 %v657, %v836
    %v839 = vmul.f32 %v656, %v836
    %v840 = vmul.f32 %v655, %v836
    %v841 = vmul.f32 %v654, %v836
    %v842 = vmul.f32 %v653, %v836
    %v843 = vmul.f32 %v659, %v836
    %v844 = vadd.f32 %v828, %v837
    %v845 = vadd.f32 %v829, %v838
    %v846 = vadd.f32 %v830, %v839
    %v847 = vadd.f32 %v831, %v840
    %v848 = vadd.f32 %v832, %v841
    %v849 = vadd.f32 %v833, %v842
    %v850 = vadd.f32 %v834, %v843
    %s851 = sld [smem:[#allocation10 + $0x3]]
    %v852 = vstv %s851
    %v853 = vadd.f32 %v844, %v852
    %v854 = vadd.f32 %v845, %v852
    %v855 = vadd.f32 %v846, %v852
    %v856 = vadd.f32 %v847, %v852
    %v857 = vadd.f32 %v848, %v852
    %v858 = vadd.f32 %v849, %v852
    %v859 = vadd.f32 %v850, %v852
    %v860 = vsel %vm595, %v703, 0.0
    %v861 = vsel %vm596, %v704, 0.0
    %v862 = vsel %vm597, %v705, 0.0
    %v863 = vsel %vm598, %v706, 0.0
    %v864 = vsel %vm599, %v707, 0.0
    %v865 = vsel %vm600, %v708, 0.0
    %v866 = vsel %vm601, %v709, 0.0
    %v867 = vadd.f32 %v860, %v861
    %v868 = vadd.f32 %v867, %v862
    %v869 = vadd.f32 %v868, %v863
    %v870 = vadd.f32 %v869, %v864
    %v871 = vadd.f32 %v870, %v865
    %v872 = vadd.f32 %v871, %v866
    %873 = vadd.xlane.f32.xlu0 %v872
    %v874 = vpop.xlane.xlu0 %873
    %v875 = vrot.slane %v874, 4
    %v876 = vadd.f32 %v874, %v875
    %v877 = vrot.slane %v876, 2
    %v878 = vadd.f32 %v876, %v877
    %v879 = vrot.slane %v878, 1
    %v880 = vadd.f32 %v878, %v879
    %s881 = vtos %v880
    %s882 = smul.f32 %s881, 0.0001566416
    %v883 = vmul.f32 %v860, %v860
    %v884 = vmul.f32 %v861, %v861
    %v885 = vmul.f32 %v862, %v862
    %v886 = vmul.f32 %v863, %v863
    %v887 = vmul.f32 %v864, %v864
    %v888 = vmul.f32 %v865, %v865
    %v889 = vmul.f32 %v866, %v866
    %v890 = vadd.f32 %v883, %v884
    %v891 = vadd.f32 %v890, %v885
    %v892 = vadd.f32 %v891, %v886
    %v893 = vadd.f32 %v892, %v887
    %v894 = vadd.f32 %v893, %v888
    %v895 = vadd.f32 %v894, %v889
    %896 = vadd.xlane.f32.xlu0 %v895
    %v897 = vpop.xlane.xlu0 %896
    %v898 = vrot.slane %v897, 4
    %v899 = vadd.f32 %v897, %v898
    %v900 = vrot.slane %v899, 2
    %v901 = vadd.f32 %v899, %v900
    %v902 = vrot.slane %v901, 1
    %v903 = vadd.f32 %v901, %v902
    %s904 = vtos %v903
    %s905 = smul.f32 %s904, 0.0001566416
    %s906 = smul.f32 %s882, %s882
    %s907 = ssub.f32 %s905, %s906
    %s908 = smax.f32 %s907, 0.0
    %s909 = sadd.f32 %s908, 1e-05
    %v910 = vstv %s909
    %v911 = vrsqrt.pop %v910
    %v912 = vmul.f32 %v911, %v910
    %v913 = vmul.f32 %v912, %v911
    %v914 = vmul.f32 0.5, %v913
    %v915 = vsub.f32 1.5, %v914
    %v916 = vmul.f32 %v911, %v915
    %vm917 = vweird.f32 %v910
    %vm918 = vweird.f32 %v911
    %vm919 = vmor %vm917, %vm918
    %v920 = vsel %vm919, %v911, %v916
    %s921 = vtos %v920
    %s922 = sld [smem:[#allocation12]]
    %s923 = smul.f32 %s921, %s922
    %s924 = sld [smem:[#allocation13]]
    %s925 = smul.f32 %s882, %s923
    %s926 = ssub.f32 %s924, %s925
    %v927 = vsel %vm595, %v753, 0.0
    %v928 = vsel %vm596, %v754, 0.0
    %v929 = vsel %vm597, %v755, 0.0
    %v930 = vsel %vm598, %v756, 0.0
    %v931 = vsel %vm599, %v757, 0.0
    %v932 = vsel %vm600, %v758, 0.0
    %v933 = vsel %vm601, %v759, 0.0
    %v934 = vadd.f32 %v927, %v928
    %v935 = vadd.f32 %v934, %v929
    %v936 = vadd.f32 %v935, %v930
    %v937 = vadd.f32 %v936, %v931
    %v938 = vadd.f32 %v937, %v932
    %v939 = vadd.f32 %v938, %v933
    %940 = vadd.xlane.f32.xlu0 %v939
    %v941 = vpop.xlane.xlu0 %940
    %v942 = vrot.slane %v941, 4
    %v943 = vadd.f32 %v941, %v942
    %v944 = vrot.slane %v943, 2
    %v945 = vadd.f32 %v943, %v944
    %v946 = vrot.slane %v945, 1
    %v947 = vadd.f32 %v945, %v946
    %s948 = vtos %v947
    %s949 = smul.f32 %s948, 0.0001566416
    %v950 = vmul.f32 %v927, %v927
    %v951 = vmul.f32 %v928, %v928
    %v952 = vmul.f32 %v929, %v929
    %v953 = vmul.f32 %v930, %v930
    %v954 = vmul.f32 %v931, %v931
    %v955 = vmul.f32 %v932, %v932
    %v956 = vmul.f32 %v933, %v933
    %v957 = vadd.f32 %v950, %v951
    %v958 = vadd.f32 %v957, %v952
    %v959 = vadd.f32 %v958, %v953
    %v960 = vadd.f32 %v959, %v954
    %v961 = vadd.f32 %v960, %v955
    %v962 = vadd.f32 %v961, %v956
    %963 = vadd.xlane.f32.xlu0 %v962
    %v964 = vpop.xlane.xlu0 %963
    %v965 = vrot.slane %v964, 4
    %v966 = vadd.f32 %v964, %v965
    %v967 = vrot.slane %v966, 2
    %v968 = vadd.f32 %v966, %v967
    %v969 = vrot.slane %v968, 1
    %v970 = vadd.f32 %v968, %v969
    %s971 = vtos %v970
    %s972 = smul.f32 %s971, 0.0001566416
    %s973 = smul.f32 %s949, %s949
    %s974 = ssub.f32 %s972, %s973
    %s975 = smax.f32 %s974, 0.0
    %s976 = sadd.f32 %s975, 1e-05
    %v977 = vstv %s976
    %v978 = vrsqrt.pop %v977
    %v979 = vmul.f32 %v978, %v977
    %v980 = vmul.f32 %v979, %v978
    %v981 = vmul.f32 0.5, %v980
    %v982 = vsub.f32 1.5, %v981
    %v983 = vmul.f32 %v978, %v982
    %vm984 = vweird.f32 %v977
    %vm985 = vweird.f32 %v978
    %vm986 = vmor %vm984, %vm985
    %v987 = vsel %vm986, %v978, %v983
    %s988 = vtos %v987
    %s989 = sld [smem:[#allocation12 + $0x1]]
    %s990 = smul.f32 %s988, %s989
    %s991 = sld [smem:[#allocation13 + $0x1]]
    %s992 = smul.f32 %s949, %s990
    %s993 = ssub.f32 %s991, %s992
    %v994 = vsel %vm595, %v803, 0.0
    %v995 = vsel %vm596, %v804, 0.0
    %v996 = vsel %vm597, %v805, 0.0
    %v997 = vsel %vm598, %v806, 0.0
    %v998 = vsel %vm599, %v807, 0.0
    %v999 = vsel %vm600, %v808, 0.0
    %v1000 = vsel %vm601, %v809, 0.0
    %v1001 = vadd.f32 %v994, %v995
    %v1002 = vadd.f32 %v1001, %v996
    %v1003 = vadd.f32 %v1002, %v997
    %v1004 = vadd.f32 %v1003, %v998
    %v1005 = vadd.f32 %v1004, %v999
    %v1006 = vadd.f32 %v1005, %v1000
    %1007 = vadd.xlane.f32.xlu0 %v1006
    %v1008 = vpop.xlane.xlu0 %1007
    %v1009 = vrot.slane %v1008, 4
    %v1010 = vadd.f32 %v1008, %v1009
    %v1011 = vrot.slane %v1010, 2
    %v1012 = vadd.f32 %v1010, %v1011
    %v1013 = vrot.slane %v1012, 1
    %v1014 = vadd.f32 %v1012, %v1013
    %s1015 = vtos %v1014
    %s1016 = smul.f32 %s1015, 0.0001566416
    %v1017 = vmul.f32 %v994, %v994
    %v1018 = vmul.f32 %v995, %v995
    %v1019 = vmul.f32 %v996, %v996
    %v1020 = vmul.f32 %v997, %v997
    %v1021 = vmul.f32 %v998, %v998
    %v1022 = vmul.f32 %v999, %v999
    %v1023 = vmul.f32 %v1000, %v1000
    %v1024 = vadd.f32 %v1017, %v1018
    %v1025 = vadd.f32 %v1024, %v1019
    %v1026 = vadd.f32 %v1025, %v1020
    %v1027 = vadd.f32 %v1026, %v1021
    %v1028 = vadd.f32 %v1027, %v1022
    %v1029 = vadd.f32 %v1028, %v1023
    %1030 = vadd.xlane.f32.xlu0 %v1029
    %v1031 = vpop.xlane.xlu0 %1030
    %v1032 = vrot.slane %v1031, 4
    %v1033 = vadd.f32 %v1031, %v1032
    %v1034 = vrot.slane %v1033, 2
    %v1035 = vadd.f32 %v1033, %v1034
    %v1036 = vrot.slane %v1035, 1
    %v1037 = vadd.f32 %v1035, %v1036
    %s1038 = vtos %v1037
    %s1039 = smul.f32 %s1038, 0.0001566416
    %s1040 = smul.f32 %s1016, %s1016
    %s1041 = ssub.f32 %s1039, %s1040
    %s1042 = smax.f32 %s1041, 0.0
    %s1043 = sadd.f32 %s1042, 1e-05
    %v1044 = vstv %s1043
    %v1045 = vrsqrt.pop %v1044
    %v1046 = vmul.f32 %v1045, %v1044
    %v1047 = vmul.f32 %v1046, %v1045
    %v1048 = vmul.f32 0.5, %v1047
    %v1049 = vsub.f32 1.5, %v1048
    %v1050 = vmul.f32 %v1045, %v1049
    %vm1051 = vweird.f32 %v1044
    %vm1052 = vweird.f32 %v1045
    %vm1053 = vmor %vm1051, %vm1052
    %v1054 = vsel %vm1053, %v1045, %v1050
    %s1055 = vtos %v1054
    %s1056 = sld [smem:[#allocation12 + $0x2]]
    %s1057 = smul.f32 %s1055, %s1056
    %s1058 = sld [smem:[#allocation13 + $0x2]]
    %s1059 = smul.f32 %s1016, %s1057
    %s1060 = ssub.f32 %s1058, %s1059
    %v1061 = vsel %vm595, %v853, 0.0
    %v1062 = vsel %vm596, %v854, 0.0
    %v1063 = vsel %vm597, %v855, 0.0
    %v1064 = vsel %vm598, %v856, 0.0
    %v1065 = vsel %vm599, %v857, 0.0
    %v1066 = vsel %vm600, %v858, 0.0
    %v1067 = vsel %vm601, %v859, 0.0
    %v1068 = vadd.f32 %v1061, %v1062
    %v1069 = vadd.f32 %v1068, %v1063
    %v1070 = vadd.f32 %v1069, %v1064
    %v1071 = vadd.f32 %v1070, %v1065
    %v1072 = vadd.f32 %v1071, %v1066
    %v1073 = vadd.f32 %v1072, %v1067
    %1074 = vadd.xlane.f32.xlu0 %v1073
    %v1075 = vpop.xlane.xlu0 %1074
    %v1076 = vrot.slane %v1075, 4
    %v1077 = vadd.f32 %v1075, %v1076
    %v1078 = vrot.slane %v1077, 2
    %v1079 = vadd.f32 %v1077, %v1078
    %v1080 = vrot.slane %v1079, 1
    %v1081 = vadd.f32 %v1079, %v1080
    %s1082 = vtos %v1081
    %s1083 = smul.f32 %s1082, 0.0001566416
    %v1084 = vmul.f32 %v1061, %v1061
    %v1085 = vmul.f32 %v1062, %v1062
    %v1086 = vmul.f32 %v1063, %v1063
    %v1087 = vmul.f32 %v1064, %v1064
    %v1088 = vmul.f32 %v1065, %v1065
    %v1089 = vmul.f32 %v1066, %v1066
    %v1090 = vmul.f32 %v1067, %v1067
    %v1091 = vadd.f32 %v1084, %v1085
    %v1092 = vadd.f32 %v1091, %v1086
    %v1093 = vadd.f32 %v1092, %v1087
    %v1094 = vadd.f32 %v1093, %v1088
    %v1095 = vadd.f32 %v1094, %v1089
    %v1096 = vadd.f32 %v1095, %v1090
    %1097 = vadd.xlane.f32.xlu0 %v1096
    %v1098 = vpop.xlane.xlu0 %1097
    %v1099 = vrot.slane %v1098, 4
    %v1100 = vadd.f32 %v1098, %v1099
    %v1101 = vrot.slane %v1100, 2
    %v1102 = vadd.f32 %v1100, %v1101
    %v1103 = vrot.slane %v1102, 1
    %v1104 = vadd.f32 %v1102, %v1103
    %s1105 = vtos %v1104
    %s1106 = smul.f32 %s1105, 0.0001566416
    %s1107 = smul.f32 %s1083, %s1083
    %s1108 = ssub.f32 %s1106, %s1107
    %s1109 = smax.f32 %s1108, 0.0
    %s1110 = sadd.f32 %s1109, 1e-05
    %v1111 = vstv %s1110
    %v1112 = vrsqrt.pop %v1111
    %v1113 = vmul.f32 %v1112, %v1111
    %v1114 = vmul.f32 %v1113, %v1112
    %v1115 = vmul.f32 0.5, %v1114
    %v1116 = vsub.f32 1.5, %v1115
    %v1117 = vmul.f32 %v1112, %v1116
    %vm1118 = vweird.f32 %v1111
    %vm1119 = vweird.f32 %v1112
    %vm1120 = vmor %vm1118, %vm1119
    %v1121 = vsel %vm1120, %v1112, %v1117
    %s1122 = vtos %v1121
    %s1123 = sld [smem:[#allocation12 + $0x3]]
    %s1124 = smul.f32 %s1122, %s1123
    %s1125 = sld [smem:[#allocation13 + $0x3]]
    %s1126 = smul.f32 %s1083, %s1124
    %s1127 = ssub.f32 %s1125, %s1126
    %v1128 = vstv %s923
    %v1129 = vmul.f32 %v703, %v1128
    %v1130 = vmul.f32 %v704, %v1128
    %v1131 = vmul.f32 %v705, %v1128
    %v1132 = vmul.f32 %v706, %v1128
    %v1133 = vmul.f32 %v707, %v1128
    %v1134 = vmul.f32 %v708, %v1128
    %v1135 = vmul.f32 %v709, %v1128
    %v1136 = vstv %s926
    %v1137 = vadd.f32 %v1129, %v1136
    %v1138 = vadd.f32 %v1130, %v1136
    %v1139 = vadd.f32 %v1131, %v1136
    %v1140 = vadd.f32 %v1132, %v1136
    %v1141 = vadd.f32 %v1133, %v1136
    %v1142 = vadd.f32 %v1134, %v1136
    %v1143 = vadd.f32 %v1135, %v1136
    %v1144 = vmax.f32 %v1137, 0.0
    %v1145 = vmax.f32 %v1138, 0.0
    %v1146 = vmax.f32 %v1139, 0.0
    %v1147 = vmax.f32 %v1140, 0.0
    %v1148 = vmax.f32 %v1141, 0.0
    %v1149 = vmax.f32 %v1142, 0.0
    %v1150 = vmax.f32 %v1143, 0.0
    %s1151 = sld [smem:[#allocation15]]
    %v1152 = vstv %s1151
    %v1153 = vmul.f32 %v1144, %v1152
    %v1154 = vmul.f32 %v1145, %v1152
    %v1155 = vmul.f32 %v1146, %v1152
    %v1156 = vmul.f32 %v1147, %v1152
    %v1157 = vmul.f32 %v1148, %v1152
    %v1158 = vmul.f32 %v1149, %v1152
    %v1159 = vmul.f32 %v1150, %v1152
    %v1160 = vadd.f32 %v1153, 0.0
    %v1161 = vadd.f32 %v1154, 0.0
    %v1162 = vadd.f32 %v1155, 0.0
    %v1163 = vadd.f32 %v1156, 0.0
    %v1164 = vadd.f32 %v1157, 0.0
    %v1165 = vadd.f32 %v1158, 0.0
    %v1166 = vadd.f32 %v1159, 0.0
    %1167 = vrot.lane.b32.xlu0 %v1144, 127
    %v1168 = vpop.permute.xlu0 %1167
    %1169 = vrot.lane.b32.xlu0 %v1145, 127
    %v1170 = vpop.permute.xlu0 %1169
    %1171 = vrot.lane.b32.xlu0 %v1146, 127
    %v1172 = vpop.permute.xlu0 %1171
    %1173 = vrot.lane.b32.xlu0 %v1147, 127
    %v1174 = vpop.permute.xlu0 %1173
    %1175 = vrot.lane.b32.xlu0 %v1148, 127
    %v1176 = vpop.permute.xlu0 %1175
    %1177 = vrot.lane.b32.xlu0 %v1149, 127
    %v1178 = vpop.permute.xlu0 %1177
    %1179 = vrot.lane.b32.xlu0 %v1150, 127
    %v1180 = vpop.permute.xlu0 %1179
    %v1181 = vsel %vm630, %v1178, %v1180
    %v1182 = vsel %vm630, %v1176, %v1178
    %v1183 = vsel %vm630, %v1174, %v1176
    %v1184 = vsel %vm630, %v1172, %v1174
    %v1185 = vsel %vm630, %v1170, %v1172
    %v1186 = vsel %vm630, %v1168, %v1170
    %v1187 = vsel %vm630, %v1180, %v1168
    %s1188 = sld [smem:[#allocation15 + $0x1]]
    %v1189 = vstv %s1188
    %v1190 = vmul.f32 %v1186, %v1189
    %v1191 = vmul.f32 %v1185, %v1189
    %v1192 = vmul.f32 %v1184, %v1189
    %v1193 = vmul.f32 %v1183, %v1189
    %v1194 = vmul.f32 %v1182, %v1189
    %v1195 = vmul.f32 %v1181, %v1189
    %v1196 = vmul.f32 %v1187, %v1189
    %v1197 = vadd.f32 %v1160, %v1190
    %v1198 = vadd.f32 %v1161, %v1191
    %v1199 = vadd.f32 %v1162, %v1192
    %v1200 = vadd.f32 %v1163, %v1193
    %v1201 = vadd.f32 %v1164, %v1194
    %v1202 = vadd.f32 %v1165, %v1195
    %v1203 = vadd.f32 %v1166, %v1196
    %1204 = vrot.lane.b32.xlu0 %v1144, 126
    %v1205 = vpop.permute.xlu0 %1204
    %1206 = vrot.lane.b32.xlu0 %v1145, 126
    %v1207 = vpop.permute.xlu0 %1206
    %1208 = vrot.lane.b32.xlu0 %v1146, 126
    %v1209 = vpop.permute.xlu0 %1208
    %1210 = vrot.lane.b32.xlu0 %v1147, 126
    %v1211 = vpop.permute.xlu0 %1210
    %1212 = vrot.lane.b32.xlu0 %v1148, 126
    %v1213 = vpop.permute.xlu0 %1212
    %1214 = vrot.lane.b32.xlu0 %v1149, 126
    %v1215 = vpop.permute.xlu0 %1214
    %1216 = vrot.lane.b32.xlu0 %v1150, 126
    %v1217 = vpop.permute.xlu0 %1216
    %v1218 = vsel %vm652, %v1215, %v1217
    %v1219 = vsel %vm652, %v1213, %v1215
    %v1220 = vsel %vm652, %v1211, %v1213
    %v1221 = vsel %vm652, %v1209, %v1211
    %v1222 = vsel %vm652, %v1207, %v1209
    %v1223 = vsel %vm652, %v1205, %v1207
    %v1224 = vsel %vm652, %v1217, %v1205
    %s1225 = sld [smem:[#allocation15 + $0x2]]
    %v1226 = vstv %s1225
    %v1227 = vmul.f32 %v1223, %v1226
    %v1228 = vmul.f32 %v1222, %v1226
    %v1229 = vmul.f32 %v1221, %v1226
    %v1230 = vmul.f32 %v1220, %v1226
    %v1231 = vmul.f32 %v1219, %v1226
    %v1232 = vmul.f32 %v1218, %v1226
    %v1233 = vmul.f32 %v1224, %v1226
    %v1234 = vadd.f32 %v1197, %v1227
    %v1235 = vadd.f32 %v1198, %v1228
    %v1236 = vadd.f32 %v1199, %v1229
    %v1237 = vadd.f32 %v1200, %v1230
    %v1238 = vadd.f32 %v1201, %v1231
    %v1239 = vadd.f32 %v1202, %v1232
    %v1240 = vadd.f32 %v1203, %v1233
    %v1241 = vstv %s990
    %v1242 = vmul.f32 %v753, %v1241
    %v1243 = vmul.f32 %v754, %v1241
    %v1244 = vmul.f32 %v755, %v1241
    %v1245 = vmul.f32 %v756, %v1241
    %v1246 = vmul.f32 %v757, %v1241
    %v1247 = vmul.f32 %v758, %v1241
    %v1248 = vmul.f32 %v759, %v1241
    %v1249 = vstv %s993
    %v1250 = vadd.f32 %v1242, %v1249
    %v1251 = vadd.f32 %v1243, %v1249
    %v1252 = vadd.f32 %v1244, %v1249
    %v1253 = vadd.f32 %v1245, %v1249
    %v1254 = vadd.f32 %v1246, %v1249
    %v1255 = vadd.f32 %v1247, %v1249
    %v1256 = vadd.f32 %v1248, %v1249
    %v1257 = vmax.f32 %v1250, 0.0
    %v1258 = vmax.f32 %v1251, 0.0
    %v1259 = vmax.f32 %v1252, 0.0
    %v1260 = vmax.f32 %v1253, 0.0
    %v1261 = vmax.f32 %v1254, 0.0
    %v1262 = vmax.f32 %v1255, 0.0
    %v1263 = vmax.f32 %v1256, 0.0
    %s1264 = sld [smem:[#allocation15 + $0x3]]
    %v1265 = vstv %s1264
    %v1266 = vmul.f32 %v1257, %v1265
    %v1267 = vmul.f32 %v1258, %v1265
    %v1268 = vmul.f32 %v1259, %v1265
    %v1269 = vmul.f32 %v1260, %v1265
    %v1270 = vmul.f32 %v1261, %v1265
    %v1271 = vmul.f32 %v1262, %v1265
    %v1272 = vmul.f32 %v1263, %v1265
    %v1273 = vadd.f32 %v1234, %v1266
    %v1274 = vadd.f32 %v1235, %v1267
    %v1275 = vadd.f32 %v1236, %v1268
    %v1276 = vadd.f32 %v1237, %v1269
    %v1277 = vadd.f32 %v1238, %v1270
    %v1278 = vadd.f32 %v1239, %v1271
    %v1279 = vadd.f32 %v1240, %v1272
    %1280 = vrot.lane.b32.xlu0 %v1257, 127
    %v1281 = vpop.permute.xlu0 %1280
    %1282 = vrot.lane.b32.xlu0 %v1258, 127
    %v1283 = vpop.permute.xlu0 %1282
    %1284 = vrot.lane.b32.xlu0 %v1259, 127
    %v1285 = vpop.permute.xlu0 %1284
    %1286 = vrot.lane.b32.xlu0 %v1260, 127
    %v1287 = vpop.permute.xlu0 %1286
    %1288 = vrot.lane.b32.xlu0 %v1261, 127
    %v1289 = vpop.permute.xlu0 %1288
    %1290 = vrot.lane.b32.xlu0 %v1262, 127
    %v1291 = vpop.permute.xlu0 %1290
    %1292 = vrot.lane.b32.xlu0 %v1263, 127
    %v1293 = vpop.permute.xlu0 %1292
    %v1294 = vsel %vm630, %v1291, %v1293
    %v1295 = vsel %vm630, %v1289, %v1291
    %v1296 = vsel %vm630, %v1287, %v1289
    %v1297 = vsel %vm630, %v1285, %v1287
    %v1298 = vsel %vm630, %v1283, %v1285
    %v1299 = vsel %vm630, %v1281, %v1283
    %v1300 = vsel %vm630, %v1293, %v1281
    %s1301 = sld [smem:[#allocation15 + $0x4]]
    %v1302 = vstv %s1301
    %v1303 = vmul.f32 %v1299, %v1302
    %v1304 = vmul.f32 %v1298, %v1302
    %v1305 = vmul.f32 %v1297, %v1302
    %v1306 = vmul.f32 %v1296, %v1302
    %v1307 = vmul.f32 %v1295, %v1302
    %v1308 = vmul.f32 %v1294, %v1302
    %v1309 = vmul.f32 %v1300, %v1302
    %v1310 = vadd.f32 %v1273, %v1303
    %v1311 = vadd.f32 %v1274, %v1304
    %v1312 = vadd.f32 %v1275, %v1305
    %v1313 = vadd.f32 %v1276, %v1306
    %v1314 = vadd.f32 %v1277, %v1307
    %v1315 = vadd.f32 %v1278, %v1308
    %v1316 = vadd.f32 %v1279, %v1309
    %1317 = vrot.lane.b32.xlu0 %v1257, 126
    %v1318 = vpop.permute.xlu0 %1317
    %1319 = vrot.lane.b32.xlu0 %v1258, 126
    %v1320 = vpop.permute.xlu0 %1319
    %1321 = vrot.lane.b32.xlu0 %v1259, 126
    %v1322 = vpop.permute.xlu0 %1321
    %1323 = vrot.lane.b32.xlu0 %v1260, 126
    %v1324 = vpop.permute.xlu0 %1323
    %1325 = vrot.lane.b32.xlu0 %v1261, 126
    %v1326 = vpop.permute.xlu0 %1325
    %1327 = vrot.lane.b32.xlu0 %v1262, 126
    %v1328 = vpop.permute.xlu0 %1327
    %1329 = vrot.lane.b32.xlu0 %v1263, 126
    %v1330 = vpop.permute.xlu0 %1329
    %v1331 = vsel %vm652, %v1328, %v1330
    %v1332 = vsel %vm652, %v1326, %v1328
    %v1333 = vsel %vm652, %v1324, %v1326
    %v1334 = vsel %vm652, %v1322, %v1324
    %v1335 = vsel %vm652, %v1320, %v1322
    %v1336 = vsel %vm652, %v1318, %v1320
    %v1337 = vsel %vm652, %v1330, %v1318
    %s1338 = sld [smem:[#allocation15 + $0x5]]
    %v1339 = vstv %s1338
    %v1340 = vmul.f32 %v1336, %v1339
    %v1341 = vmul.f32 %v1335, %v1339
    %v1342 = vmul.f32 %v1334, %v1339
    %v1343 = vmul.f32 %v1333, %v1339
    %v1344 = vmul.f32 %v1332, %v1339
    %v1345 = vmul.f32 %v1331, %v1339
    %v1346 = vmul.f32 %v1337, %v1339
    %v1347 = vadd.f32 %v1310, %v1340
    %v1348 = vadd.f32 %v1311, %v1341
    %v1349 = vadd.f32 %v1312, %v1342
    %v1350 = vadd.f32 %v1313, %v1343
    %v1351 = vadd.f32 %v1314, %v1344
    %v1352 = vadd.f32 %v1315, %v1345
    %v1353 = vadd.f32 %v1316, %v1346
    %v1354 = vstv %s1057
    %v1355 = vmul.f32 %v803, %v1354
    %v1356 = vmul.f32 %v804, %v1354
    %v1357 = vmul.f32 %v805, %v1354
    %v1358 = vmul.f32 %v806, %v1354
    %v1359 = vmul.f32 %v807, %v1354
    %v1360 = vmul.f32 %v808, %v1354
    %v1361 = vmul.f32 %v809, %v1354
    %v1362 = vstv %s1060
    %v1363 = vadd.f32 %v1355, %v1362
    %v1364 = vadd.f32 %v1356, %v1362
    %v1365 = vadd.f32 %v1357, %v1362
    %v1366 = vadd.f32 %v1358, %v1362
    %v1367 = vadd.f32 %v1359, %v1362
    %v1368 = vadd.f32 %v1360, %v1362
    %v1369 = vadd.f32 %v1361, %v1362
    %v1370 = vmax.f32 %v1363, 0.0
    %v1371 = vmax.f32 %v1364, 0.0
    %v1372 = vmax.f32 %v1365, 0.0
    %v1373 = vmax.f32 %v1366, 0.0
    %v1374 = vmax.f32 %v1367, 0.0
    %v1375 = vmax.f32 %v1368, 0.0
    %v1376 = vmax.f32 %v1369, 0.0
    %s1377 = sld [smem:[#allocation15 + $0x6]]
    %v1378 = vstv %s1377
    %v1379 = vmul.f32 %v1370, %v1378
    %v1380 = vmul.f32 %v1371, %v1378
    %v1381 = vmul.f32 %v1372, %v1378
    %v1382 = vmul.f32 %v1373, %v1378
    %v1383 = vmul.f32 %v1374, %v1378
    %v1384 = vmul.f32 %v1375, %v1378
    %v1385 = vmul.f32 %v1376, %v1378
    %v1386 = vadd.f32 %v1347, %v1379
    %v1387 = vadd.f32 %v1348, %v1380
    %v1388 = vadd.f32 %v1349, %v1381
    %v1389 = vadd.f32 %v1350, %v1382
    %v1390 = vadd.f32 %v1351, %v1383
    %v1391 = vadd.f32 %v1352, %v1384
    %v1392 = vadd.f32 %v1353, %v1385
    %1393 = vrot.lane.b32.xlu0 %v1370, 127
    %v1394 = vpop.permute.xlu0 %1393
    %1395 = vrot.lane.b32.xlu0 %v1371, 127
    %v1396 = vpop.permute.xlu0 %1395
    %1397 = vrot.lane.b32.xlu0 %v1372, 127
    %v1398 = vpop.permute.xlu0 %1397
    %1399 = vrot.lane.b32.xlu0 %v1373, 127
    %v1400 = vpop.permute.xlu0 %1399
    %1401 = vrot.lane.b32.xlu0 %v1374, 127
    %v1402 = vpop.permute.xlu0 %1401
    %1403 = vrot.lane.b32.xlu0 %v1375, 127
    %v1404 = vpop.permute.xlu0 %1403
    %1405 = vrot.lane.b32.xlu0 %v1376, 127
    %v1406 = vpop.permute.xlu0 %1405
    %v1407 = vsel %vm630, %v1404, %v1406
    %v1408 = vsel %vm630, %v1402, %v1404
    %v1409 = vsel %vm630, %v1400, %v1402
    %v1410 = vsel %vm630, %v1398, %v1400
    %v1411 = vsel %vm630, %v1396, %v1398
    %v1412 = vsel %vm630, %v1394, %v1396
    %v1413 = vsel %vm630, %v1406, %v1394
    %s1414 = sld [smem:[#allocation15 + $0x7]]
    %v1415 = vstv %s1414
    %v1416 = vmul.f32 %v1412, %v1415
    %v1417 = vmul.f32 %v1411, %v1415
    %v1418 = vmul.f32 %v1410, %v1415
    %v1419 = vmul.f32 %v1409, %v1415
    %v1420 = vmul.f32 %v1408, %v1415
    %v1421 = vmul.f32 %v1407, %v1415
    %v1422 = vmul.f32 %v1413, %v1415
    %v1423 = vadd.f32 %v1386, %v1416
    %v1424 = vadd.f32 %v1387, %v1417
    %v1425 = vadd.f32 %v1388, %v1418
    %v1426 = vadd.f32 %v1389, %v1419
    %v1427 = vadd.f32 %v1390, %v1420
    %v1428 = vadd.f32 %v1391, %v1421
    %v1429 = vadd.f32 %v1392, %v1422
    %1430 = vrot.lane.b32.xlu0 %v1370, 126
    %v1431 = vpop.permute.xlu0 %1430
    %1432 = vrot.lane.b32.xlu0 %v1371, 126
    %v1433 = vpop.permute.xlu0 %1432
    %1434 = vrot.lane.b32.xlu0 %v1372, 126
    %v1435 = vpop.permute.xlu0 %1434
    %1436 = vrot.lane.b32.xlu0 %v1373, 126
    %v1437 = vpop.permute.xlu0 %1436
    %1438 = vrot.lane.b32.xlu0 %v1374, 126
    %v1439 = vpop.permute.xlu0 %1438
    %1440 = vrot.lane.b32.xlu0 %v1375, 126
    %v1441 = vpop.permute.xlu0 %1440
    %1442 = vrot.lane.b32.xlu0 %v1376, 126
    %v1443 = vpop.permute.xlu0 %1442
    %v1444 = vsel %vm652, %v1441, %v1443
    %v1445 = vsel %vm652, %v1439, %v1441
    %v1446 = vsel %vm652, %v1437, %v1439
    %v1447 = vsel %vm652, %v1435, %v1437
    %v1448 = vsel %vm652, %v1433, %v1435
    %v1449 = vsel %vm652, %v1431, %v1433
    %v1450 = vsel %vm652, %v1443, %v1431
    %s1451 = sld [smem:[#allocation15 + $0x8]]
    %v1452 = vstv %s1451
    %v1453 = vmul.f32 %v1449, %v1452
    %v1454 = vmul.f32 %v1448, %v1452
    %v1455 = vmul.f32 %v1447, %v1452
    %v1456 = vmul.f32 %v1446, %v1452
    %v1457 = vmul.f32 %v1445, %v1452
    %v1458 = vmul.f32 %v1444, %v1452
    %v1459 = vmul.f32 %v1450, %v1452
    %v1460 = vadd.f32 %v1423, %v1453
    %v1461 = vadd.f32 %v1424, %v1454
    %v1462 = vadd.f32 %v1425, %v1455
    %v1463 = vadd.f32 %v1426, %v1456
    %v1464 = vadd.f32 %v1427, %v1457
    %v1465 = vadd.f32 %v1428, %v1458
    %v1466 = vadd.f32 %v1429, %v1459
    %v1467 = vstv %s1124
    %v1468 = vmul.f32 %v853, %v1467
    %v1469 = vmul.f32 %v854, %v1467
    %v1470 = vmul.f32 %v855, %v1467
    %v1471 = vmul.f32 %v856, %v1467
    %v1472 = vmul.f32 %v857, %v1467
    %v1473 = vmul.f32 %v858, %v1467
    %v1474 = vmul.f32 %v859, %v1467
    %v1475 = vstv %s1127
    %v1476 = vadd.f32 %v1468, %v1475
    %v1477 = vadd.f32 %v1469, %v1475
    %v1478 = vadd.f32 %v1470, %v1475
    %v1479 = vadd.f32 %v1471, %v1475
    %v1480 = vadd.f32 %v1472, %v1475
    %v1481 = vadd.f32 %v1473, %v1475
    %v1482 = vadd.f32 %v1474, %v1475
    %v1483 = vmax.f32 %v1476, 0.0
    %v1484 = vmax.f32 %v1477, 0.0
    %v1485 = vmax.f32 %v1478, 0.0
    %v1486 = vmax.f32 %v1479, 0.0
    %v1487 = vmax.f32 %v1480, 0.0
    %v1488 = vmax.f32 %v1481, 0.0
    %v1489 = vmax.f32 %v1482, 0.0
    %s1490 = sld [smem:[#allocation15 + $0x9]]
    %v1491 = vstv %s1490
    %v1492 = vmul.f32 %v1483, %v1491
    %v1493 = vmul.f32 %v1484, %v1491
    %v1494 = vmul.f32 %v1485, %v1491
    %v1495 = vmul.f32 %v1486, %v1491
    %v1496 = vmul.f32 %v1487, %v1491
    %v1497 = vmul.f32 %v1488, %v1491
    %v1498 = vmul.f32 %v1489, %v1491
    %v1499 = vadd.f32 %v1460, %v1492
    %v1500 = vadd.f32 %v1461, %v1493
    %v1501 = vadd.f32 %v1462, %v1494
    %v1502 = vadd.f32 %v1463, %v1495
    %v1503 = vadd.f32 %v1464, %v1496
    %v1504 = vadd.f32 %v1465, %v1497
    %v1505 = vadd.f32 %v1466, %v1498
    %1506 = vrot.lane.b32.xlu0 %v1483, 127
    %v1507 = vpop.permute.xlu0 %1506
    %1508 = vrot.lane.b32.xlu0 %v1484, 127
    %v1509 = vpop.permute.xlu0 %1508
    %1510 = vrot.lane.b32.xlu0 %v1485, 127
    %v1511 = vpop.permute.xlu0 %1510
    %1512 = vrot.lane.b32.xlu0 %v1486, 127
    %v1513 = vpop.permute.xlu0 %1512
    %1514 = vrot.lane.b32.xlu0 %v1487, 127
    %v1515 = vpop.permute.xlu0 %1514
    %1516 = vrot.lane.b32.xlu0 %v1488, 127
    %v1517 = vpop.permute.xlu0 %1516
    %1518 = vrot.lane.b32.xlu0 %v1489, 127
    %v1519 = vpop.permute.xlu0 %1518
    %v1520 = vsel %vm630, %v1517, %v1519
    %v1521 = vsel %vm630, %v1515, %v1517
    %v1522 = vsel %vm630, %v1513, %v1515
    %v1523 = vsel %vm630, %v1511, %v1513
    %v1524 = vsel %vm630, %v1509, %v1511
    %v1525 = vsel %vm630, %v1507, %v1509
    %v1526 = vsel %vm630, %v1519, %v1507
    %s1527 = sld [smem:[#allocation15 + $0xa]]
    %v1528 = vstv %s1527
    %v1529 = vmul.f32 %v1525, %v1528
    %v1530 = vmul.f32 %v1524, %v1528
    %v1531 = vmul.f32 %v1523, %v1528
    %v1532 = vmul.f32 %v1522, %v1528
    %v1533 = vmul.f32 %v1521, %v1528
    %v1534 = vmul.f32 %v1520, %v1528
    %v1535 = vmul.f32 %v1526, %v1528
    %v1536 = vadd.f32 %v1499, %v1529
    %v1537 = vadd.f32 %v1500, %v1530
    %v1538 = vadd.f32 %v1501, %v1531
    %v1539 = vadd.f32 %v1502, %v1532
    %v1540 = vadd.f32 %v1503, %v1533
    %v1541 = vadd.f32 %v1504, %v1534
    %v1542 = vadd.f32 %v1505, %v1535
    %1543 = vrot.lane.b32.xlu0 %v1483, 126
    %v1544 = vpop.permute.xlu0 %1543
    %1545 = vrot.lane.b32.xlu0 %v1484, 126
    %v1546 = vpop.permute.xlu0 %1545
    %1547 = vrot.lane.b32.xlu0 %v1485, 126
    %v1548 = vpop.permute.xlu0 %1547
    %1549 = vrot.lane.b32.xlu0 %v1486, 126
    %v1550 = vpop.permute.xlu0 %1549
    %1551 = vrot.lane.b32.xlu0 %v1487, 126
    %v1552 = vpop.permute.xlu0 %1551
    %1553 = vrot.lane.b32.xlu0 %v1488, 126
    %v1554 = vpop.permute.xlu0 %1553
    %1555 = vrot.lane.b32.xlu0 %v1489, 126
    %v1556 = vpop.permute.xlu0 %1555
    %v1557 = vsel %vm652, %v1554, %v1556
    %v1558 = vsel %vm652, %v1552, %v1554
    %v1559 = vsel %vm652, %v1550, %v1552
    %v1560 = vsel %vm652, %v1548, %v1550
    %v1561 = vsel %vm652, %v1546, %v1548
    %v1562 = vsel %vm652, %v1544, %v1546
    %v1563 = vsel %vm652, %v1556, %v1544
    %s1564 = sld [smem:[#allocation15 + $0xb]]
    %v1565 = vstv %s1564
    %v1566 = vmul.f32 %v1562, %v1565
    %v1567 = vmul.f32 %v1561, %v1565
    %v1568 = vmul.f32 %v1560, %v1565
    %v1569 = vmul.f32 %v1559, %v1565
    %v1570 = vmul.f32 %v1558, %v1565
    %v1571 = vmul.f32 %v1557, %v1565
    %v1572 = vmul.f32 %v1563, %v1565
    %v1573 = vadd.f32 %v1536, %v1566
    %v1574 = vadd.f32 %v1537, %v1567
    %v1575 = vadd.f32 %v1538, %v1568
    %v1576 = vadd.f32 %v1539, %v1569
    %v1577 = vadd.f32 %v1540, %v1570
    %v1578 = vadd.f32 %v1541, %v1571
    %v1579 = vadd.f32 %v1542, %v1572
    %s1580 = sld [smem:[#allocation4]]
    %v1581 = vstv %s1580
    %v1582 = vadd.f32 %v1573, %v1581
    %v1583 = vadd.f32 %v1574, %v1581
    %v1584 = vadd.f32 %v1575, %v1581
    %v1585 = vadd.f32 %v1576, %v1581
    %v1586 = vadd.f32 %v1577, %v1581
    %v1587 = vadd.f32 %v1578, %v1581
    %v1588 = vadd.f32 %v1579, %v1581
    %v1589 = vsel %vm602, %v1582, 0.0
    %v1590 = vsel %vm603, %v1583, 0.0
    %v1591 = vsel %vm604, %v1584, 0.0
    %v1592 = vsel %vm605, %v1585, 0.0
    %v1593 = vsel %vm606, %v1586, 0.0
    %v1594 = vsel %vm607, %v1587, 0.0
    %v1595 = vsel %vm608, %v1588, 0.0
    %v1596 = vadd.f32 %v1589, %v1590
    %v1597 = vadd.f32 %v1596, %v1591
    %v1598 = vadd.f32 %v1597, %v1592
    %v1599 = vadd.f32 %v1598, %v1593
    %v1600 = vadd.f32 %v1599, %v1594
    %v1601 = vadd.f32 %v1600, %v1595
    %1602 = vadd.xlane.f32.xlu0 %v1601
    %v1603 = vpop.xlane.xlu0 %1602
    %v1604 = vrot.slane %v1603, 4
    %v1605 = vadd.f32 %v1603, %v1604
    %v1606 = vrot.slane %v1605, 2
    %v1607 = vadd.f32 %v1605, %v1606
    %v1608 = vrot.slane %v1607, 1
    %v1609 = vadd.f32 %v1607, %v1608
    %s1610 = vtos %v1609
    %s1611 = smul.f32 %s1610, 0.00015703517
    %v1612 = vmul.f32 %v1589, %v1589
    %v1613 = vmul.f32 %v1590, %v1590
    %v1614 = vmul.f32 %v1591, %v1591
    %v1615 = vmul.f32 %v1592, %v1592
    %v1616 = vmul.f32 %v1593, %v1593
    %v1617 = vmul.f32 %v1594, %v1594
    %v1618 = vmul.f32 %v1595, %v1595
    %v1619 = vadd.f32 %v1612, %v1613
    %v1620 = vadd.f32 %v1619, %v1614
    %v1621 = vadd.f32 %v1620, %v1615
    %v1622 = vadd.f32 %v1621, %v1616
    %v1623 = vadd.f32 %v1622, %v1617
    %v1624 = vadd.f32 %v1623, %v1618
    %1625 = vadd.xlane.f32.xlu0 %v1624
    %v1626 = vpop.xlane.xlu0 %1625
    %v1627 = vrot.slane %v1626, 4
    %v1628 = vadd.f32 %v1626, %v1627
    %v1629 = vrot.slane %v1628, 2
    %v1630 = vadd.f32 %v1628, %v1629
    %v1631 = vrot.slane %v1630, 1
    %v1632 = vadd.f32 %v1630, %v1631
    %s1633 = vtos %v1632
    %s1634 = smul.f32 %s1633, 0.00015703517
    %s1635 = smul.f32 %s1611, %s1611
    %s1636 = ssub.f32 %s1634, %s1635
    %s1637 = smax.f32 %s1636, 0.0
    %s1638 = sadd.f32 %s1637, 1e-05
    %v1639 = vstv %s1638
    %v1640 = vrsqrt.pop %v1639
    %v1641 = vmul.f32 %v1640, %v1639
    %v1642 = vmul.f32 %v1641, %v1640
    %v1643 = vmul.f32 0.5, %v1642
    %v1644 = vsub.f32 1.5, %v1643
    %v1645 = vmul.f32 %v1640, %v1644
    %vm1646 = vweird.f32 %v1639
    %vm1647 = vweird.f32 %v1640
    %vm1648 = vmor %vm1646, %vm1647
    %v1649 = vsel %vm1648, %v1640, %v1645
    %s1650 = vtos %v1649
    %s1651 = sld [smem:[#allocation5]]
    %s1652 = smul.f32 %s1650, %s1651
    %s1653 = sld [smem:[#allocation6]]
    %s1654 = smul.f32 %s1611, %s1652
    %s1655 = ssub.f32 %s1653, %s1654
    %v1656 = vstv %s1652
    %v1657 = vmul.f32 %v1589, %v1656
    %v1658 = vmul.f32 %v1590, %v1656
    %v1659 = vmul.f32 %v1591, %v1656
    %v1660 = vmul.f32 %v1592, %v1656
    %v1661 = vmul.f32 %v1593, %v1656
    %v1662 = vmul.f32 %v1594, %v1656
    %v1663 = vmul.f32 %v1595, %v1656
    %v1664 = vstv %s1655
    %v1665 = vadd.f32 %v1657, %v1664
    %v1666 = vadd.f32 %v1658, %v1664
    %v1667 = vadd.f32 %v1659, %v1664
    %v1668 = vadd.f32 %v1660, %v1664
    %v1669 = vadd.f32 %v1661, %v1664
    %v1670 = vadd.f32 %v1662, %v1664
    %v1671 = vadd.f32 %v1663, %v1664
    %v1672 = vmax.f32 %v1665, 0.0
    %v1673 = vmax.f32 %v1666, 0.0
    %v1674 = vmax.f32 %v1667, 0.0
    %v1675 = vmax.f32 %v1668, 0.0
    %v1676 = vmax.f32 %v1669, 0.0
    %v1677 = vmax.f32 %v1670, 0.0
    %v1678 = vmax.f32 %v1671, 0.0
    %1679 = vrot.lane.b32.xlu0 %v1672, 127
    %v1680 = vpop.permute.xlu0 %1679
    %1681 = vrot.lane.b32.xlu0 %v1673, 127
    %v1682 = vpop.permute.xlu0 %1681
    %1683 = vrot.lane.b32.xlu0 %v1674, 127
    %v1684 = vpop.permute.xlu0 %1683
    %1685 = vrot.lane.b32.xlu0 %v1675, 127
    %v1686 = vpop.permute.xlu0 %1685
    %1687 = vrot.lane.b32.xlu0 %v1676, 127
    %v1688 = vpop.permute.xlu0 %1687
    %1689 = vrot.lane.b32.xlu0 %v1677, 127
    %v1690 = vpop.permute.xlu0 %1689
    %1691 = vrot.lane.b32.xlu0 %v1678, 127
    %v1692 = vpop.permute.xlu0 %1691
    %v1693 = vsel %vm630, %v1690, %v1692
    %v1694 = vsel %vm630, %v1688, %v1690
    %v1695 = vsel %vm630, %v1686, %v1688
    %v1696 = vsel %vm630, %v1684, %v1686
    %v1697 = vsel %vm630, %v1682, %v1684
    %v1698 = vsel %vm630, %v1680, %v1682
    %v1699 = vsel %vm630, %v1692, %v1680
    %v1700 = vmax.f32 %v1672, %v1698
    %v1701 = vmax.f32 %v1673, %v1697
    %v1702 = vmax.f32 %v1674, %v1696
    %v1703 = vmax.f32 %v1675, %v1695
    %v1704 = vmax.f32 %v1676, %v1694
    %v1705 = vmax.f32 %v1677, %v1693
    %v1706 = vmax.f32 %v1678, %v1699
    %s1707 = smul.u32 8, 112
    %s1708 = smul.u32 %s1707, 2
    %s1709 = sshll.u32 %s1708, 4
    %1710 = dma.done [#allocation3], %s1709
    %v1711 = vld [vmem:[#allocation2] sm:$0xff]
    %v1712 = vld [vmem:[#allocation2 + $0x8] sm:$0xff]
    %v1713 = vld [vmem:[#allocation2 + $0x10] sm:$0xff]
    %v1714 = vld [vmem:[#allocation2 + $0x18] sm:$0xff]
    %v1715 = vld [vmem:[#allocation2 + $0x20] sm:$0xff]
    %v1716 = vld [vmem:[#allocation2 + $0x28] sm:$0xff]
    %v1717 = vld [vmem:[#allocation2 + $0x30] sm:$0xff]
    %v1718 = vld [vmem:[#allocation2 + $0x38] sm:$0xff]
    %v1719 = vld [vmem:[#allocation2 + $0x40] sm:$0xff]
    %v1720 = vld [vmem:[#allocation2 + $0x48] sm:$0xff]
    %v1721 = vld [vmem:[#allocation2 + $0x50] sm:$0xff]
    %v1722 = vld [vmem:[#allocation2 + $0x58] sm:$0xff]
    %v1723 = vld [vmem:[#allocation2 + $0x60] sm:$0xff]
    %v1724 = vld [vmem:[#allocation2 + $0x68] sm:$0xff]
    %v1725 = vld [vmem:[#allocation2 + $0x70] sm:$0xff]
    %v1726 = vld [vmem:[#allocation2 + $0x78] sm:$0xff]
    %v1727 = vld [vmem:[#allocation2 + $0x80] sm:$0xff]
    %v1728 = vld [vmem:[#allocation2 + $0x88] sm:$0xff]
    %v1729 = vld [vmem:[#allocation2 + $0x90] sm:$0xff]
    %v1730 = vld [vmem:[#allocation2 + $0x98] sm:$0xff]
    %v1731 = vld [vmem:[#allocation2 + $0xa0] sm:$0xff]
    %v1732 = vld [vmem:[#allocation2 + $0xa8] sm:$0xff]
    %v1733 = vld [vmem:[#allocation2 + $0xb0] sm:$0xff]
    %v1734 = vld [vmem:[#allocation2 + $0xb8] sm:$0xff]
    %v1735 = vld [vmem:[#allocation2 + $0xc0] sm:$0xff]
    %v1736 = vld [vmem:[#allocation2 + $0xc8] sm:$0xff]
    %v1737 = vld [vmem:[#allocation2 + $0xd0] sm:$0xff]
    %v1738 = vld [vmem:[#allocation2 + $0xd8] sm:$0xff]
    %v1739 = vld [vmem:[#allocation2 + $0xe0] sm:$0xff]
    %v1740 = vld [vmem:[#allocation2 + $0xe8] sm:$0xff]
    %v1741 = vld [vmem:[#allocation2 + $0xf0] sm:$0xff]
    %v1742 = vld [vmem:[#allocation2 + $0xf8] sm:$0xff]
    %v1743 = vld [vmem:[#allocation2 + $0x100] sm:$0xff]
    %v1744 = vld [vmem:[#allocation2 + $0x108] sm:$0xff]
    %v1745 = vld [vmem:[#allocation2 + $0x110] sm:$0xff]
    %v1746 = vld [vmem:[#allocation2 + $0x118] sm:$0xff]
    %v1747 = vld [vmem:[#allocation2 + $0x120] sm:$0xff]
    %v1748 = vld [vmem:[#allocation2 + $0x128] sm:$0xff]
    %v1749 = vld [vmem:[#allocation2 + $0x130] sm:$0xff]
    %v1750 = vld [vmem:[#allocation2 + $0x138] sm:$0xff]
    %v1751 = vld [vmem:[#allocation2 + $0x140] sm:$0xff]
    %v1752 = vld [vmem:[#allocation2 + $0x148] sm:$0xff]
    %v1753 = vld [vmem:[#allocation2 + $0x150] sm:$0xff]
    %v1754 = vld [vmem:[#allocation2 + $0x158] sm:$0xff]
    %v1755 = vld [vmem:[#allocation2 + $0x160] sm:$0xff]
    %v1756 = vld [vmem:[#allocation2 + $0x168] sm:$0xff]
    %v1757 = vld [vmem:[#allocation2 + $0x170] sm:$0xff]
    %v1758 = vld [vmem:[#allocation2 + $0x178] sm:$0xff]
    %v1759 = vld [vmem:[#allocation2 + $0x180] sm:$0xff]
    %v1760 = vld [vmem:[#allocation2 + $0x188] sm:$0xff]
    %v1761 = vld [vmem:[#allocation2 + $0x190] sm:$0xff]
    %v1762 = vld [vmem:[#allocation2 + $0x198] sm:$0xff]
    %v1763 = vld [vmem:[#allocation2 + $0x1a0] sm:$0xff]
    %v1764 = vld [vmem:[#allocation2 + $0x1a8] sm:$0xff]
    %v1765 = vld [vmem:[#allocation2 + $0x1b0] sm:$0xff]
    %v1766 = vld [vmem:[#allocation2 + $0x1b8] sm:$0xff]
    %v1767 = vld [vmem:[#allocation2 + $0x1c0] sm:$0xff]
    %v1768 = vld [vmem:[#allocation2 + $0x1c8] sm:$0xff]
    %v1769 = vld [vmem:[#allocation2 + $0x1d0] sm:$0xff]
    %v1770 = vld [vmem:[#allocation2 + $0x1d8] sm:$0xff]
    %v1771 = vld [vmem:[#allocation2 + $0x1e0] sm:$0xff]
    %v1772 = vld [vmem:[#allocation2 + $0x1e8] sm:$0xff]
    %v1773 = vld [vmem:[#allocation2 + $0x1f0] sm:$0xff]
    %v1774 = vld [vmem:[#allocation2 + $0x1f8] sm:$0xff]
    %v1775 = vld [vmem:[#allocation2 + $0x200] sm:$0xff]
    %v1776 = vld [vmem:[#allocation2 + $0x208] sm:$0xff]
    %v1777 = vld [vmem:[#allocation2 + $0x210] sm:$0xff]
    %v1778 = vld [vmem:[#allocation2 + $0x218] sm:$0xff]
    %v1779 = vld [vmem:[#allocation2 + $0x220] sm:$0xff]
    %v1780 = vld [vmem:[#allocation2 + $0x228] sm:$0xff]
    %v1781 = vld [vmem:[#allocation2 + $0x230] sm:$0xff]
    %v1782 = vld [vmem:[#allocation2 + $0x238] sm:$0xff]
    %v1783 = vld [vmem:[#allocation2 + $0x240] sm:$0xff]
    %v1784 = vld [vmem:[#allocation2 + $0x248] sm:$0xff]
    %v1785 = vld [vmem:[#allocation2 + $0x250] sm:$0xff]
    %v1786 = vld [vmem:[#allocation2 + $0x258] sm:$0xff]
    %v1787 = vld [vmem:[#allocation2 + $0x260] sm:$0xff]
    %v1788 = vld [vmem:[#allocation2 + $0x268] sm:$0xff]
    %v1789 = vld [vmem:[#allocation2 + $0x270] sm:$0xff]
    %v1790 = vld [vmem:[#allocation2 + $0x278] sm:$0xff]
    %v1791 = vld [vmem:[#allocation2 + $0x280] sm:$0xff]
    %v1792 = vld [vmem:[#allocation2 + $0x288] sm:$0xff]
    %v1793 = vld [vmem:[#allocation2 + $0x290] sm:$0xff]
    %v1794 = vld [vmem:[#allocation2 + $0x298] sm:$0xff]
    %v1795 = vld [vmem:[#allocation2 + $0x2a0] sm:$0xff]
    %v1796 = vld [vmem:[#allocation2 + $0x2a8] sm:$0xff]
    %v1797 = vld [vmem:[#allocation2 + $0x2b0] sm:$0xff]
    %v1798 = vld [vmem:[#allocation2 + $0x2b8] sm:$0xff]
    %v1799 = vld [vmem:[#allocation2 + $0x2c0] sm:$0xff]
    %v1800 = vld [vmem:[#allocation2 + $0x2c8] sm:$0xff]
    %v1801 = vld [vmem:[#allocation2 + $0x2d0] sm:$0xff]
    %v1802 = vld [vmem:[#allocation2 + $0x2d8] sm:$0xff]
    %v1803 = vld [vmem:[#allocation2 + $0x2e0] sm:$0xff]
    %v1804 = vld [vmem:[#allocation2 + $0x2e8] sm:$0xff]
    %v1805 = vld [vmem:[#allocation2 + $0x2f0] sm:$0xff]
    %v1806 = vld [vmem:[#allocation2 + $0x2f8] sm:$0xff]
    %v1807 = vld [vmem:[#allocation2 + $0x300] sm:$0xff]
    %v1808 = vld [vmem:[#allocation2 + $0x308] sm:$0xff]
    %v1809 = vld [vmem:[#allocation2 + $0x310] sm:$0xff]
    %v1810 = vld [vmem:[#allocation2 + $0x318] sm:$0xff]
    %v1811 = vld [vmem:[#allocation2 + $0x320] sm:$0xff]
    %v1812 = vld [vmem:[#allocation2 + $0x328] sm:$0xff]
    %v1813 = vld [vmem:[#allocation2 + $0x330] sm:$0xff]
    %v1814 = vld [vmem:[#allocation2 + $0x338] sm:$0xff]
    %v1815 = vld [vmem:[#allocation2 + $0x340] sm:$0xff]
    %v1816 = vld [vmem:[#allocation2 + $0x348] sm:$0xff]
    %v1817 = vld [vmem:[#allocation2 + $0x350] sm:$0xff]
    %v1818 = vld [vmem:[#allocation2 + $0x358] sm:$0xff]
    %v1819 = vld [vmem:[#allocation2 + $0x360] sm:$0xff]
    %v1820 = vld [vmem:[#allocation2 + $0x368] sm:$0xff]
    %v1821 = vld [vmem:[#allocation2 + $0x370] sm:$0xff]
    %v1822 = vld [vmem:[#allocation2 + $0x378] sm:$0xff]
    %v1823 = vld [vmem:[#allocation2 + $0x380] sm:$0xff]
    %v1824 = vld [vmem:[#allocation2 + $0x388] sm:$0xff]
    %v1825 = vld [vmem:[#allocation2 + $0x390] sm:$0xff]
    %v1826 = vld [vmem:[#allocation2 + $0x398] sm:$0xff]
    %v1827 = vld [vmem:[#allocation2 + $0x3a0] sm:$0xff]
    %v1828 = vld [vmem:[#allocation2 + $0x3a8] sm:$0xff]
    %v1829 = vld [vmem:[#allocation2 + $0x3b0] sm:$0xff]
    %v1830 = vld [vmem:[#allocation2 + $0x3b8] sm:$0xff]
    %v1831 = vld [vmem:[#allocation2 + $0x3c0] sm:$0xff]
    %v1832 = vld [vmem:[#allocation2 + $0x3c8] sm:$0xff]
    %v1833 = vld [vmem:[#allocation2 + $0x3d0] sm:$0xff]
    %v1834 = vld [vmem:[#allocation2 + $0x3d8] sm:$0xff]
    %v1835 = vld [vmem:[#allocation2 + $0x3e0] sm:$0xff]
    %v1836 = vld [vmem:[#allocation2 + $0x3e8] sm:$0xff]
    %v1837 = vld [vmem:[#allocation2 + $0x3f0] sm:$0xff]
    %v1838 = vld [vmem:[#allocation2 + $0x3f8] sm:$0xff]
    %v1839 = vld [vmem:[#allocation2 + $0x400] sm:$0xff]
    %v1840 = vld [vmem:[#allocation2 + $0x408] sm:$0xff]
    %v1841 = vld [vmem:[#allocation2 + $0x410] sm:$0xff]
    %v1842 = vld [vmem:[#allocation2 + $0x418] sm:$0xff]
    %v1843 = vld [vmem:[#allocation2 + $0x420] sm:$0xff]
    %v1844 = vld [vmem:[#allocation2 + $0x428] sm:$0xff]
    %v1845 = vld [vmem:[#allocation2 + $0x430] sm:$0xff]
    %v1846 = vld [vmem:[#allocation2 + $0x438] sm:$0xff]
    %v1847 = vld [vmem:[#allocation2 + $0x440] sm:$0xff]
    %v1848 = vld [vmem:[#allocation2 + $0x448] sm:$0xff]
    %v1849 = vld [vmem:[#allocation2 + $0x450] sm:$0xff]
    %v1850 = vld [vmem:[#allocation2 + $0x458] sm:$0xff]
    %v1851 = vld [vmem:[#allocation2 + $0x460] sm:$0xff]
    %v1852 = vld [vmem:[#allocation2 + $0x468] sm:$0xff]
    %v1853 = vld [vmem:[#allocation2 + $0x470] sm:$0xff]
    %v1854 = vld [vmem:[#allocation2 + $0x478] sm:$0xff]
    %v1855 = vld [vmem:[#allocation2 + $0x480] sm:$0xff]
    %v1856 = vld [vmem:[#allocation2 + $0x488] sm:$0xff]
    %v1857 = vld [vmem:[#allocation2 + $0x490] sm:$0xff]
    %v1858 = vld [vmem:[#allocation2 + $0x498] sm:$0xff]
    %v1859 = vld [vmem:[#allocation2 + $0x4a0] sm:$0xff]
    %v1860 = vld [vmem:[#allocation2 + $0x4a8] sm:$0xff]
    %v1861 = vld [vmem:[#allocation2 + $0x4b0] sm:$0xff]
    %v1862 = vld [vmem:[#allocation2 + $0x4b8] sm:$0xff]
    %v1863 = vld [vmem:[#allocation2 + $0x4c0] sm:$0xff]
    %v1864 = vld [vmem:[#allocation2 + $0x4c8] sm:$0xff]
    %v1865 = vld [vmem:[#allocation2 + $0x4d0] sm:$0xff]
    %v1866 = vld [vmem:[#allocation2 + $0x4d8] sm:$0xff]
    %v1867 = vld [vmem:[#allocation2 + $0x4e0] sm:$0xff]
    %v1868 = vld [vmem:[#allocation2 + $0x4e8] sm:$0xff]
    %v1869 = vld [vmem:[#allocation2 + $0x4f0] sm:$0xff]
    %v1870 = vld [vmem:[#allocation2 + $0x4f8] sm:$0xff]
    %v1871 = vld [vmem:[#allocation2 + $0x500] sm:$0xff]
    %v1872 = vld [vmem:[#allocation2 + $0x508] sm:$0xff]
    %v1873 = vld [vmem:[#allocation2 + $0x510] sm:$0xff]
    %v1874 = vld [vmem:[#allocation2 + $0x518] sm:$0xff]
    %v1875 = vld [vmem:[#allocation2 + $0x520] sm:$0xff]
    %v1876 = vld [vmem:[#allocation2 + $0x528] sm:$0xff]
    %v1877 = vld [vmem:[#allocation2 + $0x530] sm:$0xff]
    %v1878 = vld [vmem:[#allocation2 + $0x538] sm:$0xff]
    %v1879 = vld [vmem:[#allocation2 + $0x540] sm:$0xff]
    %v1880 = vld [vmem:[#allocation2 + $0x548] sm:$0xff]
    %v1881 = vld [vmem:[#allocation2 + $0x550] sm:$0xff]
    %v1882 = vld [vmem:[#allocation2 + $0x558] sm:$0xff]
    %v1883 = vld [vmem:[#allocation2 + $0x560] sm:$0xff]
    %v1884 = vld [vmem:[#allocation2 + $0x568] sm:$0xff]
    %v1885 = vld [vmem:[#allocation2 + $0x570] sm:$0xff]
    %v1886 = vld [vmem:[#allocation2 + $0x578] sm:$0xff]
    %v1887 = vld [vmem:[#allocation2 + $0x580] sm:$0xff]
    %v1888 = vld [vmem:[#allocation2 + $0x588] sm:$0xff]
    %v1889 = vld [vmem:[#allocation2 + $0x590] sm:$0xff]
    %v1890 = vld [vmem:[#allocation2 + $0x598] sm:$0xff]
    %v1891 = vld [vmem:[#allocation2 + $0x5a0] sm:$0xff]
    %v1892 = vld [vmem:[#allocation2 + $0x5a8] sm:$0xff]
    %v1893 = vld [vmem:[#allocation2 + $0x5b0] sm:$0xff]
    %v1894 = vld [vmem:[#allocation2 + $0x5b8] sm:$0xff]
    %v1895 = vld [vmem:[#allocation2 + $0x5c0] sm:$0xff]
    %v1896 = vld [vmem:[#allocation2 + $0x5c8] sm:$0xff]
    %v1897 = vld [vmem:[#allocation2 + $0x5d0] sm:$0xff]
    %v1898 = vld [vmem:[#allocation2 + $0x5d8] sm:$0xff]
    %v1899 = vld [vmem:[#allocation2 + $0x5e0] sm:$0xff]
    %v1900 = vld [vmem:[#allocation2 + $0x5e8] sm:$0xff]
    %v1901 = vld [vmem:[#allocation2 + $0x5f0] sm:$0xff]
    %v1902 = vld [vmem:[#allocation2 + $0x5f8] sm:$0xff]
    %v1903 = vld [vmem:[#allocation2 + $0x600] sm:$0xff]
    %v1904 = vld [vmem:[#allocation2 + $0x608] sm:$0xff]
    %v1905 = vld [vmem:[#allocation2 + $0x610] sm:$0xff]
    %v1906 = vld [vmem:[#allocation2 + $0x618] sm:$0xff]
    %v1907 = vld [vmem:[#allocation2 + $0x620] sm:$0xff]
    %v1908 = vld [vmem:[#allocation2 + $0x628] sm:$0xff]
    %v1909 = vld [vmem:[#allocation2 + $0x630] sm:$0xff]
    %v1910 = vld [vmem:[#allocation2 + $0x638] sm:$0xff]
    %v1911 = vld [vmem:[#allocation2 + $0x640] sm:$0xff]
    %v1912 = vld [vmem:[#allocation2 + $0x648] sm:$0xff]
    %v1913 = vld [vmem:[#allocation2 + $0x650] sm:$0xff]
    %v1914 = vld [vmem:[#allocation2 + $0x658] sm:$0xff]
    %v1915 = vld [vmem:[#allocation2 + $0x660] sm:$0xff]
    %v1916 = vld [vmem:[#allocation2 + $0x668] sm:$0xff]
    %v1917 = vld [vmem:[#allocation2 + $0x670] sm:$0xff]
    %v1918 = vld [vmem:[#allocation2 + $0x678] sm:$0xff]
    %v1919 = vld [vmem:[#allocation2 + $0x680] sm:$0xff]
    %v1920 = vld [vmem:[#allocation2 + $0x688] sm:$0xff]
    %v1921 = vld [vmem:[#allocation2 + $0x690] sm:$0xff]
    %v1922 = vld [vmem:[#allocation2 + $0x698] sm:$0xff]
    %v1923 = vld [vmem:[#allocation2 + $0x6a0] sm:$0xff]
    %v1924 = vld [vmem:[#allocation2 + $0x6a8] sm:$0xff]
    %v1925 = vld [vmem:[#allocation2 + $0x6b0] sm:$0xff]
    %v1926 = vld [vmem:[#allocation2 + $0x6b8] sm:$0xff]
    %v1927 = vld [vmem:[#allocation2 + $0x6c0] sm:$0xff]
    %v1928 = vld [vmem:[#allocation2 + $0x6c8] sm:$0xff]
    %v1929 = vld [vmem:[#allocation2 + $0x6d0] sm:$0xff]
    %v1930 = vld [vmem:[#allocation2 + $0x6d8] sm:$0xff]
    %v1931 = vld [vmem:[#allocation2 + $0x6e0] sm:$0xff]
    %v1932 = vld [vmem:[#allocation2 + $0x6e8] sm:$0xff]
    %v1933 = vld [vmem:[#allocation2 + $0x6f0] sm:$0xff]
    %v1934 = vld [vmem:[#allocation2 + $0x6f8] sm:$0xff]
    %v1935 = vld [vmem:[%s10] sm:$0x3]
    %v1937 = vperm.slane %v1935, 0
    %v1938 = vperm.slane %v1935, 1
    %1941 = vmatpush.msra.mxu0 %v1741
    %1942 = vmatpush.msra.mxu0 %v1739
    %1943 = vmatpush.msra.mxu0 %v1737
    %1944 = vmatpush.msra.mxu0 %v1735
    %1945 = vmatpush.msra.mxu0 %v1733
    %1946 = vmatpush.msra.mxu0 %v1731
    %1947 = vmatpush.msra.mxu0 %v1729
    %1948 = vmatpush.msra.mxu0 %v1727
    %1949 = vmatpush.msra.mxu0 %v1725
    %1950 = vmatpush.msra.mxu0 %v1723
    %1951 = vmatpush.msra.mxu0 %v1721
    %1952 = vmatpush.msra.mxu0 %v1719
    %1953 = vmatpush.msra.mxu0 %v1717
    %1954 = vmatpush.msra.mxu0 %v1715
    %1955 = vmatpush.msra.mxu0 %v1713
    %1956 = vmatpush.msra.mxu0 %v1711
    %1957 = vmatmul.f32.gmra.mxu0 %v1700
    %v1958 = vpop.f32.mrf.mxu0
    %v1959 = vadd.f32 %v1937, %v1958
    %1960 = vdwg.mxu0
    %1961 = vmatpush.msra.mxu0 %v1773
    %1962 = vmatpush.msra.mxu0 %v1771
    %1963 = vmatpush.msra.mxu0 %v1769
    %1964 = vmatpush.msra.mxu0 %v1767
    %1965 = vmatpush.msra.mxu0 %v1765
    %1966 = vmatpush.msra.mxu0 %v1763
    %1967 = vmatpush.msra.mxu0 %v1761
    %1968 = vmatpush.msra.mxu0 %v1759
    %1969 = vmatpush.msra.mxu0 %v1757
    %1970 = vmatpush.msra.mxu0 %v1755
    %1971 = vmatpush.msra.mxu0 %v1753
    %1972 = vmatpush.msra.mxu0 %v1751
    %1973 = vmatpush.msra.mxu0 %v1749
    %1974 = vmatpush.msra.mxu0 %v1747
    %1975 = vmatpush.msra.mxu0 %v1745
    %1976 = vmatpush.msra.mxu0 %v1743
    %1977 = vmatmul.f32.gmra.mxu0 %v1701
    %v1978 = vpop.f32.mrf.mxu0
    %v1979 = vadd.f32 %v1959, %v1978
    %1980 = vdwg.mxu0
    %1981 = vmatpush.msra.mxu0 %v1805
    %1982 = vmatpush.msra.mxu0 %v1803
    %1983 = vmatpush.msra.mxu0 %v1801
    %1984 = vmatpush.msra.mxu0 %v1799
    %1985 = vmatpush.msra.mxu0 %v1797
    %1986 = vmatpush.msra.mxu0 %v1795
    %1987 = vmatpush.msra.mxu0 %v1793
    %1988 = vmatpush.msra.mxu0 %v1791
    %1989 = vmatpush.msra.mxu0 %v1789
    %1990 = vmatpush.msra.mxu0 %v1787
    %1991 = vmatpush.msra.mxu0 %v1785
    %1992 = vmatpush.msra.mxu0 %v1783
    %1993 = vmatpush.msra.mxu0 %v1781
    %1994 = vmatpush.msra.mxu0 %v1779
    %1995 = vmatpush.msra.mxu0 %v1777
    %1996 = vmatpush.msra.mxu0 %v1775
    %1997 = vmatmul.f32.gmra.mxu0 %v1702
    %v1998 = vpop.f32.mrf.mxu0
    %v1999 = vadd.f32 %v1979, %v1998
    %2000 = vdwg.mxu0
    %2001 = vmatpush.msra.mxu0 %v1837
    %2002 = vmatpush.msra.mxu0 %v1835
    %2003 = vmatpush.msra.mxu0 %v1833
    %2004 = vmatpush.msra.mxu0 %v1831
    %2005 = vmatpush.msra.mxu0 %v1829
    %2006 = vmatpush.msra.mxu0 %v1827
    %2007 = vmatpush.msra.mxu0 %v1825
    %2008 = vmatpush.msra.mxu0 %v1823
    %2009 = vmatpush.msra.mxu0 %v1821
    %2010 = vmatpush.msra.mxu0 %v1819
    %2011 = vmatpush.msra.mxu0 %v1817
    %2012 = vmatpush.msra.mxu0 %v1815
    %2013 = vmatpush.msra.mxu0 %v1813
    %2014 = vmatpush.msra.mxu0 %v1811
    %2015 = vmatpush.msra.mxu0 %v1809
    %2016 = vmatpush.msra.mxu0 %v1807
    %2017 = vmatmul.f32.gmra.mxu0 %v1703
    %v2018 = vpop.f32.mrf.mxu0
    %v2019 = vadd.f32 %v1999, %v2018
    %2020 = vdwg.mxu0
    %2021 = vmatpush.msra.mxu0 %v1869
    %2022 = vmatpush.msra.mxu0 %v1867
    %2023 = vmatpush.msra.mxu0 %v1865
    %2024 = vmatpush.msra.mxu0 %v1863
    %2025 = vmatpush.msra.mxu0 %v1861
    %2026 = vmatpush.msra.mxu0 %v1859
    %2027 = vmatpush.msra.mxu0 %v1857
    %2028 = vmatpush.msra.mxu0 %v1855
    %2029 = vmatpush.msra.mxu0 %v1853
    %2030 = vmatpush.msra.mxu0 %v1851
    %2031 = vmatpush.msra.mxu0 %v1849
    %2032 = vmatpush.msra.mxu0 %v1847
    %2033 = vmatpush.msra.mxu0 %v1845
    %2034 = vmatpush.msra.mxu0 %v1843
    %2035 = vmatpush.msra.mxu0 %v1841
    %2036 = vmatpush.msra.mxu0 %v1839
    %2037 = vmatmul.f32.gmra.mxu0 %v1704
    %v2038 = vpop.f32.mrf.mxu0
    %v2039 = vadd.f32 %v2019, %v2038
    %2040 = vdwg.mxu0
    %2041 = vmatpush.msra.mxu0 %v1901
    %2042 = vmatpush.msra.mxu0 %v1899
    %2043 = vmatpush.msra.mxu0 %v1897
    %2044 = vmatpush.msra.mxu0 %v1895
    %2045 = vmatpush.msra.mxu0 %v1893
    %2046 = vmatpush.msra.mxu0 %v1891
    %2047 = vmatpush.msra.mxu0 %v1889
    %2048 = vmatpush.msra.mxu0 %v1887
    %2049 = vmatpush.msra.mxu0 %v1885
    %2050 = vmatpush.msra.mxu0 %v1883
    %2051 = vmatpush.msra.mxu0 %v1881
    %2052 = vmatpush.msra.mxu0 %v1879
    %2053 = vmatpush.msra.mxu0 %v1877
    %2054 = vmatpush.msra.mxu0 %v1875
    %2055 = vmatpush.msra.mxu0 %v1873
    %2056 = vmatpush.msra.mxu0 %v1871
    %2057 = vmatmul.f32.gmra.mxu0 %v1705
    %v2058 = vpop.f32.mrf.mxu0
    %v2059 = vadd.f32 %v2039, %v2058
    %2060 = vdwg.mxu0
    %2061 = vmatpush.msra.mxu0 %v1933
    %2062 = vmatpush.msra.mxu0 %v1931
    %2063 = vmatpush.msra.mxu0 %v1929
    %2064 = vmatpush.msra.mxu0 %v1927
    %2065 = vmatpush.msra.mxu0 %v1925
    %2066 = vmatpush.msra.mxu0 %v1923
    %2067 = vmatpush.msra.mxu0 %v1921
    %2068 = vmatpush.msra.mxu0 %v1919
    %2069 = vmatpush.msra.mxu0 %v1917
    %2070 = vmatpush.msra.mxu0 %v1915
    %2071 = vmatpush.msra.mxu0 %v1913
    %2072 = vmatpush.msra.mxu0 %v1911
    %2073 = vmatpush.msra.mxu0 %v1909
    %2074 = vmatpush.msra.mxu0 %v1907
    %2075 = vmatpush.msra.mxu0 %v1905
    %2076 = vmatpush.msra.mxu0 %v1903
    %2077 = vmatmul.f32.gmra.mxu0 %v1706
    %v2078 = vpop.f32.mrf.mxu0
    %v2079 = vadd.f32 %v2059, %v2078
    %2080 = vdwg.mxu0
    %2081 = vmatpush.msra.mxu0 %v1742
    %2082 = vmatpush.msra.mxu0 %v1740
    %2083 = vmatpush.msra.mxu0 %v1738
    %2084 = vmatpush.msra.mxu0 %v1736
    %2085 = vmatpush.msra.mxu0 %v1734
    %2086 = vmatpush.msra.mxu0 %v1732
    %2087 = vmatpush.msra.mxu0 %v1730
    %2088 = vmatpush.msra.mxu0 %v1728
    %2089 = vmatpush.msra.mxu0 %v1726
    %2090 = vmatpush.msra.mxu0 %v1724
    %2091 = vmatpush.msra.mxu0 %v1722
    %2092 = vmatpush.msra.mxu0 %v1720
    %2093 = vmatpush.msra.mxu0 %v1718
    %2094 = vmatpush.msra.mxu0 %v1716
    %2095 = vmatpush.msra.mxu0 %v1714
    %2096 = vmatpush.msra.mxu0 %v1712
    %2097 = vmatmul.f32.gmra.mxu0 %v1700
    %v2098 = vpop.f32.mrf.mxu0
    %v2099 = vadd.f32 %v1938, %v2098
    %2100 = vdwg.mxu0
    %2101 = vmatpush.msra.mxu0 %v1774
    %2102 = vmatpush.msra.mxu0 %v1772
    %2103 = vmatpush.msra.mxu0 %v1770
    %2104 = vmatpush.msra.mxu0 %v1768
    %2105 = vmatpush.msra.mxu0 %v1766
    %2106 = vmatpush.msra.mxu0 %v1764
    %2107 = vmatpush.msra.mxu0 %v1762
    %2108 = vmatpush.msra.mxu0 %v1760
    %2109 = vmatpush.msra.mxu0 %v1758
    %2110 = vmatpush.msra.mxu0 %v1756
    %2111 = vmatpush.msra.mxu0 %v1754
    %2112 = vmatpush.msra.mxu0 %v1752
    %2113 = vmatpush.msra.mxu0 %v1750
    %2114 = vmatpush.msra.mxu0 %v1748
    %2115 = vmatpush.msra.mxu0 %v1746
    %2116 = vmatpush.msra.mxu0 %v1744
    %2117 = vmatmul.f32.gmra.mxu0 %v1701
    %v2118 = vpop.f32.mrf.mxu0
    %v2119 = vadd.f32 %v2099, %v2118
    %2120 = vdwg.mxu0
    %2121 = vmatpush.msra.mxu0 %v1806
    %2122 = vmatpush.msra.mxu0 %v1804
    %2123 = vmatpush.msra.mxu0 %v1802
    %2124 = vmatpush.msra.mxu0 %v1800
    %2125 = vmatpush.msra.mxu0 %v1798
    %2126 = vmatpush.msra.mxu0 %v1796
    %2127 = vmatpush.msra.mxu0 %v1794
    %2128 = vmatpush.msra.mxu0 %v1792
    %2129 = vmatpush.msra.mxu0 %v1790
    %2130 = vmatpush.msra.mxu0 %v1788
    %2131 = vmatpush.msra.mxu0 %v1786
    %2132 = vmatpush.msra.mxu0 %v1784
    %2133 = vmatpush.msra.mxu0 %v1782
    %2134 = vmatpush.msra.mxu0 %v1780
    %2135 = vmatpush.msra.mxu0 %v1778
    %2136 = vmatpush.msra.mxu0 %v1776
    %2137 = vmatmul.f32.gmra.mxu0 %v1702
    %v2138 = vpop.f32.mrf.mxu0
    %v2139 = vadd.f32 %v2119, %v2138
    %2140 = vdwg.mxu0
    %2141 = vmatpush.msra.mxu0 %v1838
    %2142 = vmatpush.msra.mxu0 %v1836
    %2143 = vmatpush.msra.mxu0 %v1834
    %2144 = vmatpush.msra.mxu0 %v1832
    %2145 = vmatpush.msra.mxu0 %v1830
    %2146 = vmatpush.msra.mxu0 %v1828
    %2147 = vmatpush.msra.mxu0 %v1826
    %2148 = vmatpush.msra.mxu0 %v1824
    %2149 = vmatpush.msra.mxu0 %v1822
    %2150 = vmatpush.msra.mxu0 %v1820
    %2151 = vmatpush.msra.mxu0 %v1818
    %2152 = vmatpush.msra.mxu0 %v1816
    %2153 = vmatpush.msra.mxu0 %v1814
    %2154 = vmatpush.msra.mxu0 %v1812
    %2155 = vmatpush.msra.mxu0 %v1810
    %2156 = vmatpush.msra.mxu0 %v1808
    %2157 = vmatmul.f32.gmra.mxu0 %v1703
    %v2158 = vpop.f32.mrf.mxu0
    %v2159 = vadd.f32 %v2139, %v2158
    %2160 = vdwg.mxu0
    %2161 = vmatpush.msra.mxu0 %v1870
    %2162 = vmatpush.msra.mxu0 %v1868
    %2163 = vmatpush.msra.mxu0 %v1866
    %2164 = vmatpush.msra.mxu0 %v1864
    %2165 = vmatpush.msra.mxu0 %v1862
    %2166 = vmatpush.msra.mxu0 %v1860
    %2167 = vmatpush.msra.mxu0 %v1858
    %2168 = vmatpush.msra.mxu0 %v1856
    %2169 = vmatpush.msra.mxu0 %v1854
    %2170 = vmatpush.msra.mxu0 %v1852
    %2171 = vmatpush.msra.mxu0 %v1850
    %2172 = vmatpush.msra.mxu0 %v1848
    %2173 = vmatpush.msra.mxu0 %v1846
    %2174 = vmatpush.msra.mxu0 %v1844
    %2175 = vmatpush.msra.mxu0 %v1842
    %2176 = vmatpush.msra.mxu0 %v1840
    %2177 = vmatmul.f32.gmra.mxu0 %v1704
    %v2178 = vpop.f32.mrf.mxu0
    %v2179 = vadd.f32 %v2159, %v2178
    %2180 = vdwg.mxu0
    %2181 = vmatpush.msra.mxu0 %v1902
    %2182 = vmatpush.msra.mxu0 %v1900
    %2183 = vmatpush.msra.mxu0 %v1898
    %2184 = vmatpush.msra.mxu0 %v1896
    %2185 = vmatpush.msra.mxu0 %v1894
    %2186 = vmatpush.msra.mxu0 %v1892
    %2187 = vmatpush.msra.mxu0 %v1890
    %2188 = vmatpush.msra.mxu0 %v1888
    %2189 = vmatpush.msra.mxu0 %v1886
    %2190 = vmatpush.msra.mxu0 %v1884
    %2191 = vmatpush.msra.mxu0 %v1882
    %2192 = vmatpush.msra.mxu0 %v1880
    %2193 = vmatpush.msra.mxu0 %v1878
    %2194 = vmatpush.msra.mxu0 %v1876
    %2195 = vmatpush.msra.mxu0 %v1874
    %2196 = vmatpush.msra.mxu0 %v1872
    %2197 = vmatmul.f32.gmra.mxu0 %v1705
    %v2198 = vpop.f32.mrf.mxu0
    %v2199 = vadd.f32 %v2179, %v2198
    %2200 = vdwg.mxu0
    %2201 = vmatpush.msra.mxu0 %v1934
    %2202 = vmatpush.msra.mxu0 %v1932
    %2203 = vmatpush.msra.mxu0 %v1930
    %2204 = vmatpush.msra.mxu0 %v1928
    %2205 = vmatpush.msra.mxu0 %v1926
    %2206 = vmatpush.msra.mxu0 %v1924
    %2207 = vmatpush.msra.mxu0 %v1922
    %2208 = vmatpush.msra.mxu0 %v1920
    %2209 = vmatpush.msra.mxu0 %v1918
    %2210 = vmatpush.msra.mxu0 %v1916
    %2211 = vmatpush.msra.mxu0 %v1914
    %2212 = vmatpush.msra.mxu0 %v1912
    %2213 = vmatpush.msra.mxu0 %v1910
    %2214 = vmatpush.msra.mxu0 %v1908
    %2215 = vmatpush.msra.mxu0 %v1906
    %2216 = vmatpush.msra.mxu0 %v1904
    %2217 = vmatmul.f32.gmra.mxu0 %v1706
    %v2218 = vpop.f32.mrf.mxu0
    %v2219 = vadd.f32 %v2199, %v2218
    %2220 = vdwg.mxu0
    %v2221 = vrot.slane %v2079, 4
    %v2222 = vadd.f32 %v2079, %v2221
    %v2223 = vrot.slane %v2222, 2
    %v2224 = vadd.f32 %v2222, %v2223
    %v2225 = vrot.slane %v2224, 1
    %v2226 = vadd.f32 %v2224, %v2225
    %vm2227 = vcmask 580608
    %v2228 = vsel %vm2227, %v2219, 0.0
    %v2229 = vrot.slane %v2228, 4
    %v2230 = vadd.f32 %v2228, %v2229
    %v2231 = vrot.slane %v2230, 2
    %v2232 = vadd.f32 %v2230, %v2231
    %v2233 = vrot.slane %v2232, 1
    %v2234 = vadd.f32 %v2232, %v2233
    %v2235 = vmul.f32 %v2226, 0.125
    %v2236 = vmul.f32 %v2234, 0.125
    %v2237 = vmul.f32 %v2079, %v2079
    %v2238 = vmul.f32 %v2219, %v2219
    %v2239 = vrot.slane %v2237, 4
    %v2240 = vadd.f32 %v2237, %v2239
    %v2241 = vrot.slane %v2240, 2
    %v2242 = vadd.f32 %v2240, %v2241
    %v2243 = vrot.slane %v2242, 1
    %v2244 = vadd.f32 %v2242, %v2243
    %v2245 = vsel %vm2227, %v2238, 0.0
    %v2246 = vrot.slane %v2245, 4
    %v2247 = vadd.f32 %v2245, %v2246
    %v2248 = vrot.slane %v2247, 2
    %v2249 = vadd.f32 %v2247, %v2248
    %v2250 = vrot.slane %v2249, 1
    %v2251 = vadd.f32 %v2249, %v2250
    %v2252 = vmul.f32 %v2244, 0.125
    %v2253 = vmul.f32 %v2251, 0.125
    %v2254 = vmul.f32 %v2235, %v2235
    %v2255 = vmul.f32 %v2236, %v2236
    %v2256 = vsub.f32 %v2252, %v2254
    %v2257 = vsub.f32 %v2253, %v2255
    %v2258 = vmax.f32 %v2256, 0.0
    %v2259 = vmax.f32 %v2257, 0.0
    %v2260 = vsub.f32 %v2079, %v2235
    %v2261 = vsub.f32 %v2219, %v2236
    %v2262 = vadd.f32 %v2258, 1e-05
    %v2263 = vadd.f32 %v2259, 1e-05
    %v2264 = vrsqrt.pop %v2262
    %v2265 = vmul.f32 %v2264, %v2262
    %v2266 = vmul.f32 %v2265, %v2264
    %v2267 = vmul.f32 0.5, %v2266
    %v2268 = vsub.f32 1.5, %v2267
    %v2269 = vmul.f32 %v2264, %v2268
    %vm2270 = vweird.f32 %v2262
    %vm2271 = vweird.f32 %v2264
    %vm2272 = vmor %vm2270, %vm2271
    %v2273 = vsel %vm2272, %v2264, %v2269
    %v2274 = vrsqrt.pop %v2263
    %v2275 = vmul.f32 %v2274, %v2263
    %v2276 = vmul.f32 %v2275, %v2274
    %v2277 = vmul.f32 0.5, %v2276
    %v2278 = vsub.f32 1.5, %v2277
    %v2279 = vmul.f32 %v2274, %v2278
    %vm2280 = vweird.f32 %v2263
    %vm2281 = vweird.f32 %v2274
    %vm2282 = vmor %vm2280, %vm2281
    %v2283 = vsel %vm2282, %v2274, %v2279
    %v2284 = vmul.f32 %v2260, %v2273
    %v2285 = vmul.f32 %v2261, %v2283
    %v2286 = vld [vmem:[%s11] sm:$0x3]
    %v2288 = vperm.slane %v2286, 0
    %v2289 = vperm.slane %v2286, 1
    %v2292 = vmul.f32 %v2284, %v2288
    %v2293 = vmul.f32 %v2285, %v2289
    %v2294 = vld [vmem:[%s12] sm:$0x3]
    %v2296 = vperm.slane %v2294, 0
    %v2297 = vperm.slane %v2294, 1
    %v2300 = vadd.f32 %v2292, %v2296
    %v2301 = vadd.f32 %v2293, %v2297
    %vm2302 = vcmp.gt.f32.partialorder %v2300, 0.0
    %vm2303 = vcmp.gt.f32.partialorder %v2301, 0.0
    %v2304 = vmul.f32 %v2300, 0.01
    %v2305 = vmul.f32 %v2301, 0.01
    %v2306 = vsel %vm2302, %v2300, %v2304
    %v2307 = vsel %vm2303, %v2301, %v2305
    %v2308 = vld [vmem:[%s13] sm:$0xff]
    %v2309 = vld [vmem:[%s13 + $0x8] sm:$0xff]
    %v2310 = vld [vmem:[%s13 + $0x10] sm:$0xff]
    %v2311 = vld [vmem:[%s13 + $0x18] sm:$0xff]
    %v2312 = vld [vmem:[%s13 + $0x20] sm:$0xff]
    %v2313 = vld [vmem:[%s13 + $0x28] sm:$0xff]
    %v2314 = vld [vmem:[%s13 + $0x30] sm:$0xff]
    %v2315 = vld [vmem:[%s13 + $0x38] sm:$0xff]
    %v2316 = vld [vmem:[%s13 + $0x40] sm:$0xff]
    %v2317 = vld [vmem:[%s13 + $0x48] sm:$0xff]
    %v2318 = vld [vmem:[%s13 + $0x50] sm:$0xff]
    %v2319 = vld [vmem:[%s13 + $0x58] sm:$0xff]
    %v2320 = vld [vmem:[%s13 + $0x60] sm:$0xff]
    %v2321 = vld [vmem:[%s13 + $0x68] sm:$0xff]
    %v2322 = vld [vmem:[%s13 + $0x70] sm:$0xff]
    %v2323 = vld [vmem:[%s13 + $0x78] sm:$0xff]
    %v2324 = vld [vmem:[%s13 + $0x80] sm:$0xff]
    %v2325 = vld [vmem:[%s13 + $0x88] sm:$0xff]
    %v2326 = vld [vmem:[%s13 + $0x90] sm:$0xff]
    %v2327 = vld [vmem:[%s13 + $0x98] sm:$0xff]
    %v2328 = vld [vmem:[%s13 + $0xa0] sm:$0xff]
    %v2329 = vld [vmem:[%s13 + $0xa8] sm:$0xff]
    %v2330 = vld [vmem:[%s13 + $0xb0] sm:$0xff]
    %v2331 = vld [vmem:[%s13 + $0xb8] sm:$0xff]
    %v2332 = vld [vmem:[%s13 + $0xc0] sm:$0x7f]
    %v2333 = vld [vmem:[%s14] sm:$0x1]
    %v2335 = vperm.slane %v2333, 0
    %v2338 = vsel %vm2227, %v2307, 0
    %vm2340 = vcmask 1046528
    %v2342 = vsel %vm2340, %v2332, 0
    %2344 = vmatpush.msra.mxu0 %v2323
    %2345 = vmatpush.msra.mxu0 %v2322
    %2346 = vmatpush.msra.mxu0 %v2321
    %2347 = vmatpush.msra.mxu0 %v2320
    %2348 = vmatpush.msra.mxu0 %v2319
    %2349 = vmatpush.msra.mxu0 %v2318
    %2350 = vmatpush.msra.mxu0 %v2317
    %2351 = vmatpush.msra.mxu0 %v2316
    %2352 = vmatpush.msra.mxu0 %v2315
    %2353 = vmatpush.msra.mxu0 %v2314
    %2354 = vmatpush.msra.mxu0 %v2313
    %2355 = vmatpush.msra.mxu0 %v2312
    %2356 = vmatpush.msra.mxu0 %v2311
    %2357 = vmatpush.msra.mxu0 %v2310
    %2358 = vmatpush.msra.mxu0 %v2309
    %2359 = vmatpush.msra.mxu0 %v2308
    %2360 = vmatmul.f32.gmra.mxu0 %v2306
    %v2361 = vpop.f32.mrf.mxu0
    %v2362 = vadd.f32 %v2335, %v2361
    %2363 = vdwg.mxu0
    %2364 = vmatpush.msra.mxu0 0.0
    %2365 = vmatpush.msra.mxu0 0.0
    %2366 = vmatpush.msra.mxu0 0.0
    %2367 = vmatpush.msra.mxu0 0.0
    %2368 = vmatpush.msra.mxu0 0.0
    %2369 = vmatpush.msra.mxu0 0.0
    %2370 = vmatpush.msra.mxu0 0.0
    %2371 = vmatpush.msra.mxu0 %v2342
    %2372 = vmatpush.msra.mxu0 %v2331
    %2373 = vmatpush.msra.mxu0 %v2330
    %2374 = vmatpush.msra.mxu0 %v2329
    %2375 = vmatpush.msra.mxu0 %v2328
    %2376 = vmatpush.msra.mxu0 %v2327
    %2377 = vmatpush.msra.mxu0 %v2326
    %2378 = vmatpush.msra.mxu0 %v2325
    %2379 = vmatpush.msra.mxu0 %v2324
    %2380 = vmatmul.f32.gmra.mxu0 %v2338
    %v2381 = vpop.f32.mrf.mxu0
    %v2382 = vadd.f32 %v2362, %v2381
    %2383 = vdwg.mxu0
    %vm2384 = vcmask 203776
    %v2385 = vsel %vm2384, %v2382, 0.0
    %v2386 = vrot.slane %v2385, 4
    %v2387 = vadd.f32 %v2385, %v2386
    %v2388 = vrot.slane %v2387, 2
    %v2389 = vadd.f32 %v2387, %v2388
    %v2390 = vrot.slane %v2389, 1
    %v2391 = vadd.f32 %v2389, %v2390
    %v2392 = vmul.f32 %v2391, 0.125
    %v2393 = vmul.f32 %v2382, %v2382
    %v2394 = vsel %vm2384, %v2393, 0.0
    %v2395 = vrot.slane %v2394, 4
    %v2396 = vadd.f32 %v2394, %v2395
    %v2397 = vrot.slane %v2396, 2
    %v2398 = vadd.f32 %v2396, %v2397
    %v2399 = vrot.slane %v2398, 1
    %v2400 = vadd.f32 %v2398, %v2399
    %v2401 = vmul.f32 %v2400, 0.125
    %v2402 = vmul.f32 %v2392, %v2392
    %v2403 = vsub.f32 %v2401, %v2402
    %v2404 = vmax.f32 %v2403, 0.0
    %v2405 = vsub.f32 %v2382, %v2392
    %v2406 = vadd.f32 %v2404, 1e-05
    %v2407 = vrsqrt.pop %v2406
    %v2408 = vmul.f32 %v2407, %v2406
    %v2409 = vmul.f32 %v2408, %v2407
    %v2410 = vmul.f32 0.5, %v2409
    %v2411 = vsub.f32 1.5, %v2410
    %v2412 = vmul.f32 %v2407, %v2411
    %vm2413 = vweird.f32 %v2406
    %vm2414 = vweird.f32 %v2407
    %vm2415 = vmor %vm2413, %vm2414
    %v2416 = vsel %vm2415, %v2407, %v2412
    %v2417 = vmul.f32 %v2405, %v2416
    %v2418 = vld [vmem:[%s15] sm:$0x1]
    %v2420 = vperm.slane %v2418, 0
    %v2422 = vmul.f32 %v2417, %v2420
    %v2423 = vld [vmem:[%s16] sm:$0x1]
    %v2425 = vperm.slane %v2423, 0
    %v2427 = vadd.f32 %v2422, %v2425
    %vm2428 = vcmp.gt.f32.partialorder %v2427, 0.0
    %v2429 = vmul.f32 %v2427, 0.01
    %v2430 = vsel %vm2428, %v2427, %v2429
    %v2431 = vld [vmem:[%s17] sm:$0xff]
    %v2432 = vld [vmem:[%s17 + $0x8] sm:$0xff]
    %v2433 = vld [vmem:[%s17 + $0x10] sm:$0xff]
    %v2434 = vld [vmem:[%s17 + $0x18] sm:$0x1]
    %v2435 = vld [vmem:[%s18] sm:$0x1]
    %v2437 = vperm.slane %v2435, 0
    %v2440 = vsel %vm2384, %v2430, 0
    %vm2442 = vcmask 1040384
    %v2444 = vsel %vm2442, %v2434, 0
    %2446 = vmatpush.msra.mxu0 0.0
    %2447 = vmatpush.msra.mxu0 0.0
    %2448 = vmatpush.msra.mxu0 0.0
    %2449 = vmatpush.msra.mxu0 0.0
    %2450 = vmatpush.msra.mxu0 0.0
    %2451 = vmatpush.msra.mxu0 0.0
    %2452 = vmatpush.msra.mxu0 0.0
    %2453 = vmatpush.msra.mxu0 0.0
    %2454 = vmatpush.msra.mxu0 0.0
    %2455 = vmatpush.msra.mxu0 0.0
    %2456 = vmatpush.msra.mxu0 0.0
    %2457 = vmatpush.msra.mxu0 0.0
    %2458 = vmatpush.msra.mxu0 %v2444
    %2459 = vmatpush.msra.mxu0 %v2433
    %2460 = vmatpush.msra.mxu0 %v2432
    %2461 = vmatpush.msra.mxu0 %v2431
    %2462 = vmatmul.f32.gmra.mxu0 %v2440
    %v2463 = vpop.f32.mrf.mxu0
    %v2464 = vadd.f32 %v2437, %v2463
    %2465 = vdwg.mxu0
    %vm2466 = vcmask 39936
    %2467 = vst.msk [vmem:[#allocation16] sm:$0xff] %vm2466, %v2464
    // Predicated region
    $region113: #{mycnn_forward.1} parent=1 // pred_check
      _
    $region114: #{mycnn_forward.1} parent=1 // pred_check_branch
      %2469 = sbr.rel (0) target = $region116
    $region115: #{mycnn_forward.1} parent=1 // pred_region
      %2471 = vsyncadd [#allocation8], 0
      %s2473 = sshll.u32 [#allocation16], 4
      %s2474 = int_to_ptr.vmem [resolvable:$true] %s2473
      %s2475 = sshll.u32 %s19, 4
      %s2476 = int_to_ptr.hbm [resolvable:$true] %s2475
      %2478 = dma.vmem_to_hbm [thread:$0]  %s2474, 128, %s2476, [#allocation8]
    $region116: #{mycnn_forward.1} parent=1 // pred_fallthru
      _
    // Predicated region
    $region117: #{mycnn_forward.1} parent=1 // pred_check
      _
    $region118: #{mycnn_forward.1} parent=1 // pred_check_branch
      %2480 = sbr.rel (0) target = $region120
    $region119: #{mycnn_forward.1} parent=1 // pred_region
      %2482 = dma.done [#allocation8], 128
    $region120: #{mycnn_forward.1} parent=1 // pred_fallthru
      _
    %2483 = vsyncpa [#allocation8], 1
    %2484 = vsyncpa [#allocation9], 1
    %2485 = vsyncpa [#allocation11], 1
    %2486 = vsyncpa [#allocation14], 1
  %2487 = vsyncmov [#allocation3]
  %s2488 = vpop.sfrf %2487
  %p2489 = scmp.eq.s32.totalorder %s2488, 0
  %p2490 = pneg %p2489
  %2492 = shalt.err (%p2490)

</llo_original>
